<compile_context>
chip_gen: v7x
topology: tpu7x:2x2x1
jax: 0.10.0
libtpu: 0.0.40
codegen_flags: <defaults>
</compile_context>

<pallas_src>
import functools

import numpy as np
import jax
import jax.numpy as jnp
from jax.experimental import pallas as pl
from jax.experimental.pallas import tpu as pltpu

# ----------------------------- configuration --------------------------------
NUM_CLASSES = 4
GRID = 8
ANCHORS = 3
BATCH = 2

IGNORE_THRESH = 0.5
LAMBDA_COORD = 5.0
LAMBDA_NOOBJ = 0.5
EPS = 1e-7


# ------------------------------ fused kernel ---------------------------------
def _yolo_loss_kernel(stk_ref,     # (BB, 2, D, N)  [.,0]=pred logits, [.,1]=truth
                      aux_ref,     # (4, N)         rows: grid_x, grid_y, anc_w, anc_h
                      tsort_ref,   # (BB, N, 4)     per-column desc-sorted true x1y1x2y2
                      out_ref,     # (BB, 8, 1)     [xy, wh, class, obj_pos, noobj, 0,0,0]
                      *, grid_size, num_classes, batch_block, chunk):
    C = num_classes
    N = stk_ref.shape[-1]
    g = jnp.float32(grid_size)
    inv_g = jnp.float32(1.0 / grid_size)

    gxy = aux_ref[0:2, :]            # (2, N) cell offsets (cx, cy)
    anc = aux_ref[2:4, :]            # (2, N) anchor (w, h)

    # Channels are pre-reordered to [c0..c_{C-1}, x, y, w, h, obj] so that no
    # sublane slice below crosses the (8, 128) tile boundary.
    for b in range(batch_block):     # batch folded into one grid step on 1-TC chips
        yp = stk_ref[b, 0]           # (D, N) raw predictions (planar SoA)
        yt = stk_ref[b, 1]           # (D, N) ground truth

        # ---------------- get_absolute_yolo_box(y_pred) ----------------
        sig = jax.nn.sigmoid(yp)                 # single EUP pass (wh rows unused)
        pred_class = sig[0:C, :]                 # (C, N)
        pred_xy_rel = sig[C:C + 2, :]            # sigmoid(tx, ty)
        pred_wh_rel = yp[C + 2:C + 4, :]         # raw (tw, th)
        pred_obj = sig[C + 4:C + 5, :]           # (1, N)

        b_xy = (pred_xy_rel + gxy) * inv_g
        b_wh = jnp.exp(pred_wh_rel) * anc        # unguarded exp(), faithful
        p_x1y1 = b_xy - 0.5 * b_wh
        p_x2y2 = b_xy + 0.5 * b_wh
        px1 = p_x1y1[0:1, :]; py1 = p_x1y1[1:2, :]
        px2 = p_x2y2[0:1, :]; py2 = p_x2y2[1:2, :]
        p_area = (px2 - px1) * (py2 - py1)       # (1, N)

        # ---------------- get_relative_yolo_box(y_true) ----------------
        tb_xy = yt[C:C + 2, :]
        tb_wh = yt[C + 2:C + 4, :]
        true_obj = yt[C + 4:C + 5, :]            # (1, N)

        true_xy_rel = tb_xy * g - gxy
        ratio = tb_wh / anc
        true_wh_rel = jnp.where(ratio > 0.0,
                                jnp.log(jnp.where(ratio > 0.0, ratio, 1.0)), 0.0)
        true_x2y2 = tb_xy + 0.5 * tb_wh
        # weight from (x2, y2) of the converted box -- faithful reference quirk
        weight = 2.0 - true_x2y2[0:1, :] * true_x2y2[1:2, :]
        ow = true_obj * weight                   # (1, N)

        # ---------------- per-position partial loss rows ----------------
        dxy = true_xy_rel - pred_xy_rel
        xy_row = jnp.sum(dxy * dxy, axis=0, keepdims=True) * ow * LAMBDA_COORD
        dwh = true_wh_rel - pred_wh_rel
        wh_row = jnp.sum(dwh * dwh, axis=0, keepdims=True) * ow * LAMBDA_COORD

        # Reference BCE uses log(p) in both terms => reduces exactly to -log(p).
        log_pc = jnp.log(jnp.clip(pred_class, EPS, 1.0 - EPS))
        cls_row = jnp.sum(-log_pc, axis=0, keepdims=True) * true_obj

        obj_ent = -jnp.log(jnp.clip(pred_obj, EPS, 1.0 - EPS))   # (1, N)
        objpos_row = obj_ent * true_obj
        noobj_ent = (1.0 - true_obj) * obj_ent

        # -------- chunked broadcast IoU with running max (no (N,N) temps) --------
        best = jnp.full((chunk, N), -jnp.inf, dtype=jnp.float32)
        for c in range(N // chunk):
            tb = tsort_ref[b, c * chunk:(c + 1) * chunk, :]      # (chunk, 4) view load
            tx1 = tb[:, 0:1]; ty1 = tb[:, 1:2]
            tx2 = tb[:, 2:3]; ty2 = tb[:, 3:4]
            iw = jnp.maximum(jnp.minimum(px2, tx2) - jnp.maximum(px1, tx1), 0.0)
            ih = jnp.maximum(jnp.minimum(py2, ty2) - jnp.maximum(py1, ty1), 0.0)
            inter = iw * ih                                      # (chunk, N)
            t_area = (tx2 - tx1) * (ty2 - ty1)                   # (chunk, 1)
            denom = p_area + t_area - inter                      # no eps (faithful)
            iou = inter * pl.reciprocal(denom)                   # EUP recip + VALU mul
            best = jnp.maximum(best, iou)                        # elementwise running max
        best_iou = jnp.max(best, axis=0, keepdims=True)          # single small reduce
        ignore = (best_iou < IGNORE_THRESH).astype(jnp.float32)
        noobj_row = noobj_ent * ignore * LAMBDA_NOOBJ

        # -------- single fused cross-lane reduction of all partial rows --------
        stacked = jnp.concatenate(
            [xy_row, wh_row, cls_row, objpos_row, noobj_row,
             jnp.zeros((3, N), jnp.float32)], axis=0)            # (8, N)
        out_ref[b] = jnp.sum(stacked, axis=1, keepdims=True)     # (8, 1)


# -------------------------------- helpers -------------------------------------
def _tensorcores_per_chip():
    """Best-effort core count (v7x / megacore chips get batch-parallel grid)."""
    try:
        kind = jax.devices()[0].device_kind.lower()
    except Exception:
        return 1
    return 2 if any(tag in kind for tag in ("v7", "v4", "v5p")) else 1


def _build_aux(grid_size, num_anchors, anchors_wh):
    """Grid-cell offsets + per-position anchors, built ONCE with numpy (untraced)."""
    G, A = grid_size, num_anchors
    N = G * G * A
    r = np.arange(G, dtype=np.float32)
    gx, gy = np.meshgrid(r, r, indexing="xy")                      # grid[y, x] = (x, y)
    grid_xy = np.stack([gx, gy], axis=-1)                          # (G, G, 2)
    grid_flat = np.broadcast_to(grid_xy[:, :, None, :], (G, G, A, 2)).reshape(N, 2)
    anch_flat = np.broadcast_to(
        np.asarray(anchors_wh, np.float32)[None, None, :, :], (G, G, A, 2)
    ).reshape(N, 2)
    return jnp.asarray(np.concatenate([grid_flat.T, anch_flat.T], axis=0))  # (4, N)


# -------------------------------- wrapper -------------------------------------
@functools.partial(jax.jit, static_argnames=("num_classes", "batch_block"))
def _yolo_loss_impl(y_true, y_pred, aux, *, num_classes, batch_block):
    B, G, _, A, D = y_pred.shape
    N = G * G * A
    C = num_classes

    yp = y_pred.reshape(B, N, D).astype(jnp.float32)
    yt = y_true.reshape(B, N, D).astype(jnp.float32)

    # Channel reorder [class..., x, y, w, h, obj] + planar SoA + stack pred/true
    # into ONE input tensor (fewer DMAs, no tile-boundary-crossing slices).
    yp_r = jnp.concatenate([yp[..., 5:], yp[..., :5]], axis=-1)
    yt_r = jnp.concatenate([yt[..., 5:], yt[..., :5]], axis=-1)
    stk = jnp.transpose(jnp.stack([yp_r, yt_r], axis=1), (0, 1, 3, 2))   # (B, 2, D, N)

    # Absolute true boxes (x1,y1,x2,y2), per-column descending sort (reference quirk).
    # TODO(synk): no in-kernel sort primitive in Pallas TPU; this tiny (B, N, 4)
    # column sort stays in plain JAX.
    t_xy = yt[..., 0:2]
    t_wh = yt[..., 2:4]
    true_box = jnp.concatenate([t_xy - 0.5 * t_wh, t_xy + 0.5 * t_wh], axis=-1)
    tsort = -jnp.sort(-true_box, axis=1)                                 # (B, N, 4)

    chunk = 16 if N % 16 == 0 else (8 if N % 8 == 0 else N)

    kernel = functools.partial(_yolo_loss_kernel, grid_size=G, num_classes=C,
                               batch_block=batch_block, chunk=chunk)
    out = pl.pallas_call(
        kernel,
        grid=(B // batch_block,),
        in_specs=[
            pl.BlockSpec((batch_block, 2, D, N), lambda i: (i, 0, 0, 0)),
            pl.BlockSpec((4, N), lambda i: (0, 0)),
            pl.BlockSpec((batch_block, N, 4), lambda i: (i, 0, 0)),
        ],
        out_specs=pl.BlockSpec((batch_block, 8, 1), lambda i: (i, 0, 0)),
        out_shape=jax.ShapeDtypeStruct((B, 8, 1), jnp.float32),
        compiler_params=pltpu.CompilerParams(
            dimension_semantics=("parallel",),
            vmem_limit_bytes=32 * 1024 * 1024),
    )(stk, aux, tsort)

    sums = out.reshape(B, 8)
    xy_loss = sums[:, 0]
    wh_loss = sums[:, 1]
    class_loss = sums[:, 2]
    obj_loss = sums[:, 3] + sums[:, 4]            # obj_pos + lambda_noobj * noobj
    total = xy_loss + wh_loss + class_loss + obj_loss
    return total, (xy_loss, wh_loss, class_loss, obj_loss)


def yolo_loss(y_true, y_pred, valid_anchors_wh, num_classes=NUM_CLASSES):
    B, G, _, A, D = y_pred.shape
    aux = _build_aux(G, A, np.asarray(valid_anchors_wh, dtype=np.float32))
    # Multi-TensorCore chips: one batch element per core (grid=(B,), parallel).
    # Single-TC chips (v5e/v6e): fold the batch into one grid step (no per-step overhead).
    batch_block = 1 if (_tensorcores_per_chip() >= 2 and B > 1) else B
    return _yolo_loss_impl(y_true, y_pred, aux,
                           num_classes=num_classes, batch_block=batch_block)


# --------------------------------- main ----------------------------------------
if __name__ == "__main__":
    B, G, A, C = BATCH, GRID, ANCHORS, NUM_CLASSES
    D = 5 + C

    key = jax.random.PRNGKey(0)
    k1, k2, k3, k4, k5 = jax.random.split(key, 5)

    # raw network output (logits)
    y_pred = jax.random.normal(k1, (B, G, G, A, D), dtype=jnp.float32)

    # synthetic ground truth: normalized boxes, {0,1} objectness, {0,1} classes
    obj = (jax.random.uniform(k2, (B, G, G, A, 1)) > 0.8).astype(jnp.float32)
    xy = jax.random.uniform(k3, (B, G, G, A, 2), minval=0.1, maxval=0.9)
    wh = jax.random.uniform(k4, (B, G, G, A, 2), minval=0.05, maxval=0.3)
    cls = (jax.random.uniform(k5, (B, G, G, A, C)) > 0.75).astype(jnp.float32)
    y_true = jnp.concatenate([xy * obj, wh * obj, obj, cls * obj], axis=-1)

    # deterministic anchors (normalized w, h)
    valid_anchors_wh = jnp.array(
        [[0.10, 0.15], [0.20, 0.30], [0.40, 0.50]], dtype=jnp.float32
    )

    total, (xy_l, wh_l, class_l, obj_l) = yolo_loss(y_true, y_pred,
                                                    valid_anchors_wh)
    jax.block_until_ready(total)
    jax.block_until_ready((xy_l, wh_l, class_l, obj_l))
    print("KERNEL_OK")
</pallas_src>

<mosaic_0001>
module attributes {stable_mosaic.version = 11 : i64} {
  func.func @_yolo_loss_kernel(%arg0: i32, %arg1: memref<2x2x9x192xf32, #tpu.memory_space<vmem>>, %arg2: memref<4x192xf32, #tpu.memory_space<vmem>>, %arg3: memref<2x192x4xf32, #tpu.memory_space<vmem>>, %arg4: memref<2x8x1xf32, #tpu.memory_space<vmem>>) attributes {dimension_semantics = [#tpu.dimension_semantics<parallel>], iteration_bounds = array<i64: 1>, scalar_prefetch = 0 : i64, scratch_operands = 0 : i64, tpu.core_type = #tpu.core_type<tc>, window_params = [{transform_indices = @transform_0, window_bounds = array<i64: 2, 2, 9, 192>}, {pipeline_mode = #tpu.pipeline_mode<synchronous>, transform_indices = @transform_1, window_bounds = array<i64: 4, 192>}, {transform_indices = @transform_2, window_bounds = array<i64: 2, 192, 4>}, {transform_indices = @transform_3, window_bounds = array<i64: 2, 8, 1>}]} {
    %c0 = arith.constant 0 : index
    %c0_0 = arith.constant 0 : index
    %0 = vector.load %arg2[%c0, %c0_0] : memref<4x192xf32, #tpu.memory_space<vmem>>, vector<2x192xf32>
    %c2 = arith.constant 2 : index
    %c0_1 = arith.constant 0 : index
    %1 = vector.load %arg2[%c2, %c0_1] : memref<4x192xf32, #tpu.memory_space<vmem>>, vector<2x192xf32>
    %c0_2 = arith.constant 0 : index
    %c0_3 = arith.constant 0 : index
    %c0_4 = arith.constant 0 : index
    %c0_5 = arith.constant 0 : index
    %2 = vector.load %arg1[%c0_2, %c0_3, %c0_4, %c0_5] : memref<2x2x9x192xf32, #tpu.memory_space<vmem>>, vector<1x1x9x192xf32>
    %3 = vector.shape_cast %2 : vector<1x1x9x192xf32> to vector<9x192xf32>
    %c0_6 = arith.constant 0 : index
    %c1 = arith.constant 1 : index
    %c0_7 = arith.constant 0 : index
    %c0_8 = arith.constant 0 : index
    %4 = vector.load %arg1[%c0_6, %c1, %c0_7, %c0_8] : memref<2x2x9x192xf32, #tpu.memory_space<vmem>>, vector<1x1x9x192xf32>
    %5 = vector.shape_cast %4 : vector<1x1x9x192xf32> to vector<9x192xf32>
    %6 = arith.negf %3 : vector<9x192xf32>
    %7 = math.exp %6 : vector<9x192xf32>
    %cst = arith.constant 1.000000e+00 : f32
    %8 = vector.broadcast %cst : f32 to vector<9x192xf32>
    %9 = arith.addf %8, %7 : vector<9x192xf32>
    %10 = arith.divf %8, %9 : vector<9x192xf32>
    %11 = vector.extract_strided_slice %10 {offsets = [0, 0], sizes = [4, 192], strides = [1, 1]} : vector<9x192xf32> to vector<4x192xf32>
    %12 = vector.extract_strided_slice %10 {offsets = [4, 0], sizes = [2, 192], strides = [1, 1]} : vector<9x192xf32> to vector<2x192xf32>
    %13 = vector.extract_strided_slice %3 {offsets = [6, 0], sizes = [2, 192], strides = [1, 1]} : vector<9x192xf32> to vector<2x192xf32>
    %14 = vector.extract_strided_slice %10 {offsets = [8, 0], sizes = [1, 192], strides = [1, 1]} : vector<9x192xf32> to vector<1x192xf32>
    %15 = arith.addf %12, %0 : vector<2x192xf32>
    %cst_9 = arith.constant 1.250000e-01 : f32
    %16 = vector.broadcast %cst_9 : f32 to vector<2x192xf32>
    %17 = arith.mulf %15, %16 : vector<2x192xf32>
    %18 = math.exp %13 : vector<2x192xf32>
    %19 = arith.mulf %18, %1 : vector<2x192xf32>
    %cst_10 = arith.constant 5.000000e-01 : f32
    %20 = vector.broadcast %cst_10 : f32 to vector<2x192xf32>
    %21 = arith.mulf %20, %19 : vector<2x192xf32>
    %22 = arith.subf %17, %21 : vector<2x192xf32>
    %cst_11 = arith.constant 5.000000e-01 : f32
    %23 = vector.broadcast %cst_11 : f32 to vector<2x192xf32>
    %24 = arith.mulf %23, %19 : vector<2x192xf32>
    %25 = arith.addf %17, %24 : vector<2x192xf32>
    %26 = vector.extract_strided_slice %22 {offsets = [0, 0], sizes = [1, 192], strides = [1, 1]} : vector<2x192xf32> to vector<1x192xf32>
    %27 = vector.extract_strided_slice %22 {offsets = [1, 0], sizes = [1, 192], strides = [1, 1]} : vector<2x192xf32> to vector<1x192xf32>
    %28 = vector.extract_strided_slice %25 {offsets = [0, 0], sizes = [1, 192], strides = [1, 1]} : vector<2x192xf32> to vector<1x192xf32>
    %29 = vector.extract_strided_slice %25 {offsets = [1, 0], sizes = [1, 192], strides = [1, 1]} : vector<2x192xf32> to vector<1x192xf32>
    %30 = arith.subf %28, %26 : vector<1x192xf32>
    %31 = arith.subf %29, %27 : vector<1x192xf32>
    %32 = arith.mulf %30, %31 : vector<1x192xf32>
    %33 = vector.extract_strided_slice %5 {offsets = [4, 0], sizes = [2, 192], strides = [1, 1]} : vector<9x192xf32> to vector<2x192xf32>
    %34 = vector.extract_strided_slice %5 {offsets = [6, 0], sizes = [2, 192], strides = [1, 1]} : vector<9x192xf32> to vector<2x192xf32>
    %35 = vector.extract_strided_slice %5 {offsets = [8, 0], sizes = [1, 192], strides = [1, 1]} : vector<9x192xf32> to vector<1x192xf32>
    %cst_12 = arith.constant 8.000000e+00 : f32
    %36 = vector.broadcast %cst_12 : f32 to vector<2x192xf32>
    %37 = arith.mulf %33, %36 : vector<2x192xf32>
    %38 = arith.subf %37, %0 : vector<2x192xf32>
    %39 = arith.divf %34, %1 : vector<2x192xf32>
    %cst_13 = arith.constant 0.000000e+00 : f32
    %40 = vector.broadcast %cst_13 : f32 to vector<2x192xf32>
    %41 = arith.cmpf ogt, %39, %40 : vector<2x192xf32>
    %cst_14 = arith.constant 0.000000e+00 : f32
    %42 = vector.broadcast %cst_14 : f32 to vector<2x192xf32>
    %43 = arith.cmpf ogt, %39, %42 : vector<2x192xf32>
    %cst_15 = arith.constant 1.000000e+00 : f32
    %44 = vector.broadcast %cst_15 : f32 to vector<2x192xf32>
    %45 = arith.select %43, %39, %44 : vector<2x192xi1>, vector<2x192xf32>
    %46 = math.log %45 : vector<2x192xf32>
    %cst_16 = arith.constant 0.000000e+00 : f32
    %47 = vector.broadcast %cst_16 : f32 to vector<2x192xf32>
    %48 = arith.select %41, %46, %47 : vector<2x192xi1>, vector<2x192xf32>
    %cst_17 = arith.constant 5.000000e-01 : f32
    %49 = vector.broadcast %cst_17 : f32 to vector<2x192xf32>
    %50 = arith.mulf %49, %34 : vector<2x192xf32>
    %51 = arith.addf %33, %50 : vector<2x192xf32>
    %52 = vector.extract_strided_slice %51 {offsets = [0, 0], sizes = [1, 192], strides = [1, 1]} : vector<2x192xf32> to vector<1x192xf32>
    %53 = vector.extract_strided_slice %51 {offsets = [1, 0], sizes = [1, 192], strides = [1, 1]} : vector<2x192xf32> to vector<1x192xf32>
    %54 = arith.mulf %52, %53 : vector<1x192xf32>
    %cst_18 = arith.constant 2.000000e+00 : f32
    %55 = vector.broadcast %cst_18 : f32 to vector<1x192xf32>
    %56 = arith.subf %55, %54 : vector<1x192xf32>
    %57 = arith.mulf %35, %56 : vector<1x192xf32>
    %58 = arith.subf %38, %12 : vector<2x192xf32>
    %59 = arith.mulf %58, %58 : vector<2x192xf32>
    %cst_19 = arith.constant dense<0.000000e+00> : vector<192xf32>
    %60 = vector.multi_reduction <add>, %59, %cst_19 [0] : vector<2x192xf32> to vector<192xf32>
    %61 = vector.shape_cast %60 : vector<192xf32> to vector<1x192xf32>
    %62 = arith.mulf %61, %57 : vector<1x192xf32>
    %cst_20 = arith.constant 5.000000e+00 : f32
    %63 = vector.broadcast %cst_20 : f32 to vector<1x192xf32>
    %64 = arith.mulf %62, %63 : vector<1x192xf32>
    %65 = arith.subf %48, %13 : vector<2x192xf32>
    %66 = arith.mulf %65, %65 : vector<2x192xf32>
    %cst_21 = arith.constant dense<0.000000e+00> : vector<192xf32>
    %67 = vector.multi_reduction <add>, %66, %cst_21 [0] : vector<2x192xf32> to vector<192xf32>
    %68 = vector.shape_cast %67 : vector<192xf32> to vector<1x192xf32>
    %69 = arith.mulf %68, %57 : vector<1x192xf32>
    %cst_22 = arith.constant 5.000000e+00 : f32
    %70 = vector.broadcast %cst_22 : f32 to vector<1x192xf32>
    %71 = arith.mulf %69, %70 : vector<1x192xf32>
    %cst_23 = arith.constant 1.000000e-07 : f32
    %cst_24 = arith.constant 0.99999988 : f32
    %72 = vector.broadcast %cst_23 : f32 to vector<4x192xf32>
    %73 = arith.maximumf %72, %11 : vector<4x192xf32>
    %74 = vector.broadcast %cst_24 : f32 to vector<4x192xf32>
    %75 = arith.minimumf %74, %73 : vector<4x192xf32>
    %76 = math.log %75 : vector<4x192xf32>
    %cst_25 = arith.constant 0.000000e+00 : f32
    %77 = vector.broadcast %cst_25 : f32 to vector<4x192xf32>
    %78 = arith.subf %77, %76 : vector<4x192xf32>
    %cst_26 = arith.constant dense<0.000000e+00> : vector<192xf32>
    %79 = vector.multi_reduction <add>, %78, %cst_26 [0] : vector<4x192xf32> to vector<192xf32>
    %80 = vector.shape_cast %79 : vector<192xf32> to vector<1x192xf32>
    %81 = arith.mulf %80, %35 : vector<1x192xf32>
    %cst_27 = arith.constant 1.000000e-07 : f32
    %cst_28 = arith.constant 0.99999988 : f32
    %82 = vector.broadcast %cst_27 : f32 to vector<1x192xf32>
    %83 = arith.maximumf %82, %14 : vector<1x192xf32>
    %84 = vector.broadcast %cst_28 : f32 to vector<1x192xf32>
    %85 = arith.minimumf %84, %83 : vector<1x192xf32>
    %86 = math.log %85 : vector<1x192xf32>
    %cst_29 = arith.constant 0.000000e+00 : f32
    %87 = vector.broadcast %cst_29 : f32 to vector<1x192xf32>
    %88 = arith.subf %87, %86 : vector<1x192xf32>
    %89 = arith.mulf %88, %35 : vector<1x192xf32>
    %cst_30 = arith.constant 1.000000e+00 : f32
    %90 = vector.broadcast %cst_30 : f32 to vector<1x192xf32>
    %91 = arith.subf %90, %35 : vector<1x192xf32>
    %92 = arith.mulf %91, %88 : vector<1x192xf32>
    %cst_31 = arith.constant 0xFF800000 : f32
    %93 = vector.broadcast %cst_31 : f32 to vector<16x192xf32>
    %c0_32 = arith.constant 0 : index
    %c0_33 = arith.constant 0 : index
    %c0_34 = arith.constant 0 : index
    %94 = vector.load %arg3[%c0_32, %c0_33, %c0_34] : memref<2x192x4xf32, #tpu.memory_space<vmem>>, vector<1x16x4xf32>
    %95 = vector.shape_cast %94 : vector<1x16x4xf32> to vector<16x4xf32>
    %96 = vector.extract_strided_slice %95 {offsets = [0, 0], sizes = [16, 1], strides = [1, 1]} : vector<16x4xf32> to vector<16x1xf32>
    %97 = vector.extract_strided_slice %95 {offsets = [0, 1], sizes = [16, 1], strides = [1, 1]} : vector<16x4xf32> to vector<16x1xf32>
    %98 = vector.extract_strided_slice %95 {offsets = [0, 2], sizes = [16, 1], strides = [1, 1]} : vector<16x4xf32> to vector<16x1xf32>
    %99 = vector.extract_strided_slice %95 {offsets = [0, 3], sizes = [16, 1], strides = [1, 1]} : vector<16x4xf32> to vector<16x1xf32>
    %100 = vector.broadcast %28 : vector<1x192xf32> to vector<16x192xf32>
    %101 = vector.broadcast %98 : vector<16x1xf32> to vector<16x192xf32>
    %102 = arith.minimumf %100, %101 : vector<16x192xf32>
    %103 = vector.broadcast %26 : vector<1x192xf32> to vector<16x192xf32>
    %104 = vector.broadcast %96 : vector<16x1xf32> to vector<16x192xf32>
    %105 = arith.maximumf %103, %104 : vector<16x192xf32>
    %106 = arith.subf %102, %105 : vector<16x192xf32>
    %cst_35 = arith.constant 0.000000e+00 : f32
    %107 = vector.broadcast %cst_35 : f32 to vector<16x192xf32>
    %108 = arith.maximumf %106, %107 : vector<16x192xf32>
    %109 = vector.broadcast %29 : vector<1x192xf32> to vector<16x192xf32>
    %110 = vector.broadcast %99 : vector<16x1xf32> to vector<16x192xf32>
    %111 = arith.minimumf %109, %110 : vector<16x192xf32>
    %112 = vector.broadcast %27 : vector<1x192xf32> to vector<16x192xf32>
    %113 = vector.broadcast %97 : vector<16x1xf32> to vector<16x192xf32>
    %114 = arith.maximumf %112, %113 : vector<16x192xf32>
    %115 = arith.subf %111, %114 : vector<16x192xf32>
    %cst_36 = arith.constant 0.000000e+00 : f32
    %116 = vector.broadcast %cst_36 : f32 to vector<16x192xf32>
    %117 = arith.maximumf %115, %116 : vector<16x192xf32>
    %118 = arith.mulf %108, %117 : vector<16x192xf32>
    %119 = arith.subf %98, %96 : vector<16x1xf32>
    %120 = arith.subf %99, %97 : vector<16x1xf32>
    %121 = arith.mulf %119, %120 : vector<16x1xf32>
    %122 = vector.broadcast %32 : vector<1x192xf32> to vector<16x192xf32>
    %123 = vector.broadcast %121 : vector<16x1xf32> to vector<16x192xf32>
    %124 = arith.addf %122, %123 : vector<16x192xf32>
    %125 = arith.subf %124, %118 : vector<16x192xf32>
    %126 = tpu.reciprocal %125 : vector<16x192xf32> -> vector<16x192xf32>
    %127 = arith.mulf %118, %126 : vector<16x192xf32>
    %128 = arith.maximumf %93, %127 : vector<16x192xf32>
    %c0_37 = arith.constant 0 : index
    %c16 = arith.constant 16 : index
    %c0_38 = arith.constant 0 : index
    %129 = vector.load %arg3[%c0_37, %c16, %c0_38] : memref<2x192x4xf32, #tpu.memory_space<vmem>>, vector<1x16x4xf32>
    %130 = vector.shape_cast %129 : vector<1x16x4xf32> to vector<16x4xf32>
    %131 = vector.extract_strided_slice %130 {offsets = [0, 0], sizes = [16, 1], strides = [1, 1]} : vector<16x4xf32> to vector<16x1xf32>
    %132 = vector.extract_strided_slice %130 {offsets = [0, 1], sizes = [16, 1], strides = [1, 1]} : vector<16x4xf32> to vector<16x1xf32>
    %133 = vector.extract_strided_slice %130 {offsets = [0, 2], sizes = [16, 1], strides = [1, 1]} : vector<16x4xf32> to vector<16x1xf32>
    %134 = vector.extract_strided_slice %130 {offsets = [0, 3], sizes = [16, 1], strides = [1, 1]} : vector<16x4xf32> to vector<16x1xf32>
    %135 = vector.broadcast %28 : vector<1x192xf32> to vector<16x192xf32>
    %136 = vector.broadcast %133 : vector<16x1xf32> to vector<16x192xf32>
    %137 = arith.minimumf %135, %136 : vector<16x192xf32>
    %138 = vector.broadcast %26 : vector<1x192xf32> to vector<16x192xf32>
    %139 = vector.broadcast %131 : vector<16x1xf32> to vector<16x192xf32>
    %140 = arith.maximumf %138, %139 : vector<16x192xf32>
    %141 = arith.subf %137, %140 : vector<16x192xf32>
    %cst_39 = arith.constant 0.000000e+00 : f32
    %142 = vector.broadcast %cst_39 : f32 to vector<16x192xf32>
    %143 = arith.maximumf %141, %142 : vector<16x192xf32>
    %144 = vector.broadcast %29 : vector<1x192xf32> to vector<16x192xf32>
    %145 = vector.broadcast %134 : vector<16x1xf32> to vector<16x192xf32>
    %146 = arith.minimumf %144, %145 : vector<16x192xf32>
    %147 = vector.broadcast %27 : vector<1x192xf32> to vector<16x192xf32>
    %148 = vector.broadcast %132 : vector<16x1xf32> to vector<16x192xf32>
    %149 = arith.maximumf %147, %148 : vector<16x192xf32>
    %150 = arith.subf %146, %149 : vector<16x192xf32>
    %cst_40 = arith.constant 0.000000e+00 : f32
    %151 = vector.broadcast %cst_40 : f32 to vector<16x192xf32>
    %152 = arith.maximumf %150, %151 : vector<16x192xf32>
    %153 = arith.mulf %143, %152 : vector<16x192xf32>
    %154 = arith.subf %133, %131 : vector<16x1xf32>
    %155 = arith.subf %134, %132 : vector<16x1xf32>
    %156 = arith.mulf %154, %155 : vector<16x1xf32>
    %157 = vector.broadcast %32 : vector<1x192xf32> to vector<16x192xf32>
    %158 = vector.broadcast %156 : vector<16x1xf32> to vector<16x192xf32>
    %159 = arith.addf %157, %158 : vector<16x192xf32>
    %160 = arith.subf %159, %153 : vector<16x192xf32>
    %161 = tpu.reciprocal %160 : vector<16x192xf32> -> vector<16x192xf32>
    %162 = arith.mulf %153, %161 : vector<16x192xf32>
    %163 = arith.maximumf %128, %162 : vector<16x192xf32>
    %c0_41 = arith.constant 0 : index
    %c32 = arith.constant 32 : index
    %c0_42 = arith.constant 0 : index
    %164 = vector.load %arg3[%c0_41, %c32, %c0_42] : memref<2x192x4xf32, #tpu.memory_space<vmem>>, vector<1x16x4xf32>
    %165 = vector.shape_cast %164 : vector<1x16x4xf32> to vector<16x4xf32>
    %166 = vector.extract_strided_slice %165 {offsets = [0, 0], sizes = [16, 1], strides = [1, 1]} : vector<16x4xf32> to vector<16x1xf32>
    %167 = vector.extract_strided_slice %165 {offsets = [0, 1], sizes = [16, 1], strides = [1, 1]} : vector<16x4xf32> to vector<16x1xf32>
    %168 = vector.extract_strided_slice %165 {offsets = [0, 2], sizes = [16, 1], strides = [1, 1]} : vector<16x4xf32> to vector<16x1xf32>
    %169 = vector.extract_strided_slice %165 {offsets = [0, 3], sizes = [16, 1], strides = [1, 1]} : vector<16x4xf32> to vector<16x1xf32>
    %170 = vector.broadcast %28 : vector<1x192xf32> to vector<16x192xf32>
    %171 = vector.broadcast %168 : vector<16x1xf32> to vector<16x192xf32>
    %172 = arith.minimumf %170, %171 : vector<16x192xf32>
    %173 = vector.broadcast %26 : vector<1x192xf32> to vector<16x192xf32>
    %174 = vector.broadcast %166 : vector<16x1xf32> to vector<16x192xf32>
    %175 = arith.maximumf %173, %174 : vector<16x192xf32>
    %176 = arith.subf %172, %175 : vector<16x192xf32>
    %cst_43 = arith.constant 0.000000e+00 : f32
    %177 = vector.broadcast %cst_43 : f32 to vector<16x192xf32>
    %178 = arith.maximumf %176, %177 : vector<16x192xf32>
    %179 = vector.broadcast %29 : vector<1x192xf32> to vector<16x192xf32>
    %180 = vector.broadcast %169 : vector<16x1xf32> to vector<16x192xf32>
    %181 = arith.minimumf %179, %180 : vector<16x192xf32>
    %182 = vector.broadcast %27 : vector<1x192xf32> to vector<16x192xf32>
    %183 = vector.broadcast %167 : vector<16x1xf32> to vector<16x192xf32>
    %184 = arith.maximumf %182, %183 : vector<16x192xf32>
    %185 = arith.subf %181, %184 : vector<16x192xf32>
    %cst_44 = arith.constant 0.000000e+00 : f32
    %186 = vector.broadcast %cst_44 : f32 to vector<16x192xf32>
    %187 = arith.maximumf %185, %186 : vector<16x192xf32>
    %188 = arith.mulf %178, %187 : vector<16x192xf32>
    %189 = arith.subf %168, %166 : vector<16x1xf32>
    %190 = arith.subf %169, %167 : vector<16x1xf32>
    %191 = arith.mulf %189, %190 : vector<16x1xf32>
    %192 = vector.broadcast %32 : vector<1x192xf32> to vector<16x192xf32>
    %193 = vector.broadcast %191 : vector<16x1xf32> to vector<16x192xf32>
    %194 = arith.addf %192, %193 : vector<16x192xf32>
    %195 = arith.subf %194, %188 : vector<16x192xf32>
    %196 = tpu.reciprocal %195 : vector<16x192xf32> -> vector<16x192xf32>
    %197 = arith.mulf %188, %196 : vector<16x192xf32>
    %198 = arith.maximumf %163, %197 : vector<16x192xf32>
    %c0_45 = arith.constant 0 : index
    %c48 = arith.constant 48 : index
    %c0_46 = arith.constant 0 : index
    %199 = vector.load %arg3[%c0_45, %c48, %c0_46] : memref<2x192x4xf32, #tpu.memory_space<vmem>>, vector<1x16x4xf32>
    %200 = vector.shape_cast %199 : vector<1x16x4xf32> to vector<16x4xf32>
    %201 = vector.extract_strided_slice %200 {offsets = [0, 0], sizes = [16, 1], strides = [1, 1]} : vector<16x4xf32> to vector<16x1xf32>
    %202 = vector.extract_strided_slice %200 {offsets = [0, 1], sizes = [16, 1], strides = [1, 1]} : vector<16x4xf32> to vector<16x1xf32>
    %203 = vector.extract_strided_slice %200 {offsets = [0, 2], sizes = [16, 1], strides = [1, 1]} : vector<16x4xf32> to vector<16x1xf32>
    %204 = vector.extract_strided_slice %200 {offsets = [0, 3], sizes = [16, 1], strides = [1, 1]} : vector<16x4xf32> to vector<16x1xf32>
    %205 = vector.broadcast %28 : vector<1x192xf32> to vector<16x192xf32>
    %206 = vector.broadcast %203 : vector<16x1xf32> to vector<16x192xf32>
    %207 = arith.minimumf %205, %206 : vector<16x192xf32>
    %208 = vector.broadcast %26 : vector<1x192xf32> to vector<16x192xf32>
    %209 = vector.broadcast %201 : vector<16x1xf32> to vector<16x192xf32>
    %210 = arith.maximumf %208, %209 : vector<16x192xf32>
    %211 = arith.subf %207, %210 : vector<16x192xf32>
    %cst_47 = arith.constant 0.000000e+00 : f32
    %212 = vector.broadcast %cst_47 : f32 to vector<16x192xf32>
    %213 = arith.maximumf %211, %212 : vector<16x192xf32>
    %214 = vector.broadcast %29 : vector<1x192xf32> to vector<16x192xf32>
    %215 = vector.broadcast %204 : vector<16x1xf32> to vector<16x192xf32>
    %216 = arith.minimumf %214, %215 : vector<16x192xf32>
    %217 = vector.broadcast %27 : vector<1x192xf32> to vector<16x192xf32>
    %218 = vector.broadcast %202 : vector<16x1xf32> to vector<16x192xf32>
    %219 = arith.maximumf %217, %218 : vector<16x192xf32>
    %220 = arith.subf %216, %219 : vector<16x192xf32>
    %cst_48 = arith.constant 0.000000e+00 : f32
    %221 = vector.broadcast %cst_48 : f32 to vector<16x192xf32>
    %222 = arith.maximumf %220, %221 : vector<16x192xf32>
    %223 = arith.mulf %213, %222 : vector<16x192xf32>
    %224 = arith.subf %203, %201 : vector<16x1xf32>
    %225 = arith.subf %204, %202 : vector<16x1xf32>
    %226 = arith.mulf %224, %225 : vector<16x1xf32>
    %227 = vector.broadcast %32 : vector<1x192xf32> to vector<16x192xf32>
    %228 = vector.broadcast %226 : vector<16x1xf32> to vector<16x192xf32>
    %229 = arith.addf %227, %228 : vector<16x192xf32>
    %230 = arith.subf %229, %223 : vector<16x192xf32>
    %231 = tpu.reciprocal %230 : vector<16x192xf32> -> vector<16x192xf32>
    %232 = arith.mulf %223, %231 : vector<16x192xf32>
    %233 = arith.maximumf %198, %232 : vector<16x192xf32>
    %c0_49 = arith.constant 0 : index
    %c64 = arith.constant 64 : index
    %c0_50 = arith.constant 0 : index
    %234 = vector.load %arg3[%c0_49, %c64, %c0_50] : memref<2x192x4xf32, #tpu.memory_space<vmem>>, vector<1x16x4xf32>
    %235 = vector.shape_cast %234 : vector<1x16x4xf32> to vector<16x4xf32>
    %236 = vector.extract_strided_slice %235 {offsets = [0, 0], sizes = [16, 1], strides = [1, 1]} : vector<16x4xf32> to vector<16x1xf32>
    %237 = vector.extract_strided_slice %235 {offsets = [0, 1], sizes = [16, 1], strides = [1, 1]} : vector<16x4xf32> to vector<16x1xf32>
    %238 = vector.extract_strided_slice %235 {offsets = [0, 2], sizes = [16, 1], strides = [1, 1]} : vector<16x4xf32> to vector<16x1xf32>
    %239 = vector.extract_strided_slice %235 {offsets = [0, 3], sizes = [16, 1], strides = [1, 1]} : vector<16x4xf32> to vector<16x1xf32>
    %240 = vector.broadcast %28 : vector<1x192xf32> to vector<16x192xf32>
    %241 = vector.broadcast %238 : vector<16x1xf32> to vector<16x192xf32>
    %242 = arith.minimumf %240, %241 : vector<16x192xf32>
    %243 = vector.broadcast %26 : vector<1x192xf32> to vector<16x192xf32>
    %244 = vector.broadcast %236 : vector<16x1xf32> to vector<16x192xf32>
    %245 = arith.maximumf %243, %244 : vector<16x192xf32>
    %246 = arith.subf %242, %245 : vector<16x192xf32>
    %cst_51 = arith.constant 0.000000e+00 : f32
    %247 = vector.broadcast %cst_51 : f32 to vector<16x192xf32>
    %248 = arith.maximumf %246, %247 : vector<16x192xf32>
    %249 = vector.broadcast %29 : vector<1x192xf32> to vector<16x192xf32>
    %250 = vector.broadcast %239 : vector<16x1xf32> to vector<16x192xf32>
    %251 = arith.minimumf %249, %250 : vector<16x192xf32>
    %252 = vector.broadcast %27 : vector<1x192xf32> to vector<16x192xf32>
    %253 = vector.broadcast %237 : vector<16x1xf32> to vector<16x192xf32>
    %254 = arith.maximumf %252, %253 : vector<16x192xf32>
    %255 = arith.subf %251, %254 : vector<16x192xf32>
    %cst_52 = arith.constant 0.000000e+00 : f32
    %256 = vector.broadcast %cst_52 : f32 to vector<16x192xf32>
    %257 = arith.maximumf %255, %256 : vector<16x192xf32>
    %258 = arith.mulf %248, %257 : vector<16x192xf32>
    %259 = arith.subf %238, %236 : vector<16x1xf32>
    %260 = arith.subf %239, %237 : vector<16x1xf32>
    %261 = arith.mulf %259, %260 : vector<16x1xf32>
    %262 = vector.broadcast %32 : vector<1x192xf32> to vector<16x192xf32>
    %263 = vector.broadcast %261 : vector<16x1xf32> to vector<16x192xf32>
    %264 = arith.addf %262, %263 : vector<16x192xf32>
    %265 = arith.subf %264, %258 : vector<16x192xf32>
    %266 = tpu.reciprocal %265 : vector<16x192xf32> -> vector<16x192xf32>
    %267 = arith.mulf %258, %266 : vector<16x192xf32>
    %268 = arith.maximumf %233, %267 : vector<16x192xf32>
    %c0_53 = arith.constant 0 : index
    %c80 = arith.constant 80 : index
    %c0_54 = arith.constant 0 : index
    %269 = vector.load %arg3[%c0_53, %c80, %c0_54] : memref<2x192x4xf32, #tpu.memory_space<vmem>>, vector<1x16x4xf32>
    %270 = vector.shape_cast %269 : vector<1x16x4xf32> to vector<16x4xf32>
    %271 = vector.extract_strided_slice %270 {offsets = [0, 0], sizes = [16, 1], strides = [1, 1]} : vector<16x4xf32> to vector<16x1xf32>
    %272 = vector.extract_strided_slice %270 {offsets = [0, 1], sizes = [16, 1], strides = [1, 1]} : vector<16x4xf32> to vector<16x1xf32>
    %273 = vector.extract_strided_slice %270 {offsets = [0, 2], sizes = [16, 1], strides = [1, 1]} : vector<16x4xf32> to vector<16x1xf32>
    %274 = vector.extract_strided_slice %270 {offsets = [0, 3], sizes = [16, 1], strides = [1, 1]} : vector<16x4xf32> to vector<16x1xf32>
    %275 = vector.broadcast %28 : vector<1x192xf32> to vector<16x192xf32>
    %276 = vector.broadcast %273 : vector<16x1xf32> to vector<16x192xf32>
    %277 = arith.minimumf %275, %276 : vector<16x192xf32>
    %278 = vector.broadcast %26 : vector<1x192xf32> to vector<16x192xf32>
    %279 = vector.broadcast %271 : vector<16x1xf32> to vector<16x192xf32>
    %280 = arith.maximumf %278, %279 : vector<16x192xf32>
    %281 = arith.subf %277, %280 : vector<16x192xf32>
    %cst_55 = arith.constant 0.000000e+00 : f32
    %282 = vector.broadcast %cst_55 : f32 to vector<16x192xf32>
    %283 = arith.maximumf %281, %282 : vector<16x192xf32>
    %284 = vector.broadcast %29 : vector<1x192xf32> to vector<16x192xf32>
    %285 = vector.broadcast %274 : vector<16x1xf32> to vector<16x192xf32>
    %286 = arith.minimumf %284, %285 : vector<16x192xf32>
    %287 = vector.broadcast %27 : vector<1x192xf32> to vector<16x192xf32>
    %288 = vector.broadcast %272 : vector<16x1xf32> to vector<16x192xf32>
    %289 = arith.maximumf %287, %288 : vector<16x192xf32>
    %290 = arith.subf %286, %289 : vector<16x192xf32>
    %cst_56 = arith.constant 0.000000e+00 : f32
    %291 = vector.broadcast %cst_56 : f32 to vector<16x192xf32>
    %292 = arith.maximumf %290, %291 : vector<16x192xf32>
    %293 = arith.mulf %283, %292 : vector<16x192xf32>
    %294 = arith.subf %273, %271 : vector<16x1xf32>
    %295 = arith.subf %274, %272 : vector<16x1xf32>
    %296 = arith.mulf %294, %295 : vector<16x1xf32>
    %297 = vector.broadcast %32 : vector<1x192xf32> to vector<16x192xf32>
    %298 = vector.broadcast %296 : vector<16x1xf32> to vector<16x192xf32>
    %299 = arith.addf %297, %298 : vector<16x192xf32>
    %300 = arith.subf %299, %293 : vector<16x192xf32>
    %301 = tpu.reciprocal %300 : vector<16x192xf32> -> vector<16x192xf32>
    %302 = arith.mulf %293, %301 : vector<16x192xf32>
    %303 = arith.maximumf %268, %302 : vector<16x192xf32>
    %c0_57 = arith.constant 0 : index
    %c96 = arith.constant 96 : index
    %c0_58 = arith.constant 0 : index
    %304 = vector.load %arg3[%c0_57, %c96, %c0_58] : memref<2x192x4xf32, #tpu.memory_space<vmem>>, vector<1x16x4xf32>
    %305 = vector.shape_cast %304 : vector<1x16x4xf32> to vector<16x4xf32>
    %306 = vector.extract_strided_slice %305 {offsets = [0, 0], sizes = [16, 1], strides = [1, 1]} : vector<16x4xf32> to vector<16x1xf32>
    %307 = vector.extract_strided_slice %305 {offsets = [0, 1], sizes = [16, 1], strides = [1, 1]} : vector<16x4xf32> to vector<16x1xf32>
    %308 = vector.extract_strided_slice %305 {offsets = [0, 2], sizes = [16, 1], strides = [1, 1]} : vector<16x4xf32> to vector<16x1xf32>
    %309 = vector.extract_strided_slice %305 {offsets = [0, 3], sizes = [16, 1], strides = [1, 1]} : vector<16x4xf32> to vector<16x1xf32>
    %310 = vector.broadcast %28 : vector<1x192xf32> to vector<16x192xf32>
    %311 = vector.broadcast %308 : vector<16x1xf32> to vector<16x192xf32>
    %312 = arith.minimumf %310, %311 : vector<16x192xf32>
    %313 = vector.broadcast %26 : vector<1x192xf32> to vector<16x192xf32>
    %314 = vector.broadcast %306 : vector<16x1xf32> to vector<16x192xf32>
    %315 = arith.maximumf %313, %314 : vector<16x192xf32>
    %316 = arith.subf %312, %315 : vector<16x192xf32>
    %cst_59 = arith.constant 0.000000e+00 : f32
    %317 = vector.broadcast %cst_59 : f32 to vector<16x192xf32>
    %318 = arith.maximumf %316, %317 : vector<16x192xf32>
    %319 = vector.broadcast %29 : vector<1x192xf32> to vector<16x192xf32>
    %320 = vector.broadcast %309 : vector<16x1xf32> to vector<16x192xf32>
    %321 = arith.minimumf %319, %320 : vector<16x192xf32>
    %322 = vector.broadcast %27 : vector<1x192xf32> to vector<16x192xf32>
    %323 = vector.broadcast %307 : vector<16x1xf32> to vector<16x192xf32>
    %324 = arith.maximumf %322, %323 : vector<16x192xf32>
    %325 = arith.subf %321, %324 : vector<16x192xf32>
    %cst_60 = arith.constant 0.000000e+00 : f32
    %326 = vector.broadcast %cst_60 : f32 to vector<16x192xf32>
    %327 = arith.maximumf %325, %326 : vector<16x192xf32>
    %328 = arith.mulf %318, %327 : vector<16x192xf32>
    %329 = arith.subf %308, %306 : vector<16x1xf32>
    %330 = arith.subf %309, %307 : vector<16x1xf32>
    %331 = arith.mulf %329, %330 : vector<16x1xf32>
    %332 = vector.broadcast %32 : vector<1x192xf32> to vector<16x192xf32>
    %333 = vector.broadcast %331 : vector<16x1xf32> to vector<16x192xf32>
    %334 = arith.addf %332, %333 : vector<16x192xf32>
    %335 = arith.subf %334, %328 : vector<16x192xf32>
    %336 = tpu.reciprocal %335 : vector<16x192xf32> -> vector<16x192xf32>
    %337 = arith.mulf %328, %336 : vector<16x192xf32>
    %338 = arith.maximumf %303, %337 : vector<16x192xf32>
    %c0_61 = arith.constant 0 : index
    %c112 = arith.constant 112 : index
    %c0_62 = arith.constant 0 : index
    %339 = vector.load %arg3[%c0_61, %c112, %c0_62] : memref<2x192x4xf32, #tpu.memory_space<vmem>>, vector<1x16x4xf32>
    %340 = vector.shape_cast %339 : vector<1x16x4xf32> to vector<16x4xf32>
    %341 = vector.extract_strided_slice %340 {offsets = [0, 0], sizes = [16, 1], strides = [1, 1]} : vector<16x4xf32> to vector<16x1xf32>
    %342 = vector.extract_strided_slice %340 {offsets = [0, 1], sizes = [16, 1], strides = [1, 1]} : vector<16x4xf32> to vector<16x1xf32>
    %343 = vector.extract_strided_slice %340 {offsets = [0, 2], sizes = [16, 1], strides = [1, 1]} : vector<16x4xf32> to vector<16x1xf32>
    %344 = vector.extract_strided_slice %340 {offsets = [0, 3], sizes = [16, 1], strides = [1, 1]} : vector<16x4xf32> to vector<16x1xf32>
    %345 = vector.broadcast %28 : vector<1x192xf32> to vector<16x192xf32>
    %346 = vector.broadcast %343 : vector<16x1xf32> to vector<16x192xf32>
    %347 = arith.minimumf %345, %346 : vector<16x192xf32>
    %348 = vector.broadcast %26 : vector<1x192xf32> to vector<16x192xf32>
    %349 = vector.broadcast %341 : vector<16x1xf32> to vector<16x192xf32>
    %350 = arith.maximumf %348, %349 : vector<16x192xf32>
    %351 = arith.subf %347, %350 : vector<16x192xf32>
    %cst_63 = arith.constant 0.000000e+00 : f32
    %352 = vector.broadcast %cst_63 : f32 to vector<16x192xf32>
    %353 = arith.maximumf %351, %352 : vector<16x192xf32>
    %354 = vector.broadcast %29 : vector<1x192xf32> to vector<16x192xf32>
    %355 = vector.broadcast %344 : vector<16x1xf32> to vector<16x192xf32>
    %356 = arith.minimumf %354, %355 : vector<16x192xf32>
    %357 = vector.broadcast %27 : vector<1x192xf32> to vector<16x192xf32>
    %358 = vector.broadcast %342 : vector<16x1xf32> to vector<16x192xf32>
    %359 = arith.maximumf %357, %358 : vector<16x192xf32>
    %360 = arith.subf %356, %359 : vector<16x192xf32>
    %cst_64 = arith.constant 0.000000e+00 : f32
    %361 = vector.broadcast %cst_64 : f32 to vector<16x192xf32>
    %362 = arith.maximumf %360, %361 : vector<16x192xf32>
    %363 = arith.mulf %353, %362 : vector<16x192xf32>
    %364 = arith.subf %343, %341 : vector<16x1xf32>
    %365 = arith.subf %344, %342 : vector<16x1xf32>
    %366 = arith.mulf %364, %365 : vector<16x1xf32>
    %367 = vector.broadcast %32 : vector<1x192xf32> to vector<16x192xf32>
    %368 = vector.broadcast %366 : vector<16x1xf32> to vector<16x192xf32>
    %369 = arith.addf %367, %368 : vector<16x192xf32>
    %370 = arith.subf %369, %363 : vector<16x192xf32>
    %371 = tpu.reciprocal %370 : vector<16x192xf32> -> vector<16x192xf32>
    %372 = arith.mulf %363, %371 : vector<16x192xf32>
    %373 = arith.maximumf %338, %372 : vector<16x192xf32>
    %c0_65 = arith.constant 0 : index
    %c128 = arith.constant 128 : index
    %c0_66 = arith.constant 0 : index
    %374 = vector.load %arg3[%c0_65, %c128, %c0_66] : memref<2x192x4xf32, #tpu.memory_space<vmem>>, vector<1x16x4xf32>
    %375 = vector.shape_cast %374 : vector<1x16x4xf32> to vector<16x4xf32>
    %376 = vector.extract_strided_slice %375 {offsets = [0, 0], sizes = [16, 1], strides = [1, 1]} : vector<16x4xf32> to vector<16x1xf32>
    %377 = vector.extract_strided_slice %375 {offsets = [0, 1], sizes = [16, 1], strides = [1, 1]} : vector<16x4xf32> to vector<16x1xf32>
    %378 = vector.extract_strided_slice %375 {offsets = [0, 2], sizes = [16, 1], strides = [1, 1]} : vector<16x4xf32> to vector<16x1xf32>
    %379 = vector.extract_strided_slice %375 {offsets = [0, 3], sizes = [16, 1], strides = [1, 1]} : vector<16x4xf32> to vector<16x1xf32>
    %380 = vector.broadcast %28 : vector<1x192xf32> to vector<16x192xf32>
    %381 = vector.broadcast %378 : vector<16x1xf32> to vector<16x192xf32>
    %382 = arith.minimumf %380, %381 : vector<16x192xf32>
    %383 = vector.broadcast %26 : vector<1x192xf32> to vector<16x192xf32>
    %384 = vector.broadcast %376 : vector<16x1xf32> to vector<16x192xf32>
    %385 = arith.maximumf %383, %384 : vector<16x192xf32>
    %386 = arith.subf %382, %385 : vector<16x192xf32>
    %cst_67 = arith.constant 0.000000e+00 : f32
    %387 = vector.broadcast %cst_67 : f32 to vector<16x192xf32>
    %388 = arith.maximumf %386, %387 : vector<16x192xf32>
    %389 = vector.broadcast %29 : vector<1x192xf32> to vector<16x192xf32>
    %390 = vector.broadcast %379 : vector<16x1xf32> to vector<16x192xf32>
    %391 = arith.minimumf %389, %390 : vector<16x192xf32>
    %392 = vector.broadcast %27 : vector<1x192xf32> to vector<16x192xf32>
    %393 = vector.broadcast %377 : vector<16x1xf32> to vector<16x192xf32>
    %394 = arith.maximumf %392, %393 : vector<16x192xf32>
    %395 = arith.subf %391, %394 : vector<16x192xf32>
    %cst_68 = arith.constant 0.000000e+00 : f32
    %396 = vector.broadcast %cst_68 : f32 to vector<16x192xf32>
    %397 = arith.maximumf %395, %396 : vector<16x192xf32>
    %398 = arith.mulf %388, %397 : vector<16x192xf32>
    %399 = arith.subf %378, %376 : vector<16x1xf32>
    %400 = arith.subf %379, %377 : vector<16x1xf32>
    %401 = arith.mulf %399, %400 : vector<16x1xf32>
    %402 = vector.broadcast %32 : vector<1x192xf32> to vector<16x192xf32>
    %403 = vector.broadcast %401 : vector<16x1xf32> to vector<16x192xf32>
    %404 = arith.addf %402, %403 : vector<16x192xf32>
    %405 = arith.subf %404, %398 : vector<16x192xf32>
    %406 = tpu.reciprocal %405 : vector<16x192xf32> -> vector<16x192xf32>
    %407 = arith.mulf %398, %406 : vector<16x192xf32>
    %408 = arith.maximumf %373, %407 : vector<16x192xf32>
    %c0_69 = arith.constant 0 : index
    %c144 = arith.constant 144 : index
    %c0_70 = arith.constant 0 : index
    %409 = vector.load %arg3[%c0_69, %c144, %c0_70] : memref<2x192x4xf32, #tpu.memory_space<vmem>>, vector<1x16x4xf32>
    %410 = vector.shape_cast %409 : vector<1x16x4xf32> to vector<16x4xf32>
    %411 = vector.extract_strided_slice %410 {offsets = [0, 0], sizes = [16, 1], strides = [1, 1]} : vector<16x4xf32> to vector<16x1xf32>
    %412 = vector.extract_strided_slice %410 {offsets = [0, 1], sizes = [16, 1], strides = [1, 1]} : vector<16x4xf32> to vector<16x1xf32>
    %413 = vector.extract_strided_slice %410 {offsets = [0, 2], sizes = [16, 1], strides = [1, 1]} : vector<16x4xf32> to vector<16x1xf32>
    %414 = vector.extract_strided_slice %410 {offsets = [0, 3], sizes = [16, 1], strides = [1, 1]} : vector<16x4xf32> to vector<16x1xf32>
    %415 = vector.broadcast %28 : vector<1x192xf32> to vector<16x192xf32>
    %416 = vector.broadcast %413 : vector<16x1xf32> to vector<16x192xf32>
    %417 = arith.minimumf %415, %416 : vector<16x192xf32>
    %418 = vector.broadcast %26 : vector<1x192xf32> to vector<16x192xf32>
    %419 = vector.broadcast %411 : vector<16x1xf32> to vector<16x192xf32>
    %420 = arith.maximumf %418, %419 : vector<16x192xf32>
    %421 = arith.subf %417, %420 : vector<16x192xf32>
    %cst_71 = arith.constant 0.000000e+00 : f32
    %422 = vector.broadcast %cst_71 : f32 to vector<16x192xf32>
    %423 = arith.maximumf %421, %422 : vector<16x192xf32>
    %424 = vector.broadcast %29 : vector<1x192xf32> to vector<16x192xf32>
    %425 = vector.broadcast %414 : vector<16x1xf32> to vector<16x192xf32>
    %426 = arith.minimumf %424, %425 : vector<16x192xf32>
    %427 = vector.broadcast %27 : vector<1x192xf32> to vector<16x192xf32>
    %428 = vector.broadcast %412 : vector<16x1xf32> to vector<16x192xf32>
    %429 = arith.maximumf %427, %428 : vector<16x192xf32>
    %430 = arith.subf %426, %429 : vector<16x192xf32>
    %cst_72 = arith.constant 0.000000e+00 : f32
    %431 = vector.broadcast %cst_72 : f32 to vector<16x192xf32>
    %432 = arith.maximumf %430, %431 : vector<16x192xf32>
    %433 = arith.mulf %423, %432 : vector<16x192xf32>
    %434 = arith.subf %413, %411 : vector<16x1xf32>
    %435 = arith.subf %414, %412 : vector<16x1xf32>
    %436 = arith.mulf %434, %435 : vector<16x1xf32>
    %437 = vector.broadcast %32 : vector<1x192xf32> to vector<16x192xf32>
    %438 = vector.broadcast %436 : vector<16x1xf32> to vector<16x192xf32>
    %439 = arith.addf %437, %438 : vector<16x192xf32>
    %440 = arith.subf %439, %433 : vector<16x192xf32>
    %441 = tpu.reciprocal %440 : vector<16x192xf32> -> vector<16x192xf32>
    %442 = arith.mulf %433, %441 : vector<16x192xf32>
    %443 = arith.maximumf %408, %442 : vector<16x192xf32>
    %c0_73 = arith.constant 0 : index
    %c160 = arith.constant 160 : index
    %c0_74 = arith.constant 0 : index
    %444 = vector.load %arg3[%c0_73, %c160, %c0_74] : memref<2x192x4xf32, #tpu.memory_space<vmem>>, vector<1x16x4xf32>
    %445 = vector.shape_cast %444 : vector<1x16x4xf32> to vector<16x4xf32>
    %446 = vector.extract_strided_slice %445 {offsets = [0, 0], sizes = [16, 1], strides = [1, 1]} : vector<16x4xf32> to vector<16x1xf32>
    %447 = vector.extract_strided_slice %445 {offsets = [0, 1], sizes = [16, 1], strides = [1, 1]} : vector<16x4xf32> to vector<16x1xf32>
    %448 = vector.extract_strided_slice %445 {offsets = [0, 2], sizes = [16, 1], strides = [1, 1]} : vector<16x4xf32> to vector<16x1xf32>
    %449 = vector.extract_strided_slice %445 {offsets = [0, 3], sizes = [16, 1], strides = [1, 1]} : vector<16x4xf32> to vector<16x1xf32>
    %450 = vector.broadcast %28 : vector<1x192xf32> to vector<16x192xf32>
    %451 = vector.broadcast %448 : vector<16x1xf32> to vector<16x192xf32>
    %452 = arith.minimumf %450, %451 : vector<16x192xf32>
    %453 = vector.broadcast %26 : vector<1x192xf32> to vector<16x192xf32>
    %454 = vector.broadcast %446 : vector<16x1xf32> to vector<16x192xf32>
    %455 = arith.maximumf %453, %454 : vector<16x192xf32>
    %456 = arith.subf %452, %455 : vector<16x192xf32>
    %cst_75 = arith.constant 0.000000e+00 : f32
    %457 = vector.broadcast %cst_75 : f32 to vector<16x192xf32>
    %458 = arith.maximumf %456, %457 : vector<16x192xf32>
    %459 = vector.broadcast %29 : vector<1x192xf32> to vector<16x192xf32>
    %460 = vector.broadcast %449 : vector<16x1xf32> to vector<16x192xf32>
    %461 = arith.minimumf %459, %460 : vector<16x192xf32>
    %462 = vector.broadcast %27 : vector<1x192xf32> to vector<16x192xf32>
    %463 = vector.broadcast %447 : vector<16x1xf32> to vector<16x192xf32>
    %464 = arith.maximumf %462, %463 : vector<16x192xf32>
    %465 = arith.subf %461, %464 : vector<16x192xf32>
    %cst_76 = arith.constant 0.000000e+00 : f32
    %466 = vector.broadcast %cst_76 : f32 to vector<16x192xf32>
    %467 = arith.maximumf %465, %466 : vector<16x192xf32>
    %468 = arith.mulf %458, %467 : vector<16x192xf32>
    %469 = arith.subf %448, %446 : vector<16x1xf32>
    %470 = arith.subf %449, %447 : vector<16x1xf32>
    %471 = arith.mulf %469, %470 : vector<16x1xf32>
    %472 = vector.broadcast %32 : vector<1x192xf32> to vector<16x192xf32>
    %473 = vector.broadcast %471 : vector<16x1xf32> to vector<16x192xf32>
    %474 = arith.addf %472, %473 : vector<16x192xf32>
    %475 = arith.subf %474, %468 : vector<16x192xf32>
    %476 = tpu.reciprocal %475 : vector<16x192xf32> -> vector<16x192xf32>
    %477 = arith.mulf %468, %476 : vector<16x192xf32>
    %478 = arith.maximumf %443, %477 : vector<16x192xf32>
    %c0_77 = arith.constant 0 : index
    %c176 = arith.constant 176 : index
    %c0_78 = arith.constant 0 : index
    %479 = vector.load %arg3[%c0_77, %c176, %c0_78] : memref<2x192x4xf32, #tpu.memory_space<vmem>>, vector<1x16x4xf32>
    %480 = vector.shape_cast %479 : vector<1x16x4xf32> to vector<16x4xf32>
    %481 = vector.extract_strided_slice %480 {offsets = [0, 0], sizes = [16, 1], strides = [1, 1]} : vector<16x4xf32> to vector<16x1xf32>
    %482 = vector.extract_strided_slice %480 {offsets = [0, 1], sizes = [16, 1], strides = [1, 1]} : vector<16x4xf32> to vector<16x1xf32>
    %483 = vector.extract_strided_slice %480 {offsets = [0, 2], sizes = [16, 1], strides = [1, 1]} : vector<16x4xf32> to vector<16x1xf32>
    %484 = vector.extract_strided_slice %480 {offsets = [0, 3], sizes = [16, 1], strides = [1, 1]} : vector<16x4xf32> to vector<16x1xf32>
    %485 = vector.broadcast %28 : vector<1x192xf32> to vector<16x192xf32>
    %486 = vector.broadcast %483 : vector<16x1xf32> to vector<16x192xf32>
    %487 = arith.minimumf %485, %486 : vector<16x192xf32>
    %488 = vector.broadcast %26 : vector<1x192xf32> to vector<16x192xf32>
    %489 = vector.broadcast %481 : vector<16x1xf32> to vector<16x192xf32>
    %490 = arith.maximumf %488, %489 : vector<16x192xf32>
    %491 = arith.subf %487, %490 : vector<16x192xf32>
    %cst_79 = arith.constant 0.000000e+00 : f32
    %492 = vector.broadcast %cst_79 : f32 to vector<16x192xf32>
    %493 = arith.maximumf %491, %492 : vector<16x192xf32>
    %494 = vector.broadcast %29 : vector<1x192xf32> to vector<16x192xf32>
    %495 = vector.broadcast %484 : vector<16x1xf32> to vector<16x192xf32>
    %496 = arith.minimumf %494, %495 : vector<16x192xf32>
    %497 = vector.broadcast %27 : vector<1x192xf32> to vector<16x192xf32>
    %498 = vector.broadcast %482 : vector<16x1xf32> to vector<16x192xf32>
    %499 = arith.maximumf %497, %498 : vector<16x192xf32>
    %500 = arith.subf %496, %499 : vector<16x192xf32>
    %cst_80 = arith.constant 0.000000e+00 : f32
    %501 = vector.broadcast %cst_80 : f32 to vector<16x192xf32>
    %502 = arith.maximumf %500, %501 : vector<16x192xf32>
    %503 = arith.mulf %493, %502 : vector<16x192xf32>
    %504 = arith.subf %483, %481 : vector<16x1xf32>
    %505 = arith.subf %484, %482 : vector<16x1xf32>
    %506 = arith.mulf %504, %505 : vector<16x1xf32>
    %507 = vector.broadcast %32 : vector<1x192xf32> to vector<16x192xf32>
    %508 = vector.broadcast %506 : vector<16x1xf32> to vector<16x192xf32>
    %509 = arith.addf %507, %508 : vector<16x192xf32>
    %510 = arith.subf %509, %503 : vector<16x192xf32>
    %511 = tpu.reciprocal %510 : vector<16x192xf32> -> vector<16x192xf32>
    %512 = arith.mulf %503, %511 : vector<16x192xf32>
    %513 = arith.maximumf %478, %512 : vector<16x192xf32>
    %cst_81 = arith.constant dense<0xFF800000> : vector<192xf32>
    %514 = vector.multi_reduction <maximumf>, %513, %cst_81 [0] : vector<16x192xf32> to vector<192xf32>
    %515 = vector.shape_cast %514 : vector<192xf32> to vector<1x192xf32>
    %cst_82 = arith.constant 5.000000e-01 : f32
    %516 = vector.broadcast %cst_82 : f32 to vector<1x192xf32>
    %517 = arith.cmpf olt, %515, %516 : vector<1x192xf32>
    %518 = arith.extui %517 : vector<1x192xi1> to vector<1x192xi32>
    %519 = arith.sitofp %518 : vector<1x192xi32> to vector<1x192xf32>
    %520 = arith.mulf %92, %519 : vector<1x192xf32>
    %cst_83 = arith.constant 5.000000e-01 : f32
    %521 = vector.broadcast %cst_83 : f32 to vector<1x192xf32>
    %522 = arith.mulf %520, %521 : vector<1x192xf32>
    %cst_84 = arith.constant 0.000000e+00 : f32
    %523 = vector.broadcast %cst_84 : f32 to vector<3x192xf32>
    %524 = tpu.concatenate %64, %71, %81, %89, %522, %523 in 0 : vector<1x192xf32>, vector<1x192xf32>, vector<1x192xf32>, vector<1x192xf32>, vector<1x192xf32>, vector<3x192xf32> -> vector<8x192xf32>
    %cst_85 = arith.constant dense<0.000000e+00> : vector<8xf32>
    %525 = vector.multi_reduction <add>, %524, %cst_85 [1] : vector<8x192xf32> to vector<8xf32>
    %526 = vector.shape_cast %525 : vector<8xf32> to vector<8x1xf32>
    %c0_86 = arith.constant 0 : index
    %c0_87 = arith.constant 0 : index
    %c0_88 = arith.constant 0 : index
    %527 = vector.load %arg4[%c0_86, %c0_87, %c0_88] : memref<2x8x1xf32, #tpu.memory_space<vmem>>, vector<1x8x1xf32>
    %528 = vector.shape_cast %527 : vector<1x8x1xf32> to vector<8x1xf32>
    %529 = vector.shape_cast %526 : vector<8x1xf32> to vector<1x8x1xf32>
    tpu.vector_store %arg4[%c0_86, %c0_87, %c0_88], %529 {strides = array<i32>} : memref<2x8x1xf32, #tpu.memory_space<vmem>>, vector<1x8x1xf32>,
    %c1_89 = arith.constant 1 : index
    %c0_90 = arith.constant 0 : index
    %c0_91 = arith.constant 0 : index
    %c0_92 = arith.constant 0 : index
    %530 = vector.load %arg1[%c1_89, %c0_90, %c0_91, %c0_92] : memref<2x2x9x192xf32, #tpu.memory_space<vmem>>, vector<1x1x9x192xf32>
    %531 = vector.shape_cast %530 : vector<1x1x9x192xf32> to vector<9x192xf32>
    %c1_93 = arith.constant 1 : index
    %c1_94 = arith.constant 1 : index
    %c0_95 = arith.constant 0 : index
    %c0_96 = arith.constant 0 : index
    %532 = vector.load %arg1[%c1_93, %c1_94, %c0_95, %c0_96] : memref<2x2x9x192xf32, #tpu.memory_space<vmem>>, vector<1x1x9x192xf32>
    %533 = vector.shape_cast %532 : vector<1x1x9x192xf32> to vector<9x192xf32>
    %534 = arith.negf %531 : vector<9x192xf32>
    %535 = math.exp %534 : vector<9x192xf32>
    %cst_97 = arith.constant 1.000000e+00 : f32
    %536 = vector.broadcast %cst_97 : f32 to vector<9x192xf32>
    %537 = arith.addf %536, %535 : vector<9x192xf32>
    %538 = arith.divf %536, %537 : vector<9x192xf32>
    %539 = vector.extract_strided_slice %538 {offsets = [0, 0], sizes = [4, 192], strides = [1, 1]} : vector<9x192xf32> to vector<4x192xf32>
    %540 = vector.extract_strided_slice %538 {offsets = [4, 0], sizes = [2, 192], strides = [1, 1]} : vector<9x192xf32> to vector<2x192xf32>
    %541 = vector.extract_strided_slice %531 {offsets = [6, 0], sizes = [2, 192], strides = [1, 1]} : vector<9x192xf32> to vector<2x192xf32>
    %542 = vector.extract_strided_slice %538 {offsets = [8, 0], sizes = [1, 192], strides = [1, 1]} : vector<9x192xf32> to vector<1x192xf32>
    %543 = arith.addf %540, %0 : vector<2x192xf32>
    %cst_98 = arith.constant 1.250000e-01 : f32
    %544 = vector.broadcast %cst_98 : f32 to vector<2x192xf32>
    %545 = arith.mulf %543, %544 : vector<2x192xf32>
    %546 = math.exp %541 : vector<2x192xf32>
    %547 = arith.mulf %546, %1 : vector<2x192xf32>
    %cst_99 = arith.constant 5.000000e-01 : f32
    %548 = vector.broadcast %cst_99 : f32 to vector<2x192xf32>
    %549 = arith.mulf %548, %547 : vector<2x192xf32>
    %550 = arith.subf %545, %549 : vector<2x192xf32>
    %cst_100 = arith.constant 5.000000e-01 : f32
    %551 = vector.broadcast %cst_100 : f32 to vector<2x192xf32>
    %552 = arith.mulf %551, %547 : vector<2x192xf32>
    %553 = arith.addf %545, %552 : vector<2x192xf32>
    %554 = vector.extract_strided_slice %550 {offsets = [0, 0], sizes = [1, 192], strides = [1, 1]} : vector<2x192xf32> to vector<1x192xf32>
    %555 = vector.extract_strided_slice %550 {offsets = [1, 0], sizes = [1, 192], strides = [1, 1]} : vector<2x192xf32> to vector<1x192xf32>
    %556 = vector.extract_strided_slice %553 {offsets = [0, 0], sizes = [1, 192], strides = [1, 1]} : vector<2x192xf32> to vector<1x192xf32>
    %557 = vector.extract_strided_slice %553 {offsets = [1, 0], sizes = [1, 192], strides = [1, 1]} : vector<2x192xf32> to vector<1x192xf32>
    %558 = arith.subf %556, %554 : vector<1x192xf32>
    %559 = arith.subf %557, %555 : vector<1x192xf32>
    %560 = arith.mulf %558, %559 : vector<1x192xf32>
    %561 = vector.extract_strided_slice %533 {offsets = [4, 0], sizes = [2, 192], strides = [1, 1]} : vector<9x192xf32> to vector<2x192xf32>
    %562 = vector.extract_strided_slice %533 {offsets = [6, 0], sizes = [2, 192], strides = [1, 1]} : vector<9x192xf32> to vector<2x192xf32>
    %563 = vector.extract_strided_slice %533 {offsets = [8, 0], sizes = [1, 192], strides = [1, 1]} : vector<9x192xf32> to vector<1x192xf32>
    %cst_101 = arith.constant 8.000000e+00 : f32
    %564 = vector.broadcast %cst_101 : f32 to vector<2x192xf32>
    %565 = arith.mulf %561, %564 : vector<2x192xf32>
    %566 = arith.subf %565, %0 : vector<2x192xf32>
    %567 = arith.divf %562, %1 : vector<2x192xf32>
    %cst_102 = arith.constant 0.000000e+00 : f32
    %568 = vector.broadcast %cst_102 : f32 to vector<2x192xf32>
    %569 = arith.cmpf ogt, %567, %568 : vector<2x192xf32>
    %cst_103 = arith.constant 0.000000e+00 : f32
    %570 = vector.broadcast %cst_103 : f32 to vector<2x192xf32>
    %571 = arith.cmpf ogt, %567, %570 : vector<2x192xf32>
    %cst_104 = arith.constant 1.000000e+00 : f32
    %572 = vector.broadcast %cst_104 : f32 to vector<2x192xf32>
    %573 = arith.select %571, %567, %572 : vector<2x192xi1>, vector<2x192xf32>
    %574 = math.log %573 : vector<2x192xf32>
    %cst_105 = arith.constant 0.000000e+00 : f32
    %575 = vector.broadcast %cst_105 : f32 to vector<2x192xf32>
    %576 = arith.select %569, %574, %575 : vector<2x192xi1>, vector<2x192xf32>
    %cst_106 = arith.constant 5.000000e-01 : f32
    %577 = vector.broadcast %cst_106 : f32 to vector<2x192xf32>
    %578 = arith.mulf %577, %562 : vector<2x192xf32>
    %579 = arith.addf %561, %578 : vector<2x192xf32>
    %580 = vector.extract_strided_slice %579 {offsets = [0, 0], sizes = [1, 192], strides = [1, 1]} : vector<2x192xf32> to vector<1x192xf32>
    %581 = vector.extract_strided_slice %579 {offsets = [1, 0], sizes = [1, 192], strides = [1, 1]} : vector<2x192xf32> to vector<1x192xf32>
    %582 = arith.mulf %580, %581 : vector<1x192xf32>
    %cst_107 = arith.constant 2.000000e+00 : f32
    %583 = vector.broadcast %cst_107 : f32 to vector<1x192xf32>
    %584 = arith.subf %583, %582 : vector<1x192xf32>
    %585 = arith.mulf %563, %584 : vector<1x192xf32>
    %586 = arith.subf %566, %540 : vector<2x192xf32>
    %587 = arith.mulf %586, %586 : vector<2x192xf32>
    %cst_108 = arith.constant dense<0.000000e+00> : vector<192xf32>
    %588 = vector.multi_reduction <add>, %587, %cst_108 [0] : vector<2x192xf32> to vector<192xf32>
    %589 = vector.shape_cast %588 : vector<192xf32> to vector<1x192xf32>
    %590 = arith.mulf %589, %585 : vector<1x192xf32>
    %cst_109 = arith.constant 5.000000e+00 : f32
    %591 = vector.broadcast %cst_109 : f32 to vector<1x192xf32>
    %592 = arith.mulf %590, %591 : vector<1x192xf32>
    %593 = arith.subf %576, %541 : vector<2x192xf32>
    %594 = arith.mulf %593, %593 : vector<2x192xf32>
    %cst_110 = arith.constant dense<0.000000e+00> : vector<192xf32>
    %595 = vector.multi_reduction <add>, %594, %cst_110 [0] : vector<2x192xf32> to vector<192xf32>
    %596 = vector.shape_cast %595 : vector<192xf32> to vector<1x192xf32>
    %597 = arith.mulf %596, %585 : vector<1x192xf32>
    %cst_111 = arith.constant 5.000000e+00 : f32
    %598 = vector.broadcast %cst_111 : f32 to vector<1x192xf32>
    %599 = arith.mulf %597, %598 : vector<1x192xf32>
    %cst_112 = arith.constant 1.000000e-07 : f32
    %cst_113 = arith.constant 0.99999988 : f32
    %600 = vector.broadcast %cst_112 : f32 to vector<4x192xf32>
    %601 = arith.maximumf %600, %539 : vector<4x192xf32>
    %602 = vector.broadcast %cst_113 : f32 to vector<4x192xf32>
    %603 = arith.minimumf %602, %601 : vector<4x192xf32>
    %604 = math.log %603 : vector<4x192xf32>
    %cst_114 = arith.constant 0.000000e+00 : f32
    %605 = vector.broadcast %cst_114 : f32 to vector<4x192xf32>
    %606 = arith.subf %605, %604 : vector<4x192xf32>
    %cst_115 = arith.constant dense<0.000000e+00> : vector<192xf32>
    %607 = vector.multi_reduction <add>, %606, %cst_115 [0] : vector<4x192xf32> to vector<192xf32>
    %608 = vector.shape_cast %607 : vector<192xf32> to vector<1x192xf32>
    %609 = arith.mulf %608, %563 : vector<1x192xf32>
    %cst_116 = arith.constant 1.000000e-07 : f32
    %cst_117 = arith.constant 0.99999988 : f32
    %610 = vector.broadcast %cst_116 : f32 to vector<1x192xf32>
    %611 = arith.maximumf %610, %542 : vector<1x192xf32>
    %612 = vector.broadcast %cst_117 : f32 to vector<1x192xf32>
    %613 = arith.minimumf %612, %611 : vector<1x192xf32>
    %614 = math.log %613 : vector<1x192xf32>
    %cst_118 = arith.constant 0.000000e+00 : f32
    %615 = vector.broadcast %cst_118 : f32 to vector<1x192xf32>
    %616 = arith.subf %615, %614 : vector<1x192xf32>
    %617 = arith.mulf %616, %563 : vector<1x192xf32>
    %cst_119 = arith.constant 1.000000e+00 : f32
    %618 = vector.broadcast %cst_119 : f32 to vector<1x192xf32>
    %619 = arith.subf %618, %563 : vector<1x192xf32>
    %620 = arith.mulf %619, %616 : vector<1x192xf32>
    %cst_120 = arith.constant 0xFF800000 : f32
    %621 = vector.broadcast %cst_120 : f32 to vector<16x192xf32>
    %c1_121 = arith.constant 1 : index
    %c0_122 = arith.constant 0 : index
    %c0_123 = arith.constant 0 : index
    %622 = vector.load %arg3[%c1_121, %c0_122, %c0_123] : memref<2x192x4xf32, #tpu.memory_space<vmem>>, vector<1x16x4xf32>
    %623 = vector.shape_cast %622 : vector<1x16x4xf32> to vector<16x4xf32>
    %624 = vector.extract_strided_slice %623 {offsets = [0, 0], sizes = [16, 1], strides = [1, 1]} : vector<16x4xf32> to vector<16x1xf32>
    %625 = vector.extract_strided_slice %623 {offsets = [0, 1], sizes = [16, 1], strides = [1, 1]} : vector<16x4xf32> to vector<16x1xf32>
    %626 = vector.extract_strided_slice %623 {offsets = [0, 2], sizes = [16, 1], strides = [1, 1]} : vector<16x4xf32> to vector<16x1xf32>
    %627 = vector.extract_strided_slice %623 {offsets = [0, 3], sizes = [16, 1], strides = [1, 1]} : vector<16x4xf32> to vector<16x1xf32>
    %628 = vector.broadcast %556 : vector<1x192xf32> to vector<16x192xf32>
    %629 = vector.broadcast %626 : vector<16x1xf32> to vector<16x192xf32>
    %630 = arith.minimumf %628, %629 : vector<16x192xf32>
    %631 = vector.broadcast %554 : vector<1x192xf32> to vector<16x192xf32>
    %632 = vector.broadcast %624 : vector<16x1xf32> to vector<16x192xf32>
    %633 = arith.maximumf %631, %632 : vector<16x192xf32>
    %634 = arith.subf %630, %633 : vector<16x192xf32>
    %cst_124 = arith.constant 0.000000e+00 : f32
    %635 = vector.broadcast %cst_124 : f32 to vector<16x192xf32>
    %636 = arith.maximumf %634, %635 : vector<16x192xf32>
    %637 = vector.broadcast %557 : vector<1x192xf32> to vector<16x192xf32>
    %638 = vector.broadcast %627 : vector<16x1xf32> to vector<16x192xf32>
    %639 = arith.minimumf %637, %638 : vector<16x192xf32>
    %640 = vector.broadcast %555 : vector<1x192xf32> to vector<16x192xf32>
    %641 = vector.broadcast %625 : vector<16x1xf32> to vector<16x192xf32>
    %642 = arith.maximumf %640, %641 : vector<16x192xf32>
    %643 = arith.subf %639, %642 : vector<16x192xf32>
    %cst_125 = arith.constant 0.000000e+00 : f32
    %644 = vector.broadcast %cst_125 : f32 to vector<16x192xf32>
    %645 = arith.maximumf %643, %644 : vector<16x192xf32>
    %646 = arith.mulf %636, %645 : vector<16x192xf32>
    %647 = arith.subf %626, %624 : vector<16x1xf32>
    %648 = arith.subf %627, %625 : vector<16x1xf32>
    %649 = arith.mulf %647, %648 : vector<16x1xf32>
    %650 = vector.broadcast %560 : vector<1x192xf32> to vector<16x192xf32>
    %651 = vector.broadcast %649 : vector<16x1xf32> to vector<16x192xf32>
    %652 = arith.addf %650, %651 : vector<16x192xf32>
    %653 = arith.subf %652, %646 : vector<16x192xf32>
    %654 = tpu.reciprocal %653 : vector<16x192xf32> -> vector<16x192xf32>
    %655 = arith.mulf %646, %654 : vector<16x192xf32>
    %656 = arith.maximumf %621, %655 : vector<16x192xf32>
    %c1_126 = arith.constant 1 : index
    %c16_127 = arith.constant 16 : index
    %c0_128 = arith.constant 0 : index
    %657 = vector.load %arg3[%c1_126, %c16_127, %c0_128] : memref<2x192x4xf32, #tpu.memory_space<vmem>>, vector<1x16x4xf32>
    %658 = vector.shape_cast %657 : vector<1x16x4xf32> to vector<16x4xf32>
    %659 = vector.extract_strided_slice %658 {offsets = [0, 0], sizes = [16, 1], strides = [1, 1]} : vector<16x4xf32> to vector<16x1xf32>
    %660 = vector.extract_strided_slice %658 {offsets = [0, 1], sizes = [16, 1], strides = [1, 1]} : vector<16x4xf32> to vector<16x1xf32>
    %661 = vector.extract_strided_slice %658 {offsets = [0, 2], sizes = [16, 1], strides = [1, 1]} : vector<16x4xf32> to vector<16x1xf32>
    %662 = vector.extract_strided_slice %658 {offsets = [0, 3], sizes = [16, 1], strides = [1, 1]} : vector<16x4xf32> to vector<16x1xf32>
    %663 = vector.broadcast %556 : vector<1x192xf32> to vector<16x192xf32>
    %664 = vector.broadcast %661 : vector<16x1xf32> to vector<16x192xf32>
    %665 = arith.minimumf %663, %664 : vector<16x192xf32>
    %666 = vector.broadcast %554 : vector<1x192xf32> to vector<16x192xf32>
    %667 = vector.broadcast %659 : vector<16x1xf32> to vector<16x192xf32>
    %668 = arith.maximumf %666, %667 : vector<16x192xf32>
    %669 = arith.subf %665, %668 : vector<16x192xf32>
    %cst_129 = arith.constant 0.000000e+00 : f32
    %670 = vector.broadcast %cst_129 : f32 to vector<16x192xf32>
    %671 = arith.maximumf %669, %670 : vector<16x192xf32>
    %672 = vector.broadcast %557 : vector<1x192xf32> to vector<16x192xf32>
    %673 = vector.broadcast %662 : vector<16x1xf32> to vector<16x192xf32>
    %674 = arith.minimumf %672, %673 : vector<16x192xf32>
    %675 = vector.broadcast %555 : vector<1x192xf32> to vector<16x192xf32>
    %676 = vector.broadcast %660 : vector<16x1xf32> to vector<16x192xf32>
    %677 = arith.maximumf %675, %676 : vector<16x192xf32>
    %678 = arith.subf %674, %677 : vector<16x192xf32>
    %cst_130 = arith.constant 0.000000e+00 : f32
    %679 = vector.broadcast %cst_130 : f32 to vector<16x192xf32>
    %680 = arith.maximumf %678, %679 : vector<16x192xf32>
    %681 = arith.mulf %671, %680 : vector<16x192xf32>
    %682 = arith.subf %661, %659 : vector<16x1xf32>
    %683 = arith.subf %662, %660 : vector<16x1xf32>
    %684 = arith.mulf %682, %683 : vector<16x1xf32>
    %685 = vector.broadcast %560 : vector<1x192xf32> to vector<16x192xf32>
    %686 = vector.broadcast %684 : vector<16x1xf32> to vector<16x192xf32>
    %687 = arith.addf %685, %686 : vector<16x192xf32>
    %688 = arith.subf %687, %681 : vector<16x192xf32>
    %689 = tpu.reciprocal %688 : vector<16x192xf32> -> vector<16x192xf32>
    %690 = arith.mulf %681, %689 : vector<16x192xf32>
    %691 = arith.maximumf %656, %690 : vector<16x192xf32>
    %c1_131 = arith.constant 1 : index
    %c32_132 = arith.constant 32 : index
    %c0_133 = arith.constant 0 : index
    %692 = vector.load %arg3[%c1_131, %c32_132, %c0_133] : memref<2x192x4xf32, #tpu.memory_space<vmem>>, vector<1x16x4xf32>
    %693 = vector.shape_cast %692 : vector<1x16x4xf32> to vector<16x4xf32>
    %694 = vector.extract_strided_slice %693 {offsets = [0, 0], sizes = [16, 1], strides = [1, 1]} : vector<16x4xf32> to vector<16x1xf32>
    %695 = vector.extract_strided_slice %693 {offsets = [0, 1], sizes = [16, 1], strides = [1, 1]} : vector<16x4xf32> to vector<16x1xf32>
    %696 = vector.extract_strided_slice %693 {offsets = [0, 2], sizes = [16, 1], strides = [1, 1]} : vector<16x4xf32> to vector<16x1xf32>
    %697 = vector.extract_strided_slice %693 {offsets = [0, 3], sizes = [16, 1], strides = [1, 1]} : vector<16x4xf32> to vector<16x1xf32>
    %698 = vector.broadcast %556 : vector<1x192xf32> to vector<16x192xf32>
    %699 = vector.broadcast %696 : vector<16x1xf32> to vector<16x192xf32>
    %700 = arith.minimumf %698, %699 : vector<16x192xf32>
    %701 = vector.broadcast %554 : vector<1x192xf32> to vector<16x192xf32>
    %702 = vector.broadcast %694 : vector<16x1xf32> to vector<16x192xf32>
    %703 = arith.maximumf %701, %702 : vector<16x192xf32>
    %704 = arith.subf %700, %703 : vector<16x192xf32>
    %cst_134 = arith.constant 0.000000e+00 : f32
    %705 = vector.broadcast %cst_134 : f32 to vector<16x192xf32>
    %706 = arith.maximumf %704, %705 : vector<16x192xf32>
    %707 = vector.broadcast %557 : vector<1x192xf32> to vector<16x192xf32>
    %708 = vector.broadcast %697 : vector<16x1xf32> to vector<16x192xf32>
    %709 = arith.minimumf %707, %708 : vector<16x192xf32>
    %710 = vector.broadcast %555 : vector<1x192xf32> to vector<16x192xf32>
    %711 = vector.broadcast %695 : vector<16x1xf32> to vector<16x192xf32>
    %712 = arith.maximumf %710, %711 : vector<16x192xf32>
    %713 = arith.subf %709, %712 : vector<16x192xf32>
    %cst_135 = arith.constant 0.000000e+00 : f32
    %714 = vector.broadcast %cst_135 : f32 to vector<16x192xf32>
    %715 = arith.maximumf %713, %714 : vector<16x192xf32>
    %716 = arith.mulf %706, %715 : vector<16x192xf32>
    %717 = arith.subf %696, %694 : vector<16x1xf32>
    %718 = arith.subf %697, %695 : vector<16x1xf32>
    %719 = arith.mulf %717, %718 : vector<16x1xf32>
    %720 = vector.broadcast %560 : vector<1x192xf32> to vector<16x192xf32>
    %721 = vector.broadcast %719 : vector<16x1xf32> to vector<16x192xf32>
    %722 = arith.addf %720, %721 : vector<16x192xf32>
    %723 = arith.subf %722, %716 : vector<16x192xf32>
    %724 = tpu.reciprocal %723 : vector<16x192xf32> -> vector<16x192xf32>
    %725 = arith.mulf %716, %724 : vector<16x192xf32>
    %726 = arith.maximumf %691, %725 : vector<16x192xf32>
    %c1_136 = arith.constant 1 : index
    %c48_137 = arith.constant 48 : index
    %c0_138 = arith.constant 0 : index
    %727 = vector.load %arg3[%c1_136, %c48_137, %c0_138] : memref<2x192x4xf32, #tpu.memory_space<vmem>>, vector<1x16x4xf32>
    %728 = vector.shape_cast %727 : vector<1x16x4xf32> to vector<16x4xf32>
    %729 = vector.extract_strided_slice %728 {offsets = [0, 0], sizes = [16, 1], strides = [1, 1]} : vector<16x4xf32> to vector<16x1xf32>
    %730 = vector.extract_strided_slice %728 {offsets = [0, 1], sizes = [16, 1], strides = [1, 1]} : vector<16x4xf32> to vector<16x1xf32>
    %731 = vector.extract_strided_slice %728 {offsets = [0, 2], sizes = [16, 1], strides = [1, 1]} : vector<16x4xf32> to vector<16x1xf32>
    %732 = vector.extract_strided_slice %728 {offsets = [0, 3], sizes = [16, 1], strides = [1, 1]} : vector<16x4xf32> to vector<16x1xf32>
    %733 = vector.broadcast %556 : vector<1x192xf32> to vector<16x192xf32>
    %734 = vector.broadcast %731 : vector<16x1xf32> to vector<16x192xf32>
    %735 = arith.minimumf %733, %734 : vector<16x192xf32>
    %736 = vector.broadcast %554 : vector<1x192xf32> to vector<16x192xf32>
    %737 = vector.broadcast %729 : vector<16x1xf32> to vector<16x192xf32>
    %738 = arith.maximumf %736, %737 : vector<16x192xf32>
    %739 = arith.subf %735, %738 : vector<16x192xf32>
    %cst_139 = arith.constant 0.000000e+00 : f32
    %740 = vector.broadcast %cst_139 : f32 to vector<16x192xf32>
    %741 = arith.maximumf %739, %740 : vector<16x192xf32>
    %742 = vector.broadcast %557 : vector<1x192xf32> to vector<16x192xf32>
    %743 = vector.broadcast %732 : vector<16x1xf32> to vector<16x192xf32>
    %744 = arith.minimumf %742, %743 : vector<16x192xf32>
    %745 = vector.broadcast %555 : vector<1x192xf32> to vector<16x192xf32>
    %746 = vector.broadcast %730 : vector<16x1xf32> to vector<16x192xf32>
    %747 = arith.maximumf %745, %746 : vector<16x192xf32>
    %748 = arith.subf %744, %747 : vector<16x192xf32>
    %cst_140 = arith.constant 0.000000e+00 : f32
    %749 = vector.broadcast %cst_140 : f32 to vector<16x192xf32>
    %750 = arith.maximumf %748, %749 : vector<16x192xf32>
    %751 = arith.mulf %741, %750 : vector<16x192xf32>
    %752 = arith.subf %731, %729 : vector<16x1xf32>
    %753 = arith.subf %732, %730 : vector<16x1xf32>
    %754 = arith.mulf %752, %753 : vector<16x1xf32>
    %755 = vector.broadcast %560 : vector<1x192xf32> to vector<16x192xf32>
    %756 = vector.broadcast %754 : vector<16x1xf32> to vector<16x192xf32>
    %757 = arith.addf %755, %756 : vector<16x192xf32>
    %758 = arith.subf %757, %751 : vector<16x192xf32>
    %759 = tpu.reciprocal %758 : vector<16x192xf32> -> vector<16x192xf32>
    %760 = arith.mulf %751, %759 : vector<16x192xf32>
    %761 = arith.maximumf %726, %760 : vector<16x192xf32>
    %c1_141 = arith.constant 1 : index
    %c64_142 = arith.constant 64 : index
    %c0_143 = arith.constant 0 : index
    %762 = vector.load %arg3[%c1_141, %c64_142, %c0_143] : memref<2x192x4xf32, #tpu.memory_space<vmem>>, vector<1x16x4xf32>
    %763 = vector.shape_cast %762 : vector<1x16x4xf32> to vector<16x4xf32>
    %764 = vector.extract_strided_slice %763 {offsets = [0, 0], sizes = [16, 1], strides = [1, 1]} : vector<16x4xf32> to vector<16x1xf32>
    %765 = vector.extract_strided_slice %763 {offsets = [0, 1], sizes = [16, 1], strides = [1, 1]} : vector<16x4xf32> to vector<16x1xf32>
    %766 = vector.extract_strided_slice %763 {offsets = [0, 2], sizes = [16, 1], strides = [1, 1]} : vector<16x4xf32> to vector<16x1xf32>
    %767 = vector.extract_strided_slice %763 {offsets = [0, 3], sizes = [16, 1], strides = [1, 1]} : vector<16x4xf32> to vector<16x1xf32>
    %768 = vector.broadcast %556 : vector<1x192xf32> to vector<16x192xf32>
    %769 = vector.broadcast %766 : vector<16x1xf32> to vector<16x192xf32>
    %770 = arith.minimumf %768, %769 : vector<16x192xf32>
    %771 = vector.broadcast %554 : vector<1x192xf32> to vector<16x192xf32>
    %772 = vector.broadcast %764 : vector<16x1xf32> to vector<16x192xf32>
    %773 = arith.maximumf %771, %772 : vector<16x192xf32>
    %774 = arith.subf %770, %773 : vector<16x192xf32>
    %cst_144 = arith.constant 0.000000e+00 : f32
    %775 = vector.broadcast %cst_144 : f32 to vector<16x192xf32>
    %776 = arith.maximumf %774, %775 : vector<16x192xf32>
    %777 = vector.broadcast %557 : vector<1x192xf32> to vector<16x192xf32>
    %778 = vector.broadcast %767 : vector<16x1xf32> to vector<16x192xf32>
    %779 = arith.minimumf %777, %778 : vector<16x192xf32>
    %780 = vector.broadcast %555 : vector<1x192xf32> to vector<16x192xf32>
    %781 = vector.broadcast %765 : vector<16x1xf32> to vector<16x192xf32>
    %782 = arith.maximumf %780, %781 : vector<16x192xf32>
    %783 = arith.subf %779, %782 : vector<16x192xf32>
    %cst_145 = arith.constant 0.000000e+00 : f32
    %784 = vector.broadcast %cst_145 : f32 to vector<16x192xf32>
    %785 = arith.maximumf %783, %784 : vector<16x192xf32>
    %786 = arith.mulf %776, %785 : vector<16x192xf32>
    %787 = arith.subf %766, %764 : vector<16x1xf32>
    %788 = arith.subf %767, %765 : vector<16x1xf32>
    %789 = arith.mulf %787, %788 : vector<16x1xf32>
    %790 = vector.broadcast %560 : vector<1x192xf32> to vector<16x192xf32>
    %791 = vector.broadcast %789 : vector<16x1xf32> to vector<16x192xf32>
    %792 = arith.addf %790, %791 : vector<16x192xf32>
    %793 = arith.subf %792, %786 : vector<16x192xf32>
    %794 = tpu.reciprocal %793 : vector<16x192xf32> -> vector<16x192xf32>
    %795 = arith.mulf %786, %794 : vector<16x192xf32>
    %796 = arith.maximumf %761, %795 : vector<16x192xf32>
    %c1_146 = arith.constant 1 : index
    %c80_147 = arith.constant 80 : index
    %c0_148 = arith.constant 0 : index
    %797 = vector.load %arg3[%c1_146, %c80_147, %c0_148] : memref<2x192x4xf32, #tpu.memory_space<vmem>>, vector<1x16x4xf32>
    %798 = vector.shape_cast %797 : vector<1x16x4xf32> to vector<16x4xf32>
    %799 = vector.extract_strided_slice %798 {offsets = [0, 0], sizes = [16, 1], strides = [1, 1]} : vector<16x4xf32> to vector<16x1xf32>
    %800 = vector.extract_strided_slice %798 {offsets = [0, 1], sizes = [16, 1], strides = [1, 1]} : vector<16x4xf32> to vector<16x1xf32>
    %801 = vector.extract_strided_slice %798 {offsets = [0, 2], sizes = [16, 1], strides = [1, 1]} : vector<16x4xf32> to vector<16x1xf32>
    %802 = vector.extract_strided_slice %798 {offsets = [0, 3], sizes = [16, 1], strides = [1, 1]} : vector<16x4xf32> to vector<16x1xf32>
    %803 = vector.broadcast %556 : vector<1x192xf32> to vector<16x192xf32>
    %804 = vector.broadcast %801 : vector<16x1xf32> to vector<16x192xf32>
    %805 = arith.minimumf %803, %804 : vector<16x192xf32>
    %806 = vector.broadcast %554 : vector<1x192xf32> to vector<16x192xf32>
    %807 = vector.broadcast %799 : vector<16x1xf32> to vector<16x192xf32>
    %808 = arith.maximumf %806, %807 : vector<16x192xf32>
    %809 = arith.subf %805, %808 : vector<16x192xf32>
    %cst_149 = arith.constant 0.000000e+00 : f32
    %810 = vector.broadcast %cst_149 : f32 to vector<16x192xf32>
    %811 = arith.maximumf %809, %810 : vector<16x192xf32>
    %812 = vector.broadcast %557 : vector<1x192xf32> to vector<16x192xf32>
    %813 = vector.broadcast %802 : vector<16x1xf32> to vector<16x192xf32>
    %814 = arith.minimumf %812, %813 : vector<16x192xf32>
    %815 = vector.broadcast %555 : vector<1x192xf32> to vector<16x192xf32>
    %816 = vector.broadcast %800 : vector<16x1xf32> to vector<16x192xf32>
    %817 = arith.maximumf %815, %816 : vector<16x192xf32>
    %818 = arith.subf %814, %817 : vector<16x192xf32>
    %cst_150 = arith.constant 0.000000e+00 : f32
    %819 = vector.broadcast %cst_150 : f32 to vector<16x192xf32>
    %820 = arith.maximumf %818, %819 : vector<16x192xf32>
    %821 = arith.mulf %811, %820 : vector<16x192xf32>
    %822 = arith.subf %801, %799 : vector<16x1xf32>
    %823 = arith.subf %802, %800 : vector<16x1xf32>
    %824 = arith.mulf %822, %823 : vector<16x1xf32>
    %825 = vector.broadcast %560 : vector<1x192xf32> to vector<16x192xf32>
    %826 = vector.broadcast %824 : vector<16x1xf32> to vector<16x192xf32>
    %827 = arith.addf %825, %826 : vector<16x192xf32>
    %828 = arith.subf %827, %821 : vector<16x192xf32>
    %829 = tpu.reciprocal %828 : vector<16x192xf32> -> vector<16x192xf32>
    %830 = arith.mulf %821, %829 : vector<16x192xf32>
    %831 = arith.maximumf %796, %830 : vector<16x192xf32>
    %c1_151 = arith.constant 1 : index
    %c96_152 = arith.constant 96 : index
    %c0_153 = arith.constant 0 : index
    %832 = vector.load %arg3[%c1_151, %c96_152, %c0_153] : memref<2x192x4xf32, #tpu.memory_space<vmem>>, vector<1x16x4xf32>
    %833 = vector.shape_cast %832 : vector<1x16x4xf32> to vector<16x4xf32>
    %834 = vector.extract_strided_slice %833 {offsets = [0, 0], sizes = [16, 1], strides = [1, 1]} : vector<16x4xf32> to vector<16x1xf32>
    %835 = vector.extract_strided_slice %833 {offsets = [0, 1], sizes = [16, 1], strides = [1, 1]} : vector<16x4xf32> to vector<16x1xf32>
    %836 = vector.extract_strided_slice %833 {offsets = [0, 2], sizes = [16, 1], strides = [1, 1]} : vector<16x4xf32> to vector<16x1xf32>
    %837 = vector.extract_strided_slice %833 {offsets = [0, 3], sizes = [16, 1], strides = [1, 1]} : vector<16x4xf32> to vector<16x1xf32>
    %838 = vector.broadcast %556 : vector<1x192xf32> to vector<16x192xf32>
    %839 = vector.broadcast %836 : vector<16x1xf32> to vector<16x192xf32>
    %840 = arith.minimumf %838, %839 : vector<16x192xf32>
    %841 = vector.broadcast %554 : vector<1x192xf32> to vector<16x192xf32>
    %842 = vector.broadcast %834 : vector<16x1xf32> to vector<16x192xf32>
    %843 = arith.maximumf %841, %842 : vector<16x192xf32>
    %844 = arith.subf %840, %843 : vector<16x192xf32>
    %cst_154 = arith.constant 0.000000e+00 : f32
    %845 = vector.broadcast %cst_154 : f32 to vector<16x192xf32>
    %846 = arith.maximumf %844, %845 : vector<16x192xf32>
    %847 = vector.broadcast %557 : vector<1x192xf32> to vector<16x192xf32>
    %848 = vector.broadcast %837 : vector<16x1xf32> to vector<16x192xf32>
    %849 = arith.minimumf %847, %848 : vector<16x192xf32>
    %850 = vector.broadcast %555 : vector<1x192xf32> to vector<16x192xf32>
    %851 = vector.broadcast %835 : vector<16x1xf32> to vector<16x192xf32>
    %852 = arith.maximumf %850, %851 : vector<16x192xf32>
    %853 = arith.subf %849, %852 : vector<16x192xf32>
    %cst_155 = arith.constant 0.000000e+00 : f32
    %854 = vector.broadcast %cst_155 : f32 to vector<16x192xf32>
    %855 = arith.maximumf %853, %854 : vector<16x192xf32>
    %856 = arith.mulf %846, %855 : vector<16x192xf32>
    %857 = arith.subf %836, %834 : vector<16x1xf32>
    %858 = arith.subf %837, %835 : vector<16x1xf32>
    %859 = arith.mulf %857, %858 : vector<16x1xf32>
    %860 = vector.broadcast %560 : vector<1x192xf32> to vector<16x192xf32>
    %861 = vector.broadcast %859 : vector<16x1xf32> to vector<16x192xf32>
    %862 = arith.addf %860, %861 : vector<16x192xf32>
    %863 = arith.subf %862, %856 : vector<16x192xf32>
    %864 = tpu.reciprocal %863 : vector<16x192xf32> -> vector<16x192xf32>
    %865 = arith.mulf %856, %864 : vector<16x192xf32>
    %866 = arith.maximumf %831, %865 : vector<16x192xf32>
    %c1_156 = arith.constant 1 : index
    %c112_157 = arith.constant 112 : index
    %c0_158 = arith.constant 0 : index
    %867 = vector.load %arg3[%c1_156, %c112_157, %c0_158] : memref<2x192x4xf32, #tpu.memory_space<vmem>>, vector<1x16x4xf32>
    %868 = vector.shape_cast %867 : vector<1x16x4xf32> to vector<16x4xf32>
    %869 = vector.extract_strided_slice %868 {offsets = [0, 0], sizes = [16, 1], strides = [1, 1]} : vector<16x4xf32> to vector<16x1xf32>
    %870 = vector.extract_strided_slice %868 {offsets = [0, 1], sizes = [16, 1], strides = [1, 1]} : vector<16x4xf32> to vector<16x1xf32>
    %871 = vector.extract_strided_slice %868 {offsets = [0, 2], sizes = [16, 1], strides = [1, 1]} : vector<16x4xf32> to vector<16x1xf32>
    %872 = vector.extract_strided_slice %868 {offsets = [0, 3], sizes = [16, 1], strides = [1, 1]} : vector<16x4xf32> to vector<16x1xf32>
    %873 = vector.broadcast %556 : vector<1x192xf32> to vector<16x192xf32>
    %874 = vector.broadcast %871 : vector<16x1xf32> to vector<16x192xf32>
    %875 = arith.minimumf %873, %874 : vector<16x192xf32>
    %876 = vector.broadcast %554 : vector<1x192xf32> to vector<16x192xf32>
    %877 = vector.broadcast %869 : vector<16x1xf32> to vector<16x192xf32>
    %878 = arith.maximumf %876, %877 : vector<16x192xf32>
    %879 = arith.subf %875, %878 : vector<16x192xf32>
    %cst_159 = arith.constant 0.000000e+00 : f32
    %880 = vector.broadcast %cst_159 : f32 to vector<16x192xf32>
    %881 = arith.maximumf %879, %880 : vector<16x192xf32>
    %882 = vector.broadcast %557 : vector<1x192xf32> to vector<16x192xf32>
    %883 = vector.broadcast %872 : vector<16x1xf32> to vector<16x192xf32>
    %884 = arith.minimumf %882, %883 : vector<16x192xf32>
    %885 = vector.broadcast %555 : vector<1x192xf32> to vector<16x192xf32>
    %886 = vector.broadcast %870 : vector<16x1xf32> to vector<16x192xf32>
    %887 = arith.maximumf %885, %886 : vector<16x192xf32>
    %888 = arith.subf %884, %887 : vector<16x192xf32>
    %cst_160 = arith.constant 0.000000e+00 : f32
    %889 = vector.broadcast %cst_160 : f32 to vector<16x192xf32>
    %890 = arith.maximumf %888, %889 : vector<16x192xf32>
    %891 = arith.mulf %881, %890 : vector<16x192xf32>
    %892 = arith.subf %871, %869 : vector<16x1xf32>
    %893 = arith.subf %872, %870 : vector<16x1xf32>
    %894 = arith.mulf %892, %893 : vector<16x1xf32>
    %895 = vector.broadcast %560 : vector<1x192xf32> to vector<16x192xf32>
    %896 = vector.broadcast %894 : vector<16x1xf32> to vector<16x192xf32>
    %897 = arith.addf %895, %896 : vector<16x192xf32>
    %898 = arith.subf %897, %891 : vector<16x192xf32>
    %899 = tpu.reciprocal %898 : vector<16x192xf32> -> vector<16x192xf32>
    %900 = arith.mulf %891, %899 : vector<16x192xf32>
    %901 = arith.maximumf %866, %900 : vector<16x192xf32>
    %c1_161 = arith.constant 1 : index
    %c128_162 = arith.constant 128 : index
    %c0_163 = arith.constant 0 : index
    %902 = vector.load %arg3[%c1_161, %c128_162, %c0_163] : memref<2x192x4xf32, #tpu.memory_space<vmem>>, vector<1x16x4xf32>
    %903 = vector.shape_cast %902 : vector<1x16x4xf32> to vector<16x4xf32>
    %904 = vector.extract_strided_slice %903 {offsets = [0, 0], sizes = [16, 1], strides = [1, 1]} : vector<16x4xf32> to vector<16x1xf32>
    %905 = vector.extract_strided_slice %903 {offsets = [0, 1], sizes = [16, 1], strides = [1, 1]} : vector<16x4xf32> to vector<16x1xf32>
    %906 = vector.extract_strided_slice %903 {offsets = [0, 2], sizes = [16, 1], strides = [1, 1]} : vector<16x4xf32> to vector<16x1xf32>
    %907 = vector.extract_strided_slice %903 {offsets = [0, 3], sizes = [16, 1], strides = [1, 1]} : vector<16x4xf32> to vector<16x1xf32>
    %908 = vector.broadcast %556 : vector<1x192xf32> to vector<16x192xf32>
    %909 = vector.broadcast %906 : vector<16x1xf32> to vector<16x192xf32>
    %910 = arith.minimumf %908, %909 : vector<16x192xf32>
    %911 = vector.broadcast %554 : vector<1x192xf32> to vector<16x192xf32>
    %912 = vector.broadcast %904 : vector<16x1xf32> to vector<16x192xf32>
    %913 = arith.maximumf %911, %912 : vector<16x192xf32>
    %914 = arith.subf %910, %913 : vector<16x192xf32>
    %cst_164 = arith.constant 0.000000e+00 : f32
    %915 = vector.broadcast %cst_164 : f32 to vector<16x192xf32>
    %916 = arith.maximumf %914, %915 : vector<16x192xf32>
    %917 = vector.broadcast %557 : vector<1x192xf32> to vector<16x192xf32>
    %918 = vector.broadcast %907 : vector<16x1xf32> to vector<16x192xf32>
    %919 = arith.minimumf %917, %918 : vector<16x192xf32>
    %920 = vector.broadcast %555 : vector<1x192xf32> to vector<16x192xf32>
    %921 = vector.broadcast %905 : vector<16x1xf32> to vector<16x192xf32>
    %922 = arith.maximumf %920, %921 : vector<16x192xf32>
    %923 = arith.subf %919, %922 : vector<16x192xf32>
    %cst_165 = arith.constant 0.000000e+00 : f32
    %924 = vector.broadcast %cst_165 : f32 to vector<16x192xf32>
    %925 = arith.maximumf %923, %924 : vector<16x192xf32>
    %926 = arith.mulf %916, %925 : vector<16x192xf32>
    %927 = arith.subf %906, %904 : vector<16x1xf32>
    %928 = arith.subf %907, %905 : vector<16x1xf32>
    %929 = arith.mulf %927, %928 : vector<16x1xf32>
    %930 = vector.broadcast %560 : vector<1x192xf32> to vector<16x192xf32>
    %931 = vector.broadcast %929 : vector<16x1xf32> to vector<16x192xf32>
    %932 = arith.addf %930, %931 : vector<16x192xf32>
    %933 = arith.subf %932, %926 : vector<16x192xf32>
    %934 = tpu.reciprocal %933 : vector<16x192xf32> -> vector<16x192xf32>
    %935 = arith.mulf %926, %934 : vector<16x192xf32>
    %936 = arith.maximumf %901, %935 : vector<16x192xf32>
    %c1_166 = arith.constant 1 : index
    %c144_167 = arith.constant 144 : index
    %c0_168 = arith.constant 0 : index
    %937 = vector.load %arg3[%c1_166, %c144_167, %c0_168] : memref<2x192x4xf32, #tpu.memory_space<vmem>>, vector<1x16x4xf32>
    %938 = vector.shape_cast %937 : vector<1x16x4xf32> to vector<16x4xf32>
    %939 = vector.extract_strided_slice %938 {offsets = [0, 0], sizes = [16, 1], strides = [1, 1]} : vector<16x4xf32> to vector<16x1xf32>
    %940 = vector.extract_strided_slice %938 {offsets = [0, 1], sizes = [16, 1], strides = [1, 1]} : vector<16x4xf32> to vector<16x1xf32>
    %941 = vector.extract_strided_slice %938 {offsets = [0, 2], sizes = [16, 1], strides = [1, 1]} : vector<16x4xf32> to vector<16x1xf32>
    %942 = vector.extract_strided_slice %938 {offsets = [0, 3], sizes = [16, 1], strides = [1, 1]} : vector<16x4xf32> to vector<16x1xf32>
    %943 = vector.broadcast %556 : vector<1x192xf32> to vector<16x192xf32>
    %944 = vector.broadcast %941 : vector<16x1xf32> to vector<16x192xf32>
    %945 = arith.minimumf %943, %944 : vector<16x192xf32>
    %946 = vector.broadcast %554 : vector<1x192xf32> to vector<16x192xf32>
    %947 = vector.broadcast %939 : vector<16x1xf32> to vector<16x192xf32>
    %948 = arith.maximumf %946, %947 : vector<16x192xf32>
    %949 = arith.subf %945, %948 : vector<16x192xf32>
    %cst_169 = arith.constant 0.000000e+00 : f32
    %950 = vector.broadcast %cst_169 : f32 to vector<16x192xf32>
    %951 = arith.maximumf %949, %950 : vector<16x192xf32>
    %952 = vector.broadcast %557 : vector<1x192xf32> to vector<16x192xf32>
    %953 = vector.broadcast %942 : vector<16x1xf32> to vector<16x192xf32>
    %954 = arith.minimumf %952, %953 : vector<16x192xf32>
    %955 = vector.broadcast %555 : vector<1x192xf32> to vector<16x192xf32>
    %956 = vector.broadcast %940 : vector<16x1xf32> to vector<16x192xf32>
    %957 = arith.maximumf %955, %956 : vector<16x192xf32>
    %958 = arith.subf %954, %957 : vector<16x192xf32>
    %cst_170 = arith.constant 0.000000e+00 : f32
    %959 = vector.broadcast %cst_170 : f32 to vector<16x192xf32>
    %960 = arith.maximumf %958, %959 : vector<16x192xf32>
    %961 = arith.mulf %951, %960 : vector<16x192xf32>
    %962 = arith.subf %941, %939 : vector<16x1xf32>
    %963 = arith.subf %942, %940 : vector<16x1xf32>
    %964 = arith.mulf %962, %963 : vector<16x1xf32>
    %965 = vector.broadcast %560 : vector<1x192xf32> to vector<16x192xf32>
    %966 = vector.broadcast %964 : vector<16x1xf32> to vector<16x192xf32>
    %967 = arith.addf %965, %966 : vector<16x192xf32>
    %968 = arith.subf %967, %961 : vector<16x192xf32>
    %969 = tpu.reciprocal %968 : vector<16x192xf32> -> vector<16x192xf32>
    %970 = arith.mulf %961, %969 : vector<16x192xf32>
    %971 = arith.maximumf %936, %970 : vector<16x192xf32>
    %c1_171 = arith.constant 1 : index
    %c160_172 = arith.constant 160 : index
    %c0_173 = arith.constant 0 : index
    %972 = vector.load %arg3[%c1_171, %c160_172, %c0_173] : memref<2x192x4xf32, #tpu.memory_space<vmem>>, vector<1x16x4xf32>
    %973 = vector.shape_cast %972 : vector<1x16x4xf32> to vector<16x4xf32>
    %974 = vector.extract_strided_slice %973 {offsets = [0, 0], sizes = [16, 1], strides = [1, 1]} : vector<16x4xf32> to vector<16x1xf32>
    %975 = vector.extract_strided_slice %973 {offsets = [0, 1], sizes = [16, 1], strides = [1, 1]} : vector<16x4xf32> to vector<16x1xf32>
    %976 = vector.extract_strided_slice %973 {offsets = [0, 2], sizes = [16, 1], strides = [1, 1]} : vector<16x4xf32> to vector<16x1xf32>
    %977 = vector.extract_strided_slice %973 {offsets = [0, 3], sizes = [16, 1], strides = [1, 1]} : vector<16x4xf32> to vector<16x1xf32>
    %978 = vector.broadcast %556 : vector<1x192xf32> to vector<16x192xf32>
    %979 = vector.broadcast %976 : vector<16x1xf32> to vector<16x192xf32>
    %980 = arith.minimumf %978, %979 : vector<16x192xf32>
    %981 = vector.broadcast %554 : vector<1x192xf32> to vector<16x192xf32>
    %982 = vector.broadcast %974 : vector<16x1xf32> to vector<16x192xf32>
    %983 = arith.maximumf %981, %982 : vector<16x192xf32>
    %984 = arith.subf %980, %983 : vector<16x192xf32>
    %cst_174 = arith.constant 0.000000e+00 : f32
    %985 = vector.broadcast %cst_174 : f32 to vector<16x192xf32>
    %986 = arith.maximumf %984, %985 : vector<16x192xf32>
    %987 = vector.broadcast %557 : vector<1x192xf32> to vector<16x192xf32>
    %988 = vector.broadcast %977 : vector<16x1xf32> to vector<16x192xf32>
    %989 = arith.minimumf %987, %988 : vector<16x192xf32>
    %990 = vector.broadcast %555 : vector<1x192xf32> to vector<16x192xf32>
    %991 = vector.broadcast %975 : vector<16x1xf32> to vector<16x192xf32>
    %992 = arith.maximumf %990, %991 : vector<16x192xf32>
    %993 = arith.subf %989, %992 : vector<16x192xf32>
    %cst_175 = arith.constant 0.000000e+00 : f32
    %994 = vector.broadcast %cst_175 : f32 to vector<16x192xf32>
    %995 = arith.maximumf %993, %994 : vector<16x192xf32>
    %996 = arith.mulf %986, %995 : vector<16x192xf32>
    %997 = arith.subf %976, %974 : vector<16x1xf32>
    %998 = arith.subf %977, %975 : vector<16x1xf32>
    %999 = arith.mulf %997, %998 : vector<16x1xf32>
    %1000 = vector.broadcast %560 : vector<1x192xf32> to vector<16x192xf32>
    %1001 = vector.broadcast %999 : vector<16x1xf32> to vector<16x192xf32>
    %1002 = arith.addf %1000, %1001 : vector<16x192xf32>
    %1003 = arith.subf %1002, %996 : vector<16x192xf32>
    %1004 = tpu.reciprocal %1003 : vector<16x192xf32> -> vector<16x192xf32>
    %1005 = arith.mulf %996, %1004 : vector<16x192xf32>
    %1006 = arith.maximumf %971, %1005 : vector<16x192xf32>
    %c1_176 = arith.constant 1 : index
    %c176_177 = arith.constant 176 : index
    %c0_178 = arith.constant 0 : index
    %1007 = vector.load %arg3[%c1_176, %c176_177, %c0_178] : memref<2x192x4xf32, #tpu.memory_space<vmem>>, vector<1x16x4xf32>
    %1008 = vector.shape_cast %1007 : vector<1x16x4xf32> to vector<16x4xf32>
    %1009 = vector.extract_strided_slice %1008 {offsets = [0, 0], sizes = [16, 1], strides = [1, 1]} : vector<16x4xf32> to vector<16x1xf32>
    %1010 = vector.extract_strided_slice %1008 {offsets = [0, 1], sizes = [16, 1], strides = [1, 1]} : vector<16x4xf32> to vector<16x1xf32>
    %1011 = vector.extract_strided_slice %1008 {offsets = [0, 2], sizes = [16, 1], strides = [1, 1]} : vector<16x4xf32> to vector<16x1xf32>
    %1012 = vector.extract_strided_slice %1008 {offsets = [0, 3], sizes = [16, 1], strides = [1, 1]} : vector<16x4xf32> to vector<16x1xf32>
    %1013 = vector.broadcast %556 : vector<1x192xf32> to vector<16x192xf32>
    %1014 = vector.broadcast %1011 : vector<16x1xf32> to vector<16x192xf32>
    %1015 = arith.minimumf %1013, %1014 : vector<16x192xf32>
    %1016 = vector.broadcast %554 : vector<1x192xf32> to vector<16x192xf32>
    %1017 = vector.broadcast %1009 : vector<16x1xf32> to vector<16x192xf32>
    %1018 = arith.maximumf %1016, %1017 : vector<16x192xf32>
    %1019 = arith.subf %1015, %1018 : vector<16x192xf32>
    %cst_179 = arith.constant 0.000000e+00 : f32
    %1020 = vector.broadcast %cst_179 : f32 to vector<16x192xf32>
    %1021 = arith.maximumf %1019, %1020 : vector<16x192xf32>
    %1022 = vector.broadcast %557 : vector<1x192xf32> to vector<16x192xf32>
    %1023 = vector.broadcast %1012 : vector<16x1xf32> to vector<16x192xf32>
    %1024 = arith.minimumf %1022, %1023 : vector<16x192xf32>
    %1025 = vector.broadcast %555 : vector<1x192xf32> to vector<16x192xf32>
    %1026 = vector.broadcast %1010 : vector<16x1xf32> to vector<16x192xf32>
    %1027 = arith.maximumf %1025, %1026 : vector<16x192xf32>
    %1028 = arith.subf %1024, %1027 : vector<16x192xf32>
    %cst_180 = arith.constant 0.000000e+00 : f32
    %1029 = vector.broadcast %cst_180 : f32 to vector<16x192xf32>
    %1030 = arith.maximumf %1028, %1029 : vector<16x192xf32>
    %1031 = arith.mulf %1021, %1030 : vector<16x192xf32>
    %1032 = arith.subf %1011, %1009 : vector<16x1xf32>
    %1033 = arith.subf %1012, %1010 : vector<16x1xf32>
    %1034 = arith.mulf %1032, %1033 : vector<16x1xf32>
    %1035 = vector.broadcast %560 : vector<1x192xf32> to vector<16x192xf32>
    %1036 = vector.broadcast %1034 : vector<16x1xf32> to vector<16x192xf32>
    %1037 = arith.addf %1035, %1036 : vector<16x192xf32>
    %1038 = arith.subf %1037, %1031 : vector<16x192xf32>
    %1039 = tpu.reciprocal %1038 : vector<16x192xf32> -> vector<16x192xf32>
    %1040 = arith.mulf %1031, %1039 : vector<16x192xf32>
    %1041 = arith.maximumf %1006, %1040 : vector<16x192xf32>
    %cst_181 = arith.constant dense<0xFF800000> : vector<192xf32>
    %1042 = vector.multi_reduction <maximumf>, %1041, %cst_181 [0] : vector<16x192xf32> to vector<192xf32>
    %1043 = vector.shape_cast %1042 : vector<192xf32> to vector<1x192xf32>
    %cst_182 = arith.constant 5.000000e-01 : f32
    %1044 = vector.broadcast %cst_182 : f32 to vector<1x192xf32>
    %1045 = arith.cmpf olt, %1043, %1044 : vector<1x192xf32>
    %1046 = arith.extui %1045 : vector<1x192xi1> to vector<1x192xi32>
    %1047 = arith.sitofp %1046 : vector<1x192xi32> to vector<1x192xf32>
    %1048 = arith.mulf %620, %1047 : vector<1x192xf32>
    %cst_183 = arith.constant 5.000000e-01 : f32
    %1049 = vector.broadcast %cst_183 : f32 to vector<1x192xf32>
    %1050 = arith.mulf %1048, %1049 : vector<1x192xf32>
    %cst_184 = arith.constant 0.000000e+00 : f32
    %1051 = vector.broadcast %cst_184 : f32 to vector<3x192xf32>
    %1052 = tpu.concatenate %592, %599, %609, %617, %1050, %1051 in 0 : vector<1x192xf32>, vector<1x192xf32>, vector<1x192xf32>, vector<1x192xf32>, vector<1x192xf32>, vector<3x192xf32> -> vector<8x192xf32>
    %cst_185 = arith.constant dense<0.000000e+00> : vector<8xf32>
    %1053 = vector.multi_reduction <add>, %1052, %cst_185 [1] : vector<8x192xf32> to vector<8xf32>
    %1054 = vector.shape_cast %1053 : vector<8xf32> to vector<8x1xf32>
    %c1_186 = arith.constant 1 : index
    %c0_187 = arith.constant 0 : index
    %c0_188 = arith.constant 0 : index
    %1055 = vector.load %arg4[%c1_186, %c0_187, %c0_188] : memref<2x8x1xf32, #tpu.memory_space<vmem>>, vector<1x8x1xf32>
    %1056 = vector.shape_cast %1055 : vector<1x8x1xf32> to vector<8x1xf32>
    %1057 = vector.shape_cast %1054 : vector<8x1xf32> to vector<1x8x1xf32>
    tpu.vector_store %arg4[%c1_186, %c0_187, %c0_188], %1057 {strides = array<i32>} : memref<2x8x1xf32, #tpu.memory_space<vmem>>, vector<1x8x1xf32>,
    return
  }
  func.func @transform_0(%arg0: i32) -> (i32, i32, i32, i32) {
    %c0_i32 = arith.constant 0 : i32
    %c0_i32_0 = arith.constant 0 : i32
    %c0_i32_1 = arith.constant 0 : i32
    %c0_i32_2 = arith.constant 0 : i32
    return %arg0, %c0_i32, %c0_i32_0, %c0_i32_1 : i32, i32, i32, i32
  }
  func.func @transform_1(%arg0: i32) -> (i32, i32) {
    %c0_i32 = arith.constant 0 : i32
    %c0_i32_0 = arith.constant 0 : i32
    %c0_i32_1 = arith.constant 0 : i32
    return %c0_i32, %c0_i32_0 : i32, i32
  }
  func.func @transform_2(%arg0: i32) -> (i32, i32, i32) {
    %c0_i32 = arith.constant 0 : i32
    %c0_i32_0 = arith.constant 0 : i32
    %c0_i32_1 = arith.constant 0 : i32
    return %arg0, %c0_i32, %c0_i32_0 : i32, i32, i32
  }
  func.func @transform_3(%arg0: i32) -> (i32, i32, i32) {
    %c0_i32 = arith.constant 0 : i32
    %c0_i32_0 = arith.constant 0 : i32
    %c0_i32_1 = arith.constant 0 : i32
    return %arg0, %c0_i32, %c0_i32_0 : i32, i32, i32
  }
}

</mosaic_0001>

<llo_original>
// kernel: neg.3
$region0: #{neg.3}
  #allocation0 [shape = 's32[1]{0}', space=sflag, size = 0x4, scoped, tag = 'scoped memory for neg.3']
  %s0 = inlined_call_operand.vmem [shape: f32[2,192,4], index: 0, kind: input, shape index: {}]
  %s1 = inlined_call_operand.vmem [shape: f32[2,192,4], index: 1, kind: output, shape index: {}]
  %v2 = vld [vmem:[%s0] sm:$0xf]
  %3 = xla_tuple %v2
  %4 = xla_tuple %3
  %v5 = vxor.u32 %v2, 2147483648
  %6 = xla_tuple %v5
  %7 = vst [vmem:[%s1] sm:$0xf] %v5
  %s8 = scalar_lea.vmem %s0, 8
  %v9 = vld [vmem:[%s8] sm:$0xf]
  %10 = xla_tuple %v9
  %11 = xla_tuple %10
  %v12 = vxor.u32 %v9, 2147483648
  %13 = xla_tuple %v12
  %s14 = scalar_lea.vmem %s1, 8
  %15 = vst [vmem:[%s14] sm:$0xf] %v12
  %s16 = scalar_lea.vmem %s0, 4
  %v17 = vld [vmem:[%s16] sm:$0xf]
  %18 = xla_tuple %v17
  %19 = xla_tuple %18
  %v20 = vxor.u32 %v17, 2147483648
  %21 = xla_tuple %v20
  %s22 = scalar_lea.vmem %s1, 4
  %23 = vst [vmem:[%s22] sm:$0xf] %v20
  %s24 = scalar_lea.vmem %s0, 12
  %v25 = vld [vmem:[%s24] sm:$0xf]
  %26 = xla_tuple %v25
  %27 = xla_tuple %26
  %v28 = vxor.u32 %v25, 2147483648
  %29 = xla_tuple %v28
  %s30 = scalar_lea.vmem %s1, 12
  %31 = vst [vmem:[%s30] sm:$0xf] %v28

// kernel: _yolo_loss_impl.1
$region0: #{_yolo_loss_impl.1}
  #allocation0 [shape = 'u32[]', space=smem, size = 0x4, offset = 0x4, fixed_abs, tag = 'smem constant byte address 0x4 - core index']
  #allocation1 [shape = 'u32[144,128]{1,0:T(1,128)}', space=vmem, size = 0x12000, scoped, tag = 'internal scratch']
  %s0 = inlined_call_operand.vmem [shape: f32[2,2,9,192], index: 0, kind: input, shape index: {}]
  %s1 = inlined_call_operand.vmem [shape: f32[4,192], index: 1, kind: input, shape index: {}]
  %s2 = inlined_call_operand.vmem [shape: f32[2,192,4], index: 2, kind: input, shape index: {}]
  %s3 = inlined_call_operand.vmem [shape: f32[2,8,1], index: 3, kind: output, shape index: {}]
  %s4 = sld [smem:[#allocation0]]
  $region22: #{_yolo_loss_impl.1} parent=0
    _
  %s6 = ssub.s32 1, %s4
  %s7 = scalar_select 0, %s6, %s4
  // Predicated region
  $region2: #{_yolo_loss_impl.1} parent=0 // pred_check
    _
  $region3: #{_yolo_loss_impl.1} parent=0 // pred_check_branch
    %9 = sbr.rel (0) target = $region5
  $region4: #{_yolo_loss_impl.1} parent=0 // pred_region
    _
  $region5: #{_yolo_loss_impl.1} parent=0 // pred_fallthru
    _
  // Predicated region
  $region6: #{_yolo_loss_impl.1} parent=0 // pred_check
    _
  $region7: #{_yolo_loss_impl.1} parent=0 // pred_check_branch
    %11 = sbr.rel (0) target = $region9
  $region8: #{_yolo_loss_impl.1} parent=0 // pred_region
    _
  $region9: #{_yolo_loss_impl.1} parent=0 // pred_fallthru
    _
  // Predicated region
  $region10: #{_yolo_loss_impl.1} parent=0 // pred_check
    _
  $region11: #{_yolo_loss_impl.1} parent=0 // pred_check_branch
    %13 = sbr.rel (0) target = $region13
  $region12: #{_yolo_loss_impl.1} parent=0 // pred_region
    _
  $region13: #{_yolo_loss_impl.1} parent=0 // pred_fallthru
    _
  %v14 = vld [vmem:[%s1] sm:$0x33]
  %v15 = vld [vmem:[%s1] sm:$0xcc]
  %v16 = vld [vmem:[%s0] sm:$0xff]
  %v17 = vld [vmem:[%s0 + $0x8] sm:$0xff]
  %v18 = vld [vmem:[%s0 + $0x10] sm:$0x1]
  %v19 = vld [vmem:[%s0 + $0x18] sm:$0x1]
  %s20 = scalar_lea.vmem %s0, 32
  %v21 = vld [vmem:[%s20] sm:$0xff]
  %v22 = vld [vmem:[%s20 + $0x8] sm:$0xff]
  %v23 = vld [vmem:[%s20 + $0x10] sm:$0x1]
  %v24 = vld [vmem:[%s20 + $0x18] sm:$0x1]
  %v25 = vxor.u32 %v16, 2147483648
  %v26 = vxor.u32 %v17, 2147483648
  %v27 = vxor.u32 %v18, 2147483648
  %v28 = vxor.u32 %v19, 2147483648
  %v29 = vmul.f32 %v25, 1.442695
  %v30 = vpow.pop %v29
  %v31 = vmul.f32 %v26, 1.442695
  %v32 = vpow.pop %v31
  %v33 = vmul.f32 %v27, 1.442695
  %v34 = vpow.pop %v33
  %v35 = vmul.f32 %v28, 1.442695
  %v36 = vpow.pop %v35
  %v37 = vadd.f32 %v30, 1.0
  %v38 = vadd.f32 %v32, 1.0
  %v39 = vadd.f32 %v34, 1.0
  %v40 = vadd.f32 %v36, 1.0
  %v41 = vrcp.pop %v37
  %v42 = vmul.f32 1.0, %v41
  %v43 = vrcp.pop %v38
  %v44 = vmul.f32 1.0, %v43
  %v45 = vrcp.pop %v39
  %v46 = vmul.f32 1.0, %v45
  %v47 = vrcp.pop %v40
  %v48 = vmul.f32 1.0, %v47
  %v50 = vcombine.low %v14, %v14
  %v52 = vadd.f32 %v42, %v50
  %v53 = vadd.f32 %v44, %v14
  %v54 = vmul.f32 %v52, 0.125
  %v55 = vmul.f32 %v53, 0.125
  %v56 = vmul.f32 %v16, 1.442695
  %v57 = vpow.pop %v56
  %v58 = vmul.f32 %v17, 1.442695
  %v59 = vpow.pop %v58
  %v61 = vcombine.low %v15, %v15
  %v63 = vmul.f32 %v57, %v61
  %v64 = vmul.f32 %v59, %v15
  %v65 = vmul.f32 %v63, 0.5
  %v66 = vmul.f32 %v64, 0.5
  %v69 = vrot.slane %v65, 2
  %v70 = vrot.slane %v66, 2
  %v73 = vsub.f32 %v54, %v69
  %v74 = vsub.f32 %v55, %v70
  %v75 = vadd.f32 %v54, %v69
  %v76 = vadd.f32 %v55, %v70
  %v77 = vsub.f32 %v75, %v73
  %v78 = vsub.f32 %v76, %v74
  %v81 = vrot.slane %v77, 1
  %v82 = vrot.slane %v78, 1
  %v85 = vmul.f32 %v77, %v81
  %v86 = vmul.f32 %v78, %v82
  %v87 = vmul.f32 %v21, 8.0
  %v88 = vmul.f32 %v22, 8.0
  %v89 = vsub.f32 %v87, %v50
  %v90 = vsub.f32 %v88, %v14
  %v91 = vrcp.pop %v61
  %v92 = vmul.f32 %v21, %v91
  %v93 = vrcp.pop %v15
  %v94 = vmul.f32 %v22, %v93
  %vm95 = vcmp.gt.f32.partialorder %v92, 0.0
  %vm96 = vcmp.gt.f32.partialorder %v94, 0.0
  %v97 = vsel %vm95, %v92, 1.0
  %v98 = vsel %vm96, %v94, 1.0
  %v99 = vlog2.pop %v97
  %v100 = vmul.f32 %v99, 0.6931472
  %v101 = vlog2.pop %v98
  %v102 = vmul.f32 %v101, 0.6931472
  %v103 = vsel %vm95, %v100, 0.0
  %v104 = vsel %vm96, %v102, 0.0
  %v105 = vmul.f32 %v21, 0.5
  %v106 = vmul.f32 %v22, 0.5
  %v109 = vrot.slane %v105, 2
  %v110 = vrot.slane %v106, 2
  %v113 = vadd.f32 %v21, %v109
  %v114 = vadd.f32 %v22, %v110
  %v117 = vrot.slane %v113, 1
  %v118 = vrot.slane %v114, 1
  %v121 = vmul.f32 %v113, %v117
  %v122 = vmul.f32 %v114, %v118
  %v123 = vsub.f32 2.0, %v121
  %v124 = vsub.f32 2.0, %v122
  %v127 = vrot.slane %v123, 4
  %v128 = vrot.slane %v124, 4
  %v131 = vmul.f32 %v23, %v127
  %v132 = vmul.f32 %v24, %v128
  %v133 = vsub.f32 %v89, %v42
  %v134 = vsub.f32 %v90, %v44
  %v135 = vmul.f32 %v133, %v133
  %v136 = vmul.f32 %v134, %v134
  %v139 = vrot.slane %v135, 4
  %v140 = vrot.slane %v136, 4
  %vm143 = vcmask 1041408
  %v144 = vsel %vm143, %v139, 0.0
  %v145 = vrot.slane %v144, 4
  %v146 = vadd.f32 %v144, %v145
  %v147 = vrot.slane %v146, 2
  %v148 = vadd.f32 %v146, %v147
  %v149 = vrot.slane %v148, 1
  %v150 = vadd.f32 %v148, %v149
  %vm151 = vcmask 517120
  %v152 = vsel %vm151, %v140, 0.0
  %v153 = vrot.slane %v152, 4
  %v154 = vadd.f32 %v152, %v153
  %v155 = vrot.slane %v154, 2
  %v156 = vadd.f32 %v154, %v155
  %v157 = vrot.slane %v156, 1
  %v158 = vadd.f32 %v156, %v157
  %v159 = vmul.f32 %v150, %v131
  %v160 = vmul.f32 %v158, %v132
  %v161 = vmul.f32 %v159, 5.0
  %v162 = vmul.f32 %v160, 5.0
  %v163 = vsub.f32 %v103, %v16
  %v164 = vsub.f32 %v104, %v17
  %v165 = vmul.f32 %v163, %v163
  %v166 = vmul.f32 %v164, %v164
  %v169 = vrot.slane %v165, 6
  %v170 = vrot.slane %v166, 6
  %v173 = vsel %vm143, %v169, 0.0
  %v174 = vrot.slane %v173, 4
  %v175 = vadd.f32 %v173, %v174
  %v176 = vrot.slane %v175, 2
  %v177 = vadd.f32 %v175, %v176
  %v178 = vrot.slane %v177, 1
  %v179 = vadd.f32 %v177, %v178
  %v180 = vsel %vm151, %v170, 0.0
  %v181 = vrot.slane %v180, 4
  %v182 = vadd.f32 %v180, %v181
  %v183 = vrot.slane %v182, 2
  %v184 = vadd.f32 %v182, %v183
  %v185 = vrot.slane %v184, 1
  %v186 = vadd.f32 %v184, %v185
  %v187 = vmul.f32 %v179, %v131
  %v188 = vmul.f32 %v186, %v132
  %v189 = vmul.f32 %v187, 5.0
  %v190 = vmul.f32 %v188, 5.0
  %v191 = vmax.f32 %v42, 1e-07
  %v192 = vmax.f32 %v44, 1e-07
  %v193 = vmin.f32 %v191, 0.9999999
  %v194 = vmin.f32 %v192, 0.9999999
  %v195 = vlog2.pop %v193
  %v196 = vmul.f32 %v195, 0.6931472
  %v197 = vlog2.pop %v194
  %v198 = vmul.f32 %v197, 0.6931472
  %v199 = vsub.f32 0.0, %v196
  %v200 = vsub.f32 0.0, %v198
  %vm201 = vcmask 1043456
  %v202 = vsel %vm201, %v199, 0.0
  %v203 = vrot.slane %v202, 4
  %v204 = vadd.f32 %v202, %v203
  %v205 = vrot.slane %v204, 2
  %v206 = vadd.f32 %v204, %v205
  %v207 = vrot.slane %v206, 1
  %v208 = vadd.f32 %v206, %v207
  %vm209 = vcmask 519168
  %v210 = vsel %vm209, %v200, 0.0
  %v211 = vrot.slane %v210, 4
  %v212 = vadd.f32 %v210, %v211
  %v213 = vrot.slane %v212, 2
  %v214 = vadd.f32 %v212, %v213
  %v215 = vrot.slane %v214, 1
  %v216 = vadd.f32 %v214, %v215
  %v217 = vmul.f32 %v208, %v23
  %v218 = vmul.f32 %v216, %v24
  %v219 = vmax.f32 %v46, 1e-07
  %v220 = vmax.f32 %v48, 1e-07
  %v221 = vmin.f32 %v219, 0.9999999
  %v222 = vmin.f32 %v220, 0.9999999
  %v223 = vlog2.pop %v221
  %v224 = vmul.f32 %v223, 0.6931472
  %v225 = vlog2.pop %v222
  %v226 = vmul.f32 %v225, 0.6931472
  %v227 = vsub.f32 0.0, %v224
  %v228 = vsub.f32 0.0, %v226
  %v229 = vmul.f32 %v227, %v23
  %v230 = vmul.f32 %v228, %v24
  %v231 = vsub.f32 1.0, %v23
  %v232 = vsub.f32 1.0, %v24
  %v233 = vmul.f32 %v231, %v227
  %v234 = vmul.f32 %v232, %v228
  %v235 = vld [vmem:[%s2] sm:$0xff]
  %v236 = vld [vmem:[%s2 + $0x8] sm:$0xff]
  %v237 = vlaneseq
  %v238 = vshrl.u32 %v237, 7
  %v239 = vsub.s32 4, %v238
  %v240 = vrot.slane %v75, %v239
  %v241 = vlaneseq
  %v242 = vshrl.u32 %v241, 7
  %v243 = vsub.s32 4, %v242
  %v244 = vrot.slane %v76, %v243
  %246 = vset.pattern.permute.xlu0 2
  %247 = vperm.xlu0 %246, %v235
  %v248 = vpop.permute.xlu0 %247
  %251 = vset.pattern.permute.xlu0 2
  %252 = vperm.xlu0 %251, %v236
  %v253 = vpop.permute.xlu0 %252
  %v255 = vmin.f32 %v240, %v248
  %v256 = vmin.f32 %v244, %v248
  %v257 = vmin.f32 %v240, %v253
  %v258 = vmin.f32 %v244, %v253
  %v259 = vlaneseq
  %v260 = vshrl.u32 %v259, 7
  %v261 = vsub.s32 4, %v260
  %v262 = vrot.slane %v73, %v261
  %v263 = vlaneseq
  %v264 = vshrl.u32 %v263, 7
  %v265 = vsub.s32 4, %v264
  %v266 = vrot.slane %v74, %v265
  %267 = vset.pattern.permute.xlu0 0
  %268 = vperm.xlu0 %267, %v235
  %v269 = vpop.permute.xlu0 %268
  %271 = vset.pattern.permute.xlu0 0
  %272 = vperm.xlu0 %271, %v236
  %v273 = vpop.permute.xlu0 %272
  %v275 = vmax.f32 %v262, %v269
  %v276 = vmax.f32 %v266, %v269
  %v277 = vmax.f32 %v262, %v273
  %v278 = vmax.f32 %v266, %v273
  %v279 = vsub.f32 %v255, %v275
  %v280 = vsub.f32 %v256, %v276
  %v281 = vsub.f32 %v257, %v277
  %v282 = vsub.f32 %v258, %v278
  %v283 = vmax.f32 %v279, 0.0
  %v284 = vmax.f32 %v280, 0.0
  %v285 = vmax.f32 %v281, 0.0
  %v286 = vmax.f32 %v282, 0.0
  %v287 = vlaneseq
  %v288 = vshrl.u32 %v287, 7
  %v289 = vsub.s32 5, %v288
  %v290 = vrot.slane %v75, %v289
  %v291 = vlaneseq
  %v292 = vshrl.u32 %v291, 7
  %v293 = vsub.s32 5, %v292
  %v294 = vrot.slane %v76, %v293
  %295 = vset.pattern.permute.xlu0 3
  %296 = vperm.xlu0 %295, %v235
  %v297 = vpop.permute.xlu0 %296
  %299 = vset.pattern.permute.xlu0 3
  %300 = vperm.xlu0 %299, %v236
  %v301 = vpop.permute.xlu0 %300
  %v303 = vmin.f32 %v290, %v297
  %v304 = vmin.f32 %v294, %v297
  %v305 = vmin.f32 %v290, %v301
  %v306 = vmin.f32 %v294, %v301
  %v307 = vlaneseq
  %v308 = vshrl.u32 %v307, 7
  %v309 = vsub.s32 5, %v308
  %v310 = vrot.slane %v73, %v309
  %v311 = vlaneseq
  %v312 = vshrl.u32 %v311, 7
  %v313 = vsub.s32 5, %v312
  %v314 = vrot.slane %v74, %v313
  %315 = vset.pattern.permute.xlu0 1
  %316 = vperm.xlu0 %315, %v235
  %v317 = vpop.permute.xlu0 %316
  %319 = vset.pattern.permute.xlu0 1
  %320 = vperm.xlu0 %319, %v236
  %v321 = vpop.permute.xlu0 %320
  %v323 = vmax.f32 %v310, %v317
  %v324 = vmax.f32 %v314, %v317
  %v325 = vmax.f32 %v310, %v321
  %v326 = vmax.f32 %v314, %v321
  %v327 = vsub.f32 %v303, %v323
  %v328 = vsub.f32 %v304, %v324
  %v329 = vsub.f32 %v305, %v325
  %v330 = vsub.f32 %v306, %v326
  %v331 = vmax.f32 %v327, 0.0
  %v332 = vmax.f32 %v328, 0.0
  %v333 = vmax.f32 %v329, 0.0
  %v334 = vmax.f32 %v330, 0.0
  %v335 = vmul.f32 %v283, %v331
  %v336 = vmul.f32 %v284, %v332
  %v337 = vmul.f32 %v285, %v333
  %v338 = vmul.f32 %v286, %v334
  %339 = vrot.lane.b32.xlu0 %v235, 2
  %v340 = vpop.permute.xlu0 %339
  %341 = vrot.lane.b32.xlu0 %v236, 2
  %v342 = vpop.permute.xlu0 %341
  %v345 = vsub.f32 %v235, %v340
  %v346 = vsub.f32 %v236, %v342
  %349 = vrot.lane.b32.xlu0 %v345, 127
  %v350 = vpop.permute.xlu0 %349
  %351 = vrot.lane.b32.xlu0 %v346, 127
  %v352 = vpop.permute.xlu0 %351
  %v355 = vmul.f32 %v345, %v350
  %v356 = vmul.f32 %v346, %v352
  %v357 = vlaneseq
  %v358 = vshrl.u32 %v357, 7
  %v359 = vsub.s32 4, %v358
  %v360 = vrot.slane %v85, %v359
  %v361 = vlaneseq
  %v362 = vshrl.u32 %v361, 7
  %v363 = vsub.s32 4, %v362
  %v364 = vrot.slane %v86, %v363
  %366 = vset.pattern.permute.xlu0 2
  %367 = vperm.xlu0 %366, %v355
  %v368 = vpop.permute.xlu0 %367
  %371 = vset.pattern.permute.xlu0 2
  %372 = vperm.xlu0 %371, %v356
  %v373 = vpop.permute.xlu0 %372
  %v375 = vadd.f32 %v360, %v368
  %v376 = vadd.f32 %v364, %v368
  %v377 = vadd.f32 %v360, %v373
  %v378 = vadd.f32 %v364, %v373
  %v379 = vsub.f32 %v375, %v335
  %v380 = vsub.f32 %v376, %v336
  %v381 = vsub.f32 %v377, %v337
  %v382 = vsub.f32 %v378, %v338
  %v383 = vrcp.pop %v379
  %v384 = vrcp.pop %v380
  %v385 = vrcp.pop %v381
  %v386 = vrcp.pop %v382
  %v387 = vmul.f32 %v335, %v383
  %v388 = vmul.f32 %v336, %v384
  %v389 = vmul.f32 %v337, %v385
  %v390 = vmul.f32 %v338, %v386
  %v391 = vld [vmem:[%s2 + $0x10] sm:$0xff]
  %v392 = vld [vmem:[%s2 + $0x18] sm:$0xff]
  %394 = vset.pattern.permute.xlu0 2
  %395 = vperm.xlu0 %394, %v391
  %v396 = vpop.permute.xlu0 %395
  %399 = vset.pattern.permute.xlu0 2
  %400 = vperm.xlu0 %399, %v392
  %v401 = vpop.permute.xlu0 %400
  %v403 = vmin.f32 %v240, %v396
  %v404 = vmin.f32 %v244, %v396
  %v405 = vmin.f32 %v240, %v401
  %v406 = vmin.f32 %v244, %v401
  %407 = vset.pattern.permute.xlu0 0
  %408 = vperm.xlu0 %407, %v391
  %v409 = vpop.permute.xlu0 %408
  %411 = vset.pattern.permute.xlu0 0
  %412 = vperm.xlu0 %411, %v392
  %v413 = vpop.permute.xlu0 %412
  %v415 = vmax.f32 %v262, %v409
  %v416 = vmax.f32 %v266, %v409
  %v417 = vmax.f32 %v262, %v413
  %v418 = vmax.f32 %v266, %v413
  %v419 = vsub.f32 %v403, %v415
  %v420 = vsub.f32 %v404, %v416
  %v421 = vsub.f32 %v405, %v417
  %v422 = vsub.f32 %v406, %v418
  %v423 = vmax.f32 %v419, 0.0
  %v424 = vmax.f32 %v420, 0.0
  %v425 = vmax.f32 %v421, 0.0
  %v426 = vmax.f32 %v422, 0.0
  %427 = vset.pattern.permute.xlu0 3
  %428 = vperm.xlu0 %427, %v391
  %v429 = vpop.permute.xlu0 %428
  %431 = vset.pattern.permute.xlu0 3
  %432 = vperm.xlu0 %431, %v392
  %v433 = vpop.permute.xlu0 %432
  %v435 = vmin.f32 %v290, %v429
  %v436 = vmin.f32 %v294, %v429
  %v437 = vmin.f32 %v290, %v433
  %v438 = vmin.f32 %v294, %v433
  %439 = vset.pattern.permute.xlu0 1
  %440 = vperm.xlu0 %439, %v391
  %v441 = vpop.permute.xlu0 %440
  %443 = vset.pattern.permute.xlu0 1
  %444 = vperm.xlu0 %443, %v392
  %v445 = vpop.permute.xlu0 %444
  %v447 = vmax.f32 %v310, %v441
  %v448 = vmax.f32 %v314, %v441
  %v449 = vmax.f32 %v310, %v445
  %v450 = vmax.f32 %v314, %v445
  %v451 = vsub.f32 %v435, %v447
  %v452 = vsub.f32 %v436, %v448
  %v453 = vsub.f32 %v437, %v449
  %v454 = vsub.f32 %v438, %v450
  %v455 = vmax.f32 %v451, 0.0
  %v456 = vmax.f32 %v452, 0.0
  %v457 = vmax.f32 %v453, 0.0
  %v458 = vmax.f32 %v454, 0.0
  %v459 = vmul.f32 %v423, %v455
  %v460 = vmul.f32 %v424, %v456
  %v461 = vmul.f32 %v425, %v457
  %v462 = vmul.f32 %v426, %v458
  %463 = vrot.lane.b32.xlu0 %v391, 2
  %v464 = vpop.permute.xlu0 %463
  %465 = vrot.lane.b32.xlu0 %v392, 2
  %v466 = vpop.permute.xlu0 %465
  %v469 = vsub.f32 %v391, %v464
  %v470 = vsub.f32 %v392, %v466
  %473 = vrot.lane.b32.xlu0 %v469, 127
  %v474 = vpop.permute.xlu0 %473
  %475 = vrot.lane.b32.xlu0 %v470, 127
  %v476 = vpop.permute.xlu0 %475
  %v479 = vmul.f32 %v469, %v474
  %v480 = vmul.f32 %v470, %v476
  %482 = vset.pattern.permute.xlu0 2
  %483 = vperm.xlu0 %482, %v479
  %v484 = vpop.permute.xlu0 %483
  %487 = vset.pattern.permute.xlu0 2
  %488 = vperm.xlu0 %487, %v480
  %v489 = vpop.permute.xlu0 %488
  %v491 = vadd.f32 %v360, %v484
  %v492 = vadd.f32 %v364, %v484
  %v493 = vadd.f32 %v360, %v489
  %v494 = vadd.f32 %v364, %v489
  %v495 = vsub.f32 %v491, %v459
  %v496 = vsub.f32 %v492, %v460
  %v497 = vsub.f32 %v493, %v461
  %v498 = vsub.f32 %v494, %v462
  %v499 = vrcp.pop %v495
  %v500 = vrcp.pop %v496
  %v501 = vrcp.pop %v497
  %v502 = vrcp.pop %v498
  %v503 = vmul.f32 %v459, %v499
  %v504 = vmul.f32 %v460, %v500
  %v505 = vmul.f32 %v461, %v501
  %v506 = vmul.f32 %v462, %v502
  %v507 = vmax.f32 %v387, %v503
  %v508 = vmax.f32 %v388, %v504
  %v509 = vmax.f32 %v389, %v505
  %v510 = vmax.f32 %v390, %v506
  %v511 = vld [vmem:[%s2 + $0x20] sm:$0xff]
  %v512 = vld [vmem:[%s2 + $0x28] sm:$0xff]
  %514 = vset.pattern.permute.xlu0 2
  %515 = vperm.xlu0 %514, %v511
  %v516 = vpop.permute.xlu0 %515
  %519 = vset.pattern.permute.xlu0 2
  %520 = vperm.xlu0 %519, %v512
  %v521 = vpop.permute.xlu0 %520
  %v523 = vmin.f32 %v240, %v516
  %v524 = vmin.f32 %v244, %v516
  %v525 = vmin.f32 %v240, %v521
  %v526 = vmin.f32 %v244, %v521
  %527 = vset.pattern.permute.xlu0 0
  %528 = vperm.xlu0 %527, %v511
  %v529 = vpop.permute.xlu0 %528
  %531 = vset.pattern.permute.xlu0 0
  %532 = vperm.xlu0 %531, %v512
  %v533 = vpop.permute.xlu0 %532
  %v535 = vmax.f32 %v262, %v529
  %v536 = vmax.f32 %v266, %v529
  %v537 = vmax.f32 %v262, %v533
  %v538 = vmax.f32 %v266, %v533
  %v539 = vsub.f32 %v523, %v535
  %v540 = vsub.f32 %v524, %v536
  %v541 = vsub.f32 %v525, %v537
  %v542 = vsub.f32 %v526, %v538
  %v543 = vmax.f32 %v539, 0.0
  %v544 = vmax.f32 %v540, 0.0
  %v545 = vmax.f32 %v541, 0.0
  %v546 = vmax.f32 %v542, 0.0
  %547 = vset.pattern.permute.xlu0 3
  %548 = vperm.xlu0 %547, %v511
  %v549 = vpop.permute.xlu0 %548
  %551 = vset.pattern.permute.xlu0 3
  %552 = vperm.xlu0 %551, %v512
  %v553 = vpop.permute.xlu0 %552
  %v555 = vmin.f32 %v290, %v549
  %v556 = vmin.f32 %v294, %v549
  %v557 = vmin.f32 %v290, %v553
  %v558 = vmin.f32 %v294, %v553
  %559 = vset.pattern.permute.xlu0 1
  %560 = vperm.xlu0 %559, %v511
  %v561 = vpop.permute.xlu0 %560
  %563 = vset.pattern.permute.xlu0 1
  %564 = vperm.xlu0 %563, %v512
  %v565 = vpop.permute.xlu0 %564
  %v567 = vmax.f32 %v310, %v561
  %v568 = vmax.f32 %v314, %v561
  %v569 = vmax.f32 %v310, %v565
  %v570 = vmax.f32 %v314, %v565
  %v571 = vsub.f32 %v555, %v567
  %v572 = vsub.f32 %v556, %v568
  %v573 = vsub.f32 %v557, %v569
  %v574 = vsub.f32 %v558, %v570
  %v575 = vmax.f32 %v571, 0.0
  %v576 = vmax.f32 %v572, 0.0
  %v577 = vmax.f32 %v573, 0.0
  %v578 = vmax.f32 %v574, 0.0
  %v579 = vmul.f32 %v543, %v575
  %v580 = vmul.f32 %v544, %v576
  %v581 = vmul.f32 %v545, %v577
  %v582 = vmul.f32 %v546, %v578
  %583 = vrot.lane.b32.xlu0 %v511, 2
  %v584 = vpop.permute.xlu0 %583
  %585 = vrot.lane.b32.xlu0 %v512, 2
  %v586 = vpop.permute.xlu0 %585
  %v589 = vsub.f32 %v511, %v584
  %v590 = vsub.f32 %v512, %v586
  %593 = vrot.lane.b32.xlu0 %v589, 127
  %v594 = vpop.permute.xlu0 %593
  %595 = vrot.lane.b32.xlu0 %v590, 127
  %v596 = vpop.permute.xlu0 %595
  %v599 = vmul.f32 %v589, %v594
  %v600 = vmul.f32 %v590, %v596
  %602 = vset.pattern.permute.xlu0 2
  %603 = vperm.xlu0 %602, %v599
  %v604 = vpop.permute.xlu0 %603
  %607 = vset.pattern.permute.xlu0 2
  %608 = vperm.xlu0 %607, %v600
  %v609 = vpop.permute.xlu0 %608
  %v611 = vadd.f32 %v360, %v604
  %v612 = vadd.f32 %v364, %v604
  %v613 = vadd.f32 %v360, %v609
  %v614 = vadd.f32 %v364, %v609
  %v615 = vsub.f32 %v611, %v579
  %v616 = vsub.f32 %v612, %v580
  %v617 = vsub.f32 %v613, %v581
  %v618 = vsub.f32 %v614, %v582
  %v619 = vrcp.pop %v615
  %v620 = vrcp.pop %v616
  %v621 = vrcp.pop %v617
  %v622 = vrcp.pop %v618
  %v623 = vmul.f32 %v579, %v619
  %v624 = vmul.f32 %v580, %v620
  %v625 = vmul.f32 %v581, %v621
  %v626 = vmul.f32 %v582, %v622
  %v627 = vmax.f32 %v507, %v623
  %v628 = vmax.f32 %v508, %v624
  %v629 = vmax.f32 %v509, %v625
  %v630 = vmax.f32 %v510, %v626
  %v631 = vld [vmem:[%s2 + $0x30] sm:$0xff]
  %v632 = vld [vmem:[%s2 + $0x38] sm:$0xff]
  %634 = vset.pattern.permute.xlu0 2
  %635 = vperm.xlu0 %634, %v631
  %v636 = vpop.permute.xlu0 %635
  %639 = vset.pattern.permute.xlu0 2
  %640 = vperm.xlu0 %639, %v632
  %v641 = vpop.permute.xlu0 %640
  %v643 = vmin.f32 %v240, %v636
  %v644 = vmin.f32 %v244, %v636
  %v645 = vmin.f32 %v240, %v641
  %v646 = vmin.f32 %v244, %v641
  %647 = vset.pattern.permute.xlu0 0
  %648 = vperm.xlu0 %647, %v631
  %v649 = vpop.permute.xlu0 %648
  %651 = vset.pattern.permute.xlu0 0
  %652 = vperm.xlu0 %651, %v632
  %v653 = vpop.permute.xlu0 %652
  %v655 = vmax.f32 %v262, %v649
  %v656 = vmax.f32 %v266, %v649
  %v657 = vmax.f32 %v262, %v653
  %v658 = vmax.f32 %v266, %v653
  %v659 = vsub.f32 %v643, %v655
  %v660 = vsub.f32 %v644, %v656
  %v661 = vsub.f32 %v645, %v657
  %v662 = vsub.f32 %v646, %v658
  %v663 = vmax.f32 %v659, 0.0
  %v664 = vmax.f32 %v660, 0.0
  %v665 = vmax.f32 %v661, 0.0
  %v666 = vmax.f32 %v662, 0.0
  %667 = vset.pattern.permute.xlu0 3
  %668 = vperm.xlu0 %667, %v631
  %v669 = vpop.permute.xlu0 %668
  %671 = vset.pattern.permute.xlu0 3
  %672 = vperm.xlu0 %671, %v632
  %v673 = vpop.permute.xlu0 %672
  %v675 = vmin.f32 %v290, %v669
  %v676 = vmin.f32 %v294, %v669
  %v677 = vmin.f32 %v290, %v673
  %v678 = vmin.f32 %v294, %v673
  %679 = vset.pattern.permute.xlu0 1
  %680 = vperm.xlu0 %679, %v631
  %v681 = vpop.permute.xlu0 %680
  %683 = vset.pattern.permute.xlu0 1
  %684 = vperm.xlu0 %683, %v632
  %v685 = vpop.permute.xlu0 %684
  %v687 = vmax.f32 %v310, %v681
  %v688 = vmax.f32 %v314, %v681
  %v689 = vmax.f32 %v310, %v685
  %v690 = vmax.f32 %v314, %v685
  %v691 = vsub.f32 %v675, %v687
  %v692 = vsub.f32 %v676, %v688
  %v693 = vsub.f32 %v677, %v689
  %v694 = vsub.f32 %v678, %v690
  %v695 = vmax.f32 %v691, 0.0
  %v696 = vmax.f32 %v692, 0.0
  %v697 = vmax.f32 %v693, 0.0
  %v698 = vmax.f32 %v694, 0.0
  %v699 = vmul.f32 %v663, %v695
  %v700 = vmul.f32 %v664, %v696
  %v701 = vmul.f32 %v665, %v697
  %v702 = vmul.f32 %v666, %v698
  %703 = vrot.lane.b32.xlu0 %v631, 2
  %v704 = vpop.permute.xlu0 %703
  %705 = vrot.lane.b32.xlu0 %v632, 2
  %v706 = vpop.permute.xlu0 %705
  %v709 = vsub.f32 %v631, %v704
  %v710 = vsub.f32 %v632, %v706
  %713 = vrot.lane.b32.xlu0 %v709, 127
  %v714 = vpop.permute.xlu0 %713
  %715 = vrot.lane.b32.xlu0 %v710, 127
  %v716 = vpop.permute.xlu0 %715
  %v719 = vmul.f32 %v709, %v714
  %v720 = vmul.f32 %v710, %v716
  %722 = vset.pattern.permute.xlu0 2
  %723 = vperm.xlu0 %722, %v719
  %v724 = vpop.permute.xlu0 %723
  %727 = vset.pattern.permute.xlu0 2
  %728 = vperm.xlu0 %727, %v720
  %v729 = vpop.permute.xlu0 %728
  %v731 = vadd.f32 %v360, %v724
  %v732 = vadd.f32 %v364, %v724
  %v733 = vadd.f32 %v360, %v729
  %v734 = vadd.f32 %v364, %v729
  %v735 = vsub.f32 %v731, %v699
  %v736 = vsub.f32 %v732, %v700
  %v737 = vsub.f32 %v733, %v701
  %v738 = vsub.f32 %v734, %v702
  %v739 = vrcp.pop %v735
  %v740 = vrcp.pop %v736
  %v741 = vrcp.pop %v737
  %v742 = vrcp.pop %v738
  %v743 = vmul.f32 %v699, %v739
  %v744 = vmul.f32 %v700, %v740
  %v745 = vmul.f32 %v701, %v741
  %v746 = vmul.f32 %v702, %v742
  %v747 = vmax.f32 %v627, %v743
  %v748 = vmax.f32 %v628, %v744
  %v749 = vmax.f32 %v629, %v745
  %v750 = vmax.f32 %v630, %v746
  %v751 = vld [vmem:[%s2 + $0x40] sm:$0xff]
  %v752 = vld [vmem:[%s2 + $0x48] sm:$0xff]
  %754 = vset.pattern.permute.xlu0 2
  %755 = vperm.xlu0 %754, %v751
  %v756 = vpop.permute.xlu0 %755
  %759 = vset.pattern.permute.xlu0 2
  %760 = vperm.xlu0 %759, %v752
  %v761 = vpop.permute.xlu0 %760
  %v763 = vmin.f32 %v240, %v756
  %v764 = vmin.f32 %v244, %v756
  %v765 = vmin.f32 %v240, %v761
  %v766 = vmin.f32 %v244, %v761
  %767 = vset.pattern.permute.xlu0 0
  %768 = vperm.xlu0 %767, %v751
  %v769 = vpop.permute.xlu0 %768
  %771 = vset.pattern.permute.xlu0 0
  %772 = vperm.xlu0 %771, %v752
  %v773 = vpop.permute.xlu0 %772
  %v775 = vmax.f32 %v262, %v769
  %v776 = vmax.f32 %v266, %v769
  %v777 = vmax.f32 %v262, %v773
  %v778 = vmax.f32 %v266, %v773
  %v779 = vsub.f32 %v763, %v775
  %v780 = vsub.f32 %v764, %v776
  %v781 = vsub.f32 %v765, %v777
  %v782 = vsub.f32 %v766, %v778
  %v783 = vmax.f32 %v779, 0.0
  %v784 = vmax.f32 %v780, 0.0
  %v785 = vmax.f32 %v781, 0.0
  %v786 = vmax.f32 %v782, 0.0
  %787 = vset.pattern.permute.xlu0 3
  %788 = vperm.xlu0 %787, %v751
  %v789 = vpop.permute.xlu0 %788
  %791 = vset.pattern.permute.xlu0 3
  %792 = vperm.xlu0 %791, %v752
  %v793 = vpop.permute.xlu0 %792
  %v795 = vmin.f32 %v290, %v789
  %v796 = vmin.f32 %v294, %v789
  %v797 = vmin.f32 %v290, %v793
  %v798 = vmin.f32 %v294, %v793
  %799 = vset.pattern.permute.xlu0 1
  %800 = vperm.xlu0 %799, %v751
  %v801 = vpop.permute.xlu0 %800
  %803 = vset.pattern.permute.xlu0 1
  %804 = vperm.xlu0 %803, %v752
  %v805 = vpop.permute.xlu0 %804
  %v807 = vmax.f32 %v310, %v801
  %v808 = vmax.f32 %v314, %v801
  %v809 = vmax.f32 %v310, %v805
  %v810 = vmax.f32 %v314, %v805
  %v811 = vsub.f32 %v795, %v807
  %v812 = vsub.f32 %v796, %v808
  %v813 = vsub.f32 %v797, %v809
  %v814 = vsub.f32 %v798, %v810
  %v815 = vmax.f32 %v811, 0.0
  %v816 = vmax.f32 %v812, 0.0
  %v817 = vmax.f32 %v813, 0.0
  %v818 = vmax.f32 %v814, 0.0
  %v819 = vmul.f32 %v783, %v815
  %v820 = vmul.f32 %v784, %v816
  %v821 = vmul.f32 %v785, %v817
  %v822 = vmul.f32 %v786, %v818
  %823 = vrot.lane.b32.xlu0 %v751, 2
  %v824 = vpop.permute.xlu0 %823
  %825 = vrot.lane.b32.xlu0 %v752, 2
  %v826 = vpop.permute.xlu0 %825
  %v829 = vsub.f32 %v751, %v824
  %v830 = vsub.f32 %v752, %v826
  %833 = vrot.lane.b32.xlu0 %v829, 127
  %v834 = vpop.permute.xlu0 %833
  %835 = vrot.lane.b32.xlu0 %v830, 127
  %v836 = vpop.permute.xlu0 %835
  %v839 = vmul.f32 %v829, %v834
  %v840 = vmul.f32 %v830, %v836
  %842 = vset.pattern.permute.xlu0 2
  %843 = vperm.xlu0 %842, %v839
  %v844 = vpop.permute.xlu0 %843
  %847 = vset.pattern.permute.xlu0 2
  %848 = vperm.xlu0 %847, %v840
  %v849 = vpop.permute.xlu0 %848
  %v851 = vadd.f32 %v360, %v844
  %v852 = vadd.f32 %v364, %v844
  %v853 = vadd.f32 %v360, %v849
  %v854 = vadd.f32 %v364, %v849
  %v855 = vsub.f32 %v851, %v819
  %v856 = vsub.f32 %v852, %v820
  %v857 = vsub.f32 %v853, %v821
  %v858 = vsub.f32 %v854, %v822
  %v859 = vrcp.pop %v855
  %v860 = vrcp.pop %v856
  %v861 = vrcp.pop %v857
  %v862 = vrcp.pop %v858
  %v863 = vmul.f32 %v819, %v859
  %v864 = vmul.f32 %v820, %v860
  %v865 = vmul.f32 %v821, %v861
  %v866 = vmul.f32 %v822, %v862
  %v867 = vmax.f32 %v747, %v863
  %v868 = vmax.f32 %v748, %v864
  %v869 = vmax.f32 %v749, %v865
  %v870 = vmax.f32 %v750, %v866
  %v871 = vld [vmem:[%s2 + $0x50] sm:$0xff]
  %v872 = vld [vmem:[%s2 + $0x58] sm:$0xff]
  %874 = vset.pattern.permute.xlu0 2
  %875 = vperm.xlu0 %874, %v871
  %v876 = vpop.permute.xlu0 %875
  %879 = vset.pattern.permute.xlu0 2
  %880 = vperm.xlu0 %879, %v872
  %v881 = vpop.permute.xlu0 %880
  %v883 = vmin.f32 %v240, %v876
  %v884 = vmin.f32 %v244, %v876
  %v885 = vmin.f32 %v240, %v881
  %v886 = vmin.f32 %v244, %v881
  %887 = vset.pattern.permute.xlu0 0
  %888 = vperm.xlu0 %887, %v871
  %v889 = vpop.permute.xlu0 %888
  %891 = vset.pattern.permute.xlu0 0
  %892 = vperm.xlu0 %891, %v872
  %v893 = vpop.permute.xlu0 %892
  %v895 = vmax.f32 %v262, %v889
  %v896 = vmax.f32 %v266, %v889
  %v897 = vmax.f32 %v262, %v893
  %v898 = vmax.f32 %v266, %v893
  %v899 = vsub.f32 %v883, %v895
  %v900 = vsub.f32 %v884, %v896
  %v901 = vsub.f32 %v885, %v897
  %v902 = vsub.f32 %v886, %v898
  %v903 = vmax.f32 %v899, 0.0
  %v904 = vmax.f32 %v900, 0.0
  %v905 = vmax.f32 %v901, 0.0
  %v906 = vmax.f32 %v902, 0.0
  %907 = vset.pattern.permute.xlu0 3
  %908 = vperm.xlu0 %907, %v871
  %v909 = vpop.permute.xlu0 %908
  %911 = vset.pattern.permute.xlu0 3
  %912 = vperm.xlu0 %911, %v872
  %v913 = vpop.permute.xlu0 %912
  %v915 = vmin.f32 %v290, %v909
  %v916 = vmin.f32 %v294, %v909
  %v917 = vmin.f32 %v290, %v913
  %v918 = vmin.f32 %v294, %v913
  %919 = vset.pattern.permute.xlu0 1
  %920 = vperm.xlu0 %919, %v871
  %v921 = vpop.permute.xlu0 %920
  %923 = vset.pattern.permute.xlu0 1
  %924 = vperm.xlu0 %923, %v872
  %v925 = vpop.permute.xlu0 %924
  %v927 = vmax.f32 %v310, %v921
  %v928 = vmax.f32 %v314, %v921
  %v929 = vmax.f32 %v310, %v925
  %v930 = vmax.f32 %v314, %v925
  %v931 = vsub.f32 %v915, %v927
  %v932 = vsub.f32 %v916, %v928
  %v933 = vsub.f32 %v917, %v929
  %v934 = vsub.f32 %v918, %v930
  %v935 = vmax.f32 %v931, 0.0
  %v936 = vmax.f32 %v932, 0.0
  %v937 = vmax.f32 %v933, 0.0
  %v938 = vmax.f32 %v934, 0.0
  %v939 = vmul.f32 %v903, %v935
  %v940 = vmul.f32 %v904, %v936
  %v941 = vmul.f32 %v905, %v937
  %v942 = vmul.f32 %v906, %v938
  %943 = vrot.lane.b32.xlu0 %v871, 2
  %v944 = vpop.permute.xlu0 %943
  %945 = vrot.lane.b32.xlu0 %v872, 2
  %v946 = vpop.permute.xlu0 %945
  %v949 = vsub.f32 %v871, %v944
  %v950 = vsub.f32 %v872, %v946
  %953 = vrot.lane.b32.xlu0 %v949, 127
  %v954 = vpop.permute.xlu0 %953
  %955 = vrot.lane.b32.xlu0 %v950, 127
  %v956 = vpop.permute.xlu0 %955
  %v959 = vmul.f32 %v949, %v954
  %v960 = vmul.f32 %v950, %v956
  %962 = vset.pattern.permute.xlu0 2
  %963 = vperm.xlu0 %962, %v959
  %v964 = vpop.permute.xlu0 %963
  %967 = vset.pattern.permute.xlu0 2
  %968 = vperm.xlu0 %967, %v960
  %v969 = vpop.permute.xlu0 %968
  %v971 = vadd.f32 %v360, %v964
  %v972 = vadd.f32 %v364, %v964
  %v973 = vadd.f32 %v360, %v969
  %v974 = vadd.f32 %v364, %v969
  %v975 = vsub.f32 %v971, %v939
  %v976 = vsub.f32 %v972, %v940
  %v977 = vsub.f32 %v973, %v941
  %v978 = vsub.f32 %v974, %v942
  %v979 = vrcp.pop %v975
  %v980 = vrcp.pop %v976
  %v981 = vrcp.pop %v977
  %v982 = vrcp.pop %v978
  %v983 = vmul.f32 %v939, %v979
  %v984 = vmul.f32 %v940, %v980
  %v985 = vmul.f32 %v941, %v981
  %v986 = vmul.f32 %v942, %v982
  %v987 = vmax.f32 %v867, %v983
  %v988 = vmax.f32 %v868, %v984
  %v989 = vmax.f32 %v869, %v985
  %v990 = vmax.f32 %v870, %v986
  %v991 = vld [vmem:[%s2 + $0x60] sm:$0xff]
  %v992 = vld [vmem:[%s2 + $0x68] sm:$0xff]
  %994 = vset.pattern.permute.xlu0 2
  %995 = vperm.xlu0 %994, %v991
  %v996 = vpop.permute.xlu0 %995
  %999 = vset.pattern.permute.xlu0 2
  %1000 = vperm.xlu0 %999, %v992
  %v1001 = vpop.permute.xlu0 %1000
  %v1003 = vmin.f32 %v240, %v996
  %v1004 = vmin.f32 %v244, %v996
  %v1005 = vmin.f32 %v240, %v1001
  %v1006 = vmin.f32 %v244, %v1001
  %1007 = vset.pattern.permute.xlu0 0
  %1008 = vperm.xlu0 %1007, %v991
  %v1009 = vpop.permute.xlu0 %1008
  %1011 = vset.pattern.permute.xlu0 0
  %1012 = vperm.xlu0 %1011, %v992
  %v1013 = vpop.permute.xlu0 %1012
  %v1015 = vmax.f32 %v262, %v1009
  %v1016 = vmax.f32 %v266, %v1009
  %v1017 = vmax.f32 %v262, %v1013
  %v1018 = vmax.f32 %v266, %v1013
  %v1019 = vsub.f32 %v1003, %v1015
  %v1020 = vsub.f32 %v1004, %v1016
  %v1021 = vsub.f32 %v1005, %v1017
  %v1022 = vsub.f32 %v1006, %v1018
  %v1023 = vmax.f32 %v1019, 0.0
  %v1024 = vmax.f32 %v1020, 0.0
  %v1025 = vmax.f32 %v1021, 0.0
  %v1026 = vmax.f32 %v1022, 0.0
  %1027 = vset.pattern.permute.xlu0 3
  %1028 = vperm.xlu0 %1027, %v991
  %v1029 = vpop.permute.xlu0 %1028
  %1031 = vset.pattern.permute.xlu0 3
  %1032 = vperm.xlu0 %1031, %v992
  %v1033 = vpop.permute.xlu0 %1032
  %v1035 = vmin.f32 %v290, %v1029
  %v1036 = vmin.f32 %v294, %v1029
  %v1037 = vmin.f32 %v290, %v1033
  %v1038 = vmin.f32 %v294, %v1033
  %1039 = vset.pattern.permute.xlu0 1
  %1040 = vperm.xlu0 %1039, %v991
  %v1041 = vpop.permute.xlu0 %1040
  %1043 = vset.pattern.permute.xlu0 1
  %1044 = vperm.xlu0 %1043, %v992
  %v1045 = vpop.permute.xlu0 %1044
  %v1047 = vmax.f32 %v310, %v1041
  %v1048 = vmax.f32 %v314, %v1041
  %v1049 = vmax.f32 %v310, %v1045
  %v1050 = vmax.f32 %v314, %v1045
  %v1051 = vsub.f32 %v1035, %v1047
  %v1052 = vsub.f32 %v1036, %v1048
  %v1053 = vsub.f32 %v1037, %v1049
  %v1054 = vsub.f32 %v1038, %v1050
  %v1055 = vmax.f32 %v1051, 0.0
  %v1056 = vmax.f32 %v1052, 0.0
  %v1057 = vmax.f32 %v1053, 0.0
  %v1058 = vmax.f32 %v1054, 0.0
  %v1059 = vmul.f32 %v1023, %v1055
  %v1060 = vmul.f32 %v1024, %v1056
  %v1061 = vmul.f32 %v1025, %v1057
  %v1062 = vmul.f32 %v1026, %v1058
  %1063 = vrot.lane.b32.xlu0 %v991, 2
  %v1064 = vpop.permute.xlu0 %1063
  %1065 = vrot.lane.b32.xlu0 %v992, 2
  %v1066 = vpop.permute.xlu0 %1065
  %v1069 = vsub.f32 %v991, %v1064
  %v1070 = vsub.f32 %v992, %v1066
  %1073 = vrot.lane.b32.xlu0 %v1069, 127
  %v1074 = vpop.permute.xlu0 %1073
  %1075 = vrot.lane.b32.xlu0 %v1070, 127
  %v1076 = vpop.permute.xlu0 %1075
  %v1079 = vmul.f32 %v1069, %v1074
  %v1080 = vmul.f32 %v1070, %v1076
  %1082 = vset.pattern.permute.xlu0 2
  %1083 = vperm.xlu0 %1082, %v1079
  %v1084 = vpop.permute.xlu0 %1083
  %1087 = vset.pattern.permute.xlu0 2
  %1088 = vperm.xlu0 %1087, %v1080
  %v1089 = vpop.permute.xlu0 %1088
  %v1091 = vadd.f32 %v360, %v1084
  %v1092 = vadd.f32 %v364, %v1084
  %v1093 = vadd.f32 %v360, %v1089
  %v1094 = vadd.f32 %v364, %v1089
  %v1095 = vsub.f32 %v1091, %v1059
  %v1096 = vsub.f32 %v1092, %v1060
  %v1097 = vsub.f32 %v1093, %v1061
  %v1098 = vsub.f32 %v1094, %v1062
  %v1099 = vrcp.pop %v1095
  %v1100 = vrcp.pop %v1096
  %v1101 = vrcp.pop %v1097
  %v1102 = vrcp.pop %v1098
  %v1103 = vmul.f32 %v1059, %v1099
  %v1104 = vmul.f32 %v1060, %v1100
  %v1105 = vmul.f32 %v1061, %v1101
  %v1106 = vmul.f32 %v1062, %v1102
  %v1107 = vmax.f32 %v987, %v1103
  %v1108 = vmax.f32 %v988, %v1104
  %v1109 = vmax.f32 %v989, %v1105
  %v1110 = vmax.f32 %v990, %v1106
  %v1111 = vld [vmem:[%s2 + $0x70] sm:$0xff]
  %v1112 = vld [vmem:[%s2 + $0x78] sm:$0xff]
  %1114 = vset.pattern.permute.xlu0 2
  %1115 = vperm.xlu0 %1114, %v1111
  %v1116 = vpop.permute.xlu0 %1115
  %1119 = vset.pattern.permute.xlu0 2
  %1120 = vperm.xlu0 %1119, %v1112
  %v1121 = vpop.permute.xlu0 %1120
  %v1123 = vmin.f32 %v240, %v1116
  %v1124 = vmin.f32 %v244, %v1116
  %v1125 = vmin.f32 %v240, %v1121
  %v1126 = vmin.f32 %v244, %v1121
  %1127 = vset.pattern.permute.xlu0 0
  %1128 = vperm.xlu0 %1127, %v1111
  %v1129 = vpop.permute.xlu0 %1128
  %1131 = vset.pattern.permute.xlu0 0
  %1132 = vperm.xlu0 %1131, %v1112
  %v1133 = vpop.permute.xlu0 %1132
  %v1135 = vmax.f32 %v262, %v1129
  %v1136 = vmax.f32 %v266, %v1129
  %v1137 = vmax.f32 %v262, %v1133
  %v1138 = vmax.f32 %v266, %v1133
  %v1139 = vsub.f32 %v1123, %v1135
  %v1140 = vsub.f32 %v1124, %v1136
  %v1141 = vsub.f32 %v1125, %v1137
  %v1142 = vsub.f32 %v1126, %v1138
  %v1143 = vmax.f32 %v1139, 0.0
  %v1144 = vmax.f32 %v1140, 0.0
  %v1145 = vmax.f32 %v1141, 0.0
  %v1146 = vmax.f32 %v1142, 0.0
  %1147 = vset.pattern.permute.xlu0 3
  %1148 = vperm.xlu0 %1147, %v1111
  %v1149 = vpop.permute.xlu0 %1148
  %1151 = vset.pattern.permute.xlu0 3
  %1152 = vperm.xlu0 %1151, %v1112
  %v1153 = vpop.permute.xlu0 %1152
  %v1155 = vmin.f32 %v290, %v1149
  %v1156 = vmin.f32 %v294, %v1149
  %v1157 = vmin.f32 %v290, %v1153
  %v1158 = vmin.f32 %v294, %v1153
  %1159 = vset.pattern.permute.xlu0 1
  %1160 = vperm.xlu0 %1159, %v1111
  %v1161 = vpop.permute.xlu0 %1160
  %1163 = vset.pattern.permute.xlu0 1
  %1164 = vperm.xlu0 %1163, %v1112
  %v1165 = vpop.permute.xlu0 %1164
  %v1167 = vmax.f32 %v310, %v1161
  %v1168 = vmax.f32 %v314, %v1161
  %v1169 = vmax.f32 %v310, %v1165
  %v1170 = vmax.f32 %v314, %v1165
  %v1171 = vsub.f32 %v1155, %v1167
  %v1172 = vsub.f32 %v1156, %v1168
  %v1173 = vsub.f32 %v1157, %v1169
  %v1174 = vsub.f32 %v1158, %v1170
  %v1175 = vmax.f32 %v1171, 0.0
  %v1176 = vmax.f32 %v1172, 0.0
  %v1177 = vmax.f32 %v1173, 0.0
  %v1178 = vmax.f32 %v1174, 0.0
  %v1179 = vmul.f32 %v1143, %v1175
  %v1180 = vmul.f32 %v1144, %v1176
  %v1181 = vmul.f32 %v1145, %v1177
  %v1182 = vmul.f32 %v1146, %v1178
  %1183 = vrot.lane.b32.xlu0 %v1111, 2
  %v1184 = vpop.permute.xlu0 %1183
  %1185 = vrot.lane.b32.xlu0 %v1112, 2
  %v1186 = vpop.permute.xlu0 %1185
  %v1189 = vsub.f32 %v1111, %v1184
  %v1190 = vsub.f32 %v1112, %v1186
  %1193 = vrot.lane.b32.xlu0 %v1189, 127
  %v1194 = vpop.permute.xlu0 %1193
  %1195 = vrot.lane.b32.xlu0 %v1190, 127
  %v1196 = vpop.permute.xlu0 %1195
  %v1199 = vmul.f32 %v1189, %v1194
  %v1200 = vmul.f32 %v1190, %v1196
  %1202 = vset.pattern.permute.xlu0 2
  %1203 = vperm.xlu0 %1202, %v1199
  %v1204 = vpop.permute.xlu0 %1203
  %1207 = vset.pattern.permute.xlu0 2
  %1208 = vperm.xlu0 %1207, %v1200
  %v1209 = vpop.permute.xlu0 %1208
  %v1211 = vadd.f32 %v360, %v1204
  %v1212 = vadd.f32 %v364, %v1204
  %v1213 = vadd.f32 %v360, %v1209
  %v1214 = vadd.f32 %v364, %v1209
  %v1215 = vsub.f32 %v1211, %v1179
  %v1216 = vsub.f32 %v1212, %v1180
  %v1217 = vsub.f32 %v1213, %v1181
  %v1218 = vsub.f32 %v1214, %v1182
  %v1219 = vrcp.pop %v1215
  %v1220 = vrcp.pop %v1216
  %v1221 = vrcp.pop %v1217
  %v1222 = vrcp.pop %v1218
  %v1223 = vmul.f32 %v1179, %v1219
  %v1224 = vmul.f32 %v1180, %v1220
  %v1225 = vmul.f32 %v1181, %v1221
  %v1226 = vmul.f32 %v1182, %v1222
  %v1227 = vmax.f32 %v1107, %v1223
  %v1228 = vmax.f32 %v1108, %v1224
  %v1229 = vmax.f32 %v1109, %v1225
  %v1230 = vmax.f32 %v1110, %v1226
  %v1231 = vld [vmem:[%s2 + $0x80] sm:$0xff]
  %v1232 = vld [vmem:[%s2 + $0x88] sm:$0xff]
  %1234 = vset.pattern.permute.xlu0 2
  %1235 = vperm.xlu0 %1234, %v1231
  %v1236 = vpop.permute.xlu0 %1235
  %1239 = vset.pattern.permute.xlu0 2
  %1240 = vperm.xlu0 %1239, %v1232
  %v1241 = vpop.permute.xlu0 %1240
  %v1243 = vmin.f32 %v240, %v1236
  %v1244 = vmin.f32 %v244, %v1236
  %v1245 = vmin.f32 %v240, %v1241
  %v1246 = vmin.f32 %v244, %v1241
  %1247 = vset.pattern.permute.xlu0 0
  %1248 = vperm.xlu0 %1247, %v1231
  %v1249 = vpop.permute.xlu0 %1248
  %1251 = vset.pattern.permute.xlu0 0
  %1252 = vperm.xlu0 %1251, %v1232
  %v1253 = vpop.permute.xlu0 %1252
  %v1255 = vmax.f32 %v262, %v1249
  %v1256 = vmax.f32 %v266, %v1249
  %v1257 = vmax.f32 %v262, %v1253
  %v1258 = vmax.f32 %v266, %v1253
  %v1259 = vsub.f32 %v1243, %v1255
  %v1260 = vsub.f32 %v1244, %v1256
  %v1261 = vsub.f32 %v1245, %v1257
  %v1262 = vsub.f32 %v1246, %v1258
  %v1263 = vmax.f32 %v1259, 0.0
  %v1264 = vmax.f32 %v1260, 0.0
  %v1265 = vmax.f32 %v1261, 0.0
  %v1266 = vmax.f32 %v1262, 0.0
  %1267 = vset.pattern.permute.xlu0 3
  %1268 = vperm.xlu0 %1267, %v1231
  %v1269 = vpop.permute.xlu0 %1268
  %1271 = vset.pattern.permute.xlu0 3
  %1272 = vperm.xlu0 %1271, %v1232
  %v1273 = vpop.permute.xlu0 %1272
  %v1275 = vmin.f32 %v290, %v1269
  %v1276 = vmin.f32 %v294, %v1269
  %v1277 = vmin.f32 %v290, %v1273
  %v1278 = vmin.f32 %v294, %v1273
  %1279 = vset.pattern.permute.xlu0 1
  %1280 = vperm.xlu0 %1279, %v1231
  %v1281 = vpop.permute.xlu0 %1280
  %1283 = vset.pattern.permute.xlu0 1
  %1284 = vperm.xlu0 %1283, %v1232
  %v1285 = vpop.permute.xlu0 %1284
  %v1287 = vmax.f32 %v310, %v1281
  %v1288 = vmax.f32 %v314, %v1281
  %v1289 = vmax.f32 %v310, %v1285
  %v1290 = vmax.f32 %v314, %v1285
  %v1291 = vsub.f32 %v1275, %v1287
  %v1292 = vsub.f32 %v1276, %v1288
  %v1293 = vsub.f32 %v1277, %v1289
  %v1294 = vsub.f32 %v1278, %v1290
  %v1295 = vmax.f32 %v1291, 0.0
  %v1296 = vmax.f32 %v1292, 0.0
  %v1297 = vmax.f32 %v1293, 0.0
  %v1298 = vmax.f32 %v1294, 0.0
  %v1299 = vmul.f32 %v1263, %v1295
  %v1300 = vmul.f32 %v1264, %v1296
  %v1301 = vmul.f32 %v1265, %v1297
  %v1302 = vmul.f32 %v1266, %v1298
  %1303 = vrot.lane.b32.xlu0 %v1231, 2
  %v1304 = vpop.permute.xlu0 %1303
  %1305 = vrot.lane.b32.xlu0 %v1232, 2
  %v1306 = vpop.permute.xlu0 %1305
  %v1309 = vsub.f32 %v1231, %v1304
  %v1310 = vsub.f32 %v1232, %v1306
  %1313 = vrot.lane.b32.xlu0 %v1309, 127
  %v1314 = vpop.permute.xlu0 %1313
  %1315 = vrot.lane.b32.xlu0 %v1310, 127
  %v1316 = vpop.permute.xlu0 %1315
  %v1319 = vmul.f32 %v1309, %v1314
  %v1320 = vmul.f32 %v1310, %v1316
  %1322 = vset.pattern.permute.xlu0 2
  %1323 = vperm.xlu0 %1322, %v1319
  %v1324 = vpop.permute.xlu0 %1323
  %1327 = vset.pattern.permute.xlu0 2
  %1328 = vperm.xlu0 %1327, %v1320
  %v1329 = vpop.permute.xlu0 %1328
  %v1331 = vadd.f32 %v360, %v1324
  %v1332 = vadd.f32 %v364, %v1324
  %v1333 = vadd.f32 %v360, %v1329
  %v1334 = vadd.f32 %v364, %v1329
  %v1335 = vsub.f32 %v1331, %v1299
  %v1336 = vsub.f32 %v1332, %v1300
  %v1337 = vsub.f32 %v1333, %v1301
  %v1338 = vsub.f32 %v1334, %v1302
  %v1339 = vrcp.pop %v1335
  %v1340 = vrcp.pop %v1336
  %v1341 = vrcp.pop %v1337
  %v1342 = vrcp.pop %v1338
  %v1343 = vmul.f32 %v1299, %v1339
  %v1344 = vmul.f32 %v1300, %v1340
  %v1345 = vmul.f32 %v1301, %v1341
  %v1346 = vmul.f32 %v1302, %v1342
  %v1347 = vmax.f32 %v1227, %v1343
  %v1348 = vmax.f32 %v1228, %v1344
  %v1349 = vmax.f32 %v1229, %v1345
  %v1350 = vmax.f32 %v1230, %v1346
  %v1351 = vld [vmem:[%s2 + $0x90] sm:$0xff]
  %v1352 = vld [vmem:[%s2 + $0x98] sm:$0xff]
  %1354 = vset.pattern.permute.xlu0 2
  %1355 = vperm.xlu0 %1354, %v1351
  %v1356 = vpop.permute.xlu0 %1355
  %1359 = vset.pattern.permute.xlu0 2
  %1360 = vperm.xlu0 %1359, %v1352
  %v1361 = vpop.permute.xlu0 %1360
  %v1363 = vmin.f32 %v240, %v1356
  %v1364 = vmin.f32 %v244, %v1356
  %v1365 = vmin.f32 %v240, %v1361
  %v1366 = vmin.f32 %v244, %v1361
  %1367 = vset.pattern.permute.xlu0 0
  %1368 = vperm.xlu0 %1367, %v1351
  %v1369 = vpop.permute.xlu0 %1368
  %1371 = vset.pattern.permute.xlu0 0
  %1372 = vperm.xlu0 %1371, %v1352
  %v1373 = vpop.permute.xlu0 %1372
  %v1375 = vmax.f32 %v262, %v1369
  %v1376 = vmax.f32 %v266, %v1369
  %v1377 = vmax.f32 %v262, %v1373
  %v1378 = vmax.f32 %v266, %v1373
  %v1379 = vsub.f32 %v1363, %v1375
  %v1380 = vsub.f32 %v1364, %v1376
  %v1381 = vsub.f32 %v1365, %v1377
  %v1382 = vsub.f32 %v1366, %v1378
  %v1383 = vmax.f32 %v1379, 0.0
  %v1384 = vmax.f32 %v1380, 0.0
  %v1385 = vmax.f32 %v1381, 0.0
  %v1386 = vmax.f32 %v1382, 0.0
  %1387 = vset.pattern.permute.xlu0 3
  %1388 = vperm.xlu0 %1387, %v1351
  %v1389 = vpop.permute.xlu0 %1388
  %1391 = vset.pattern.permute.xlu0 3
  %1392 = vperm.xlu0 %1391, %v1352
  %v1393 = vpop.permute.xlu0 %1392
  %v1395 = vmin.f32 %v290, %v1389
  %v1396 = vmin.f32 %v294, %v1389
  %v1397 = vmin.f32 %v290, %v1393
  %v1398 = vmin.f32 %v294, %v1393
  %1399 = vset.pattern.permute.xlu0 1
  %1400 = vperm.xlu0 %1399, %v1351
  %v1401 = vpop.permute.xlu0 %1400
  %1403 = vset.pattern.permute.xlu0 1
  %1404 = vperm.xlu0 %1403, %v1352
  %v1405 = vpop.permute.xlu0 %1404
  %v1407 = vmax.f32 %v310, %v1401
  %v1408 = vmax.f32 %v314, %v1401
  %v1409 = vmax.f32 %v310, %v1405
  %v1410 = vmax.f32 %v314, %v1405
  %v1411 = vsub.f32 %v1395, %v1407
  %v1412 = vsub.f32 %v1396, %v1408
  %v1413 = vsub.f32 %v1397, %v1409
  %v1414 = vsub.f32 %v1398, %v1410
  %v1415 = vmax.f32 %v1411, 0.0
  %v1416 = vmax.f32 %v1412, 0.0
  %v1417 = vmax.f32 %v1413, 0.0
  %v1418 = vmax.f32 %v1414, 0.0
  %v1419 = vmul.f32 %v1383, %v1415
  %v1420 = vmul.f32 %v1384, %v1416
  %v1421 = vmul.f32 %v1385, %v1417
  %v1422 = vmul.f32 %v1386, %v1418
  %1423 = vrot.lane.b32.xlu0 %v1351, 2
  %v1424 = vpop.permute.xlu0 %1423
  %1425 = vrot.lane.b32.xlu0 %v1352, 2
  %v1426 = vpop.permute.xlu0 %1425
  %v1429 = vsub.f32 %v1351, %v1424
  %v1430 = vsub.f32 %v1352, %v1426
  %1433 = vrot.lane.b32.xlu0 %v1429, 127
  %v1434 = vpop.permute.xlu0 %1433
  %1435 = vrot.lane.b32.xlu0 %v1430, 127
  %v1436 = vpop.permute.xlu0 %1435
  %v1439 = vmul.f32 %v1429, %v1434
  %v1440 = vmul.f32 %v1430, %v1436
  %1442 = vset.pattern.permute.xlu0 2
  %1443 = vperm.xlu0 %1442, %v1439
  %v1444 = vpop.permute.xlu0 %1443
  %1447 = vset.pattern.permute.xlu0 2
  %1448 = vperm.xlu0 %1447, %v1440
  %v1449 = vpop.permute.xlu0 %1448
  %v1451 = vadd.f32 %v360, %v1444
  %v1452 = vadd.f32 %v364, %v1444
  %v1453 = vadd.f32 %v360, %v1449
  %v1454 = vadd.f32 %v364, %v1449
  %v1455 = vsub.f32 %v1451, %v1419
  %v1456 = vsub.f32 %v1452, %v1420
  %v1457 = vsub.f32 %v1453, %v1421
  %v1458 = vsub.f32 %v1454, %v1422
  %v1459 = vrcp.pop %v1455
  %v1460 = vrcp.pop %v1456
  %v1461 = vrcp.pop %v1457
  %v1462 = vrcp.pop %v1458
  %v1463 = vmul.f32 %v1419, %v1459
  %v1464 = vmul.f32 %v1420, %v1460
  %v1465 = vmul.f32 %v1421, %v1461
  %v1466 = vmul.f32 %v1422, %v1462
  %v1467 = vmax.f32 %v1347, %v1463
  %v1468 = vmax.f32 %v1348, %v1464
  %v1469 = vmax.f32 %v1349, %v1465
  %v1470 = vmax.f32 %v1350, %v1466
  %v1471 = vld [vmem:[%s2 + $0xa0] sm:$0xff]
  %v1472 = vld [vmem:[%s2 + $0xa8] sm:$0xff]
  %1474 = vset.pattern.permute.xlu0 2
  %1475 = vperm.xlu0 %1474, %v1471
  %v1476 = vpop.permute.xlu0 %1475
  %1479 = vset.pattern.permute.xlu0 2
  %1480 = vperm.xlu0 %1479, %v1472
  %v1481 = vpop.permute.xlu0 %1480
  %v1483 = vmin.f32 %v240, %v1476
  %v1484 = vmin.f32 %v244, %v1476
  %v1485 = vmin.f32 %v240, %v1481
  %v1486 = vmin.f32 %v244, %v1481
  %1487 = vset.pattern.permute.xlu0 0
  %1488 = vperm.xlu0 %1487, %v1471
  %v1489 = vpop.permute.xlu0 %1488
  %1491 = vset.pattern.permute.xlu0 0
  %1492 = vperm.xlu0 %1491, %v1472
  %v1493 = vpop.permute.xlu0 %1492
  %v1495 = vmax.f32 %v262, %v1489
  %v1496 = vmax.f32 %v266, %v1489
  %v1497 = vmax.f32 %v262, %v1493
  %v1498 = vmax.f32 %v266, %v1493
  %v1499 = vsub.f32 %v1483, %v1495
  %v1500 = vsub.f32 %v1484, %v1496
  %v1501 = vsub.f32 %v1485, %v1497
  %v1502 = vsub.f32 %v1486, %v1498
  %v1503 = vmax.f32 %v1499, 0.0
  %v1504 = vmax.f32 %v1500, 0.0
  %v1505 = vmax.f32 %v1501, 0.0
  %v1506 = vmax.f32 %v1502, 0.0
  %1507 = vset.pattern.permute.xlu0 3
  %1508 = vperm.xlu0 %1507, %v1471
  %v1509 = vpop.permute.xlu0 %1508
  %1511 = vset.pattern.permute.xlu0 3
  %1512 = vperm.xlu0 %1511, %v1472
  %v1513 = vpop.permute.xlu0 %1512
  %v1515 = vmin.f32 %v290, %v1509
  %v1516 = vmin.f32 %v294, %v1509
  %v1517 = vmin.f32 %v290, %v1513
  %v1518 = vmin.f32 %v294, %v1513
  %1519 = vset.pattern.permute.xlu0 1
  %1520 = vperm.xlu0 %1519, %v1471
  %v1521 = vpop.permute.xlu0 %1520
  %1523 = vset.pattern.permute.xlu0 1
  %1524 = vperm.xlu0 %1523, %v1472
  %v1525 = vpop.permute.xlu0 %1524
  %v1527 = vmax.f32 %v310, %v1521
  %v1528 = vmax.f32 %v314, %v1521
  %v1529 = vmax.f32 %v310, %v1525
  %v1530 = vmax.f32 %v314, %v1525
  %v1531 = vsub.f32 %v1515, %v1527
  %v1532 = vsub.f32 %v1516, %v1528
  %v1533 = vsub.f32 %v1517, %v1529
  %v1534 = vsub.f32 %v1518, %v1530
  %v1535 = vmax.f32 %v1531, 0.0
  %v1536 = vmax.f32 %v1532, 0.0
  %v1537 = vmax.f32 %v1533, 0.0
  %v1538 = vmax.f32 %v1534, 0.0
  %v1539 = vmul.f32 %v1503, %v1535
  %v1540 = vmul.f32 %v1504, %v1536
  %v1541 = vmul.f32 %v1505, %v1537
  %v1542 = vmul.f32 %v1506, %v1538
  %1543 = vrot.lane.b32.xlu0 %v1471, 2
  %v1544 = vpop.permute.xlu0 %1543
  %1545 = vrot.lane.b32.xlu0 %v1472, 2
  %v1546 = vpop.permute.xlu0 %1545
  %v1549 = vsub.f32 %v1471, %v1544
  %v1550 = vsub.f32 %v1472, %v1546
  %1553 = vrot.lane.b32.xlu0 %v1549, 127
  %v1554 = vpop.permute.xlu0 %1553
  %1555 = vrot.lane.b32.xlu0 %v1550, 127
  %v1556 = vpop.permute.xlu0 %1555
  %v1559 = vmul.f32 %v1549, %v1554
  %v1560 = vmul.f32 %v1550, %v1556
  %1562 = vset.pattern.permute.xlu0 2
  %1563 = vperm.xlu0 %1562, %v1559
  %v1564 = vpop.permute.xlu0 %1563
  %1567 = vset.pattern.permute.xlu0 2
  %1568 = vperm.xlu0 %1567, %v1560
  %v1569 = vpop.permute.xlu0 %1568
  %v1571 = vadd.f32 %v360, %v1564
  %v1572 = vadd.f32 %v364, %v1564
  %v1573 = vadd.f32 %v360, %v1569
  %v1574 = vadd.f32 %v364, %v1569
  %v1575 = vsub.f32 %v1571, %v1539
  %v1576 = vsub.f32 %v1572, %v1540
  %v1577 = vsub.f32 %v1573, %v1541
  %v1578 = vsub.f32 %v1574, %v1542
  %v1579 = vrcp.pop %v1575
  %v1580 = vrcp.pop %v1576
  %v1581 = vrcp.pop %v1577
  %v1582 = vrcp.pop %v1578
  %v1583 = vmul.f32 %v1539, %v1579
  %v1584 = vmul.f32 %v1540, %v1580
  %v1585 = vmul.f32 %v1541, %v1581
  %v1586 = vmul.f32 %v1542, %v1582
  %v1587 = vmax.f32 %v1467, %v1583
  %v1588 = vmax.f32 %v1468, %v1584
  %v1589 = vmax.f32 %v1469, %v1585
  %v1590 = vmax.f32 %v1470, %v1586
  %v1591 = vld [vmem:[%s2 + $0xb0] sm:$0xff]
  %v1592 = vld [vmem:[%s2 + $0xb8] sm:$0xff]
  %1594 = vset.pattern.permute.xlu0 2
  %1595 = vperm.xlu0 %1594, %v1591
  %v1596 = vpop.permute.xlu0 %1595
  %1599 = vset.pattern.permute.xlu0 2
  %1600 = vperm.xlu0 %1599, %v1592
  %v1601 = vpop.permute.xlu0 %1600
  %v1603 = vmin.f32 %v240, %v1596
  %v1604 = vmin.f32 %v244, %v1596
  %v1605 = vmin.f32 %v240, %v1601
  %v1606 = vmin.f32 %v244, %v1601
  %1607 = vset.pattern.permute.xlu0 0
  %1608 = vperm.xlu0 %1607, %v1591
  %v1609 = vpop.permute.xlu0 %1608
  %1611 = vset.pattern.permute.xlu0 0
  %1612 = vperm.xlu0 %1611, %v1592
  %v1613 = vpop.permute.xlu0 %1612
  %v1615 = vmax.f32 %v262, %v1609
  %v1616 = vmax.f32 %v266, %v1609
  %v1617 = vmax.f32 %v262, %v1613
  %v1618 = vmax.f32 %v266, %v1613
  %v1619 = vsub.f32 %v1603, %v1615
  %v1620 = vsub.f32 %v1604, %v1616
  %v1621 = vsub.f32 %v1605, %v1617
  %v1622 = vsub.f32 %v1606, %v1618
  %v1623 = vmax.f32 %v1619, 0.0
  %v1624 = vmax.f32 %v1620, 0.0
  %v1625 = vmax.f32 %v1621, 0.0
  %v1626 = vmax.f32 %v1622, 0.0
  %1627 = vset.pattern.permute.xlu0 3
  %1628 = vperm.xlu0 %1627, %v1591
  %v1629 = vpop.permute.xlu0 %1628
  %1631 = vset.pattern.permute.xlu0 3
  %1632 = vperm.xlu0 %1631, %v1592
  %v1633 = vpop.permute.xlu0 %1632
  %v1635 = vmin.f32 %v290, %v1629
  %v1636 = vmin.f32 %v294, %v1629
  %v1637 = vmin.f32 %v290, %v1633
  %v1638 = vmin.f32 %v294, %v1633
  %1639 = vset.pattern.permute.xlu0 1
  %1640 = vperm.xlu0 %1639, %v1591
  %v1641 = vpop.permute.xlu0 %1640
  %1643 = vset.pattern.permute.xlu0 1
  %1644 = vperm.xlu0 %1643, %v1592
  %v1645 = vpop.permute.xlu0 %1644
  %v1647 = vmax.f32 %v310, %v1641
  %v1648 = vmax.f32 %v314, %v1641
  %v1649 = vmax.f32 %v310, %v1645
  %v1650 = vmax.f32 %v314, %v1645
  %v1651 = vsub.f32 %v1635, %v1647
  %v1652 = vsub.f32 %v1636, %v1648
  %v1653 = vsub.f32 %v1637, %v1649
  %v1654 = vsub.f32 %v1638, %v1650
  %v1655 = vmax.f32 %v1651, 0.0
  %v1656 = vmax.f32 %v1652, 0.0
  %v1657 = vmax.f32 %v1653, 0.0
  %v1658 = vmax.f32 %v1654, 0.0
  %v1659 = vmul.f32 %v1623, %v1655
  %v1660 = vmul.f32 %v1624, %v1656
  %v1661 = vmul.f32 %v1625, %v1657
  %v1662 = vmul.f32 %v1626, %v1658
  %1663 = vrot.lane.b32.xlu0 %v1591, 2
  %v1664 = vpop.permute.xlu0 %1663
  %1665 = vrot.lane.b32.xlu0 %v1592, 2
  %v1666 = vpop.permute.xlu0 %1665
  %v1669 = vsub.f32 %v1591, %v1664
  %v1670 = vsub.f32 %v1592, %v1666
  %1673 = vrot.lane.b32.xlu0 %v1669, 127
  %v1674 = vpop.permute.xlu0 %1673
  %1675 = vrot.lane.b32.xlu0 %v1670, 127
  %v1676 = vpop.permute.xlu0 %1675
  %v1679 = vmul.f32 %v1669, %v1674
  %v1680 = vmul.f32 %v1670, %v1676
  %1682 = vset.pattern.permute.xlu0 2
  %1683 = vperm.xlu0 %1682, %v1679
  %v1684 = vpop.permute.xlu0 %1683
  %1687 = vset.pattern.permute.xlu0 2
  %1688 = vperm.xlu0 %1687, %v1680
  %v1689 = vpop.permute.xlu0 %1688
  %v1691 = vadd.f32 %v360, %v1684
  %v1692 = vadd.f32 %v364, %v1684
  %v1693 = vadd.f32 %v360, %v1689
  %v1694 = vadd.f32 %v364, %v1689
  %v1695 = vsub.f32 %v1691, %v1659
  %v1696 = vsub.f32 %v1692, %v1660
  %v1697 = vsub.f32 %v1693, %v1661
  %v1698 = vsub.f32 %v1694, %v1662
  %v1699 = vrcp.pop %v1695
  %v1700 = vrcp.pop %v1696
  %v1701 = vrcp.pop %v1697
  %v1702 = vrcp.pop %v1698
  %v1703 = vmul.f32 %v1659, %v1699
  %v1704 = vmul.f32 %v1660, %v1700
  %v1705 = vmul.f32 %v1661, %v1701
  %v1706 = vmul.f32 %v1662, %v1702
  %v1707 = vmax.f32 %v1587, %v1703
  %v1708 = vmax.f32 %v1588, %v1704
  %v1709 = vmax.f32 %v1589, %v1705
  %v1710 = vmax.f32 %v1590, %v1706
  %v1711 = vmax.f32 %v1707, %v1709
  %v1712 = vrot.slane %v1711, 4
  %v1713 = vmax.f32 %v1711, %v1712
  %v1714 = vrot.slane %v1713, 2
  %v1715 = vmax.f32 %v1713, %v1714
  %v1716 = vrot.slane %v1715, 1
  %v1717 = vmax.f32 %v1715, %v1716
  %vm1718 = vcmask 523264
  %v1719 = vsel %vm1718, %v1708, -inf
  %v1720 = vsel %vm1718, %v1710, -inf
  %v1721 = vmax.f32 %v1719, %v1720
  %v1722 = vrot.slane %v1721, 4
  %v1723 = vmax.f32 %v1721, %v1722
  %v1724 = vrot.slane %v1723, 2
  %v1725 = vmax.f32 %v1723, %v1724
  %v1726 = vrot.slane %v1725, 1
  %v1727 = vmax.f32 %v1725, %v1726
  %vm1728 = vcmp.lt.f32.partialorder %v1717, 0.5
  %vm1729 = vcmp.lt.f32.partialorder %v1727, 0.5
  %v1730 = vsel %vm1728, 1, 0
  %v1731 = vsel %vm1729, 1, 0
  %v1732 = vcvt.s32.f32 %v1730
  %v1733 = vcvt.s32.f32 %v1731
  %v1734 = vmul.f32 %v233, %v1732
  %v1735 = vmul.f32 %v234, %v1733
  %v1736 = vmul.f32 %v1734, 0.5
  %v1737 = vmul.f32 %v1735, 0.5
  %v1740 = vrot.slane %v189, 7
  %v1741 = vrot.slane %v190, 7
  %v1746 = vrot.slane %v217, 6
  %v1747 = vrot.slane %v218, 6
  %v1752 = vrot.slane %v229, 5
  %v1753 = vrot.slane %v230, 5
  %v1758 = vrot.slane %v1736, 4
  %v1759 = vrot.slane %v1737, 4
  %vm1762 = vcmask 1040384
  %v1763 = vsel %vm1762, %v161, %v1740
  %v1764 = vsel %vm1762, %v162, %v1741
  %v1765 = vsel %vm143, %v1763, %v1746
  %v1766 = vsel %vm143, %v1764, %v1747
  %vm1767 = vcmask 1042432
  %v1768 = vsel %vm1767, %v1765, %v1752
  %v1769 = vsel %vm1767, %v1766, %v1753
  %v1770 = vsel %vm201, %v1768, %v1758
  %v1771 = vsel %vm201, %v1769, %v1759
  %vm1772 = vcmask 1044480
  %v1773 = vsel %vm1772, %v1770, 0.0
  %v1774 = vsel %vm1772, %v1771, 0.0
  %v1775 = vsel %vm1718, %v1774, 0.0
  %v1776 = vadd.f32 %v1773, %v1775
  %1777 = vadd.xlane.f32.xlu0 %v1776
  %v1778 = vpop.xlane.xlu0 %1777
  %vm1779 = vcmask 7168
  %1780 = vst.msk [vmem:[%s3] sm:$0xff] %vm1779, %v1778
  %s1781 = scalar_lea.vmem %s0, 64
  %v1782 = vld [vmem:[%s1781] sm:$0xff]
  %v1783 = vld [vmem:[%s1781 + $0x8] sm:$0xff]
  %v1784 = vld [vmem:[%s1781 + $0x10] sm:$0x1]
  %v1785 = vld [vmem:[%s1781 + $0x18] sm:$0x1]
  %s1786 = scalar_lea.vmem %s0, 96
  %v1787 = vld [vmem:[%s1786] sm:$0xff]
  %v1788 = vld [vmem:[%s1786 + $0x8] sm:$0xff]
  %v1789 = vld [vmem:[%s1786 + $0x10] sm:$0x1]
  %v1790 = vld [vmem:[%s1786 + $0x18] sm:$0x1]
  %v1791 = vxor.u32 %v1782, 2147483648
  %v1792 = vxor.u32 %v1783, 2147483648
  %v1793 = vxor.u32 %v1784, 2147483648
  %v1794 = vxor.u32 %v1785, 2147483648
  %v1795 = vmul.f32 %v1791, 1.442695
  %v1796 = vpow.pop %v1795
  %v1797 = vmul.f32 %v1792, 1.442695
  %v1798 = vpow.pop %v1797
  %v1799 = vmul.f32 %v1793, 1.442695
  %v1800 = vpow.pop %v1799
  %v1801 = vmul.f32 %v1794, 1.442695
  %v1802 = vpow.pop %v1801
  %v1803 = vadd.f32 %v1796, 1.0
  %v1804 = vadd.f32 %v1798, 1.0
  %v1805 = vadd.f32 %v1800, 1.0
  %v1806 = vadd.f32 %v1802, 1.0
  %v1807 = vrcp.pop %v1803
  %v1808 = vmul.f32 1.0, %v1807
  %v1809 = vrcp.pop %v1804
  %v1810 = vmul.f32 1.0, %v1809
  %v1811 = vrcp.pop %v1805
  %v1812 = vmul.f32 1.0, %v1811
  %v1813 = vrcp.pop %v1806
  %v1814 = vmul.f32 1.0, %v1813
  %v1815 = vadd.f32 %v1808, %v50
  %v1816 = vadd.f32 %v1810, %v14
  %v1817 = vmul.f32 %v1815, 0.125
  %v1818 = vmul.f32 %v1816, 0.125
  %v1819 = vmul.f32 %v1782, 1.442695
  %v1820 = vpow.pop %v1819
  %v1821 = vmul.f32 %v1783, 1.442695
  %v1822 = vpow.pop %v1821
  %v1823 = vmul.f32 %v1820, %v61
  %v1824 = vmul.f32 %v1822, %v15
  %v1825 = vmul.f32 %v1823, 0.5
  %v1826 = vmul.f32 %v1824, 0.5
  %v1829 = vrot.slane %v1825, 2
  %v1830 = vrot.slane %v1826, 2
  %v1833 = vsub.f32 %v1817, %v1829
  %v1834 = vsub.f32 %v1818, %v1830
  %v1835 = vadd.f32 %v1817, %v1829
  %v1836 = vadd.f32 %v1818, %v1830
  %v1837 = vsub.f32 %v1835, %v1833
  %v1838 = vsub.f32 %v1836, %v1834
  %v1841 = vrot.slane %v1837, 1
  %v1842 = vrot.slane %v1838, 1
  %v1845 = vmul.f32 %v1837, %v1841
  %v1846 = vmul.f32 %v1838, %v1842
  %v1847 = vmul.f32 %v1787, 8.0
  %v1848 = vmul.f32 %v1788, 8.0
  %v1849 = vsub.f32 %v1847, %v50
  %v1850 = vsub.f32 %v1848, %v14
  %v1851 = vmul.f32 %v1787, %v91
  %v1852 = vmul.f32 %v1788, %v93
  %vm1853 = vcmp.gt.f32.partialorder %v1851, 0.0
  %vm1854 = vcmp.gt.f32.partialorder %v1852, 0.0
  %v1855 = vsel %vm1853, %v1851, 1.0
  %v1856 = vsel %vm1854, %v1852, 1.0
  %v1857 = vlog2.pop %v1855
  %v1858 = vmul.f32 %v1857, 0.6931472
  %v1859 = vlog2.pop %v1856
  %v1860 = vmul.f32 %v1859, 0.6931472
  %v1861 = vsel %vm1853, %v1858, 0.0
  %v1862 = vsel %vm1854, %v1860, 0.0
  %v1863 = vmul.f32 %v1787, 0.5
  %v1864 = vmul.f32 %v1788, 0.5
  %v1867 = vrot.slane %v1863, 2
  %v1868 = vrot.slane %v1864, 2
  %v1871 = vadd.f32 %v1787, %v1867
  %v1872 = vadd.f32 %v1788, %v1868
  %v1875 = vrot.slane %v1871, 1
  %v1876 = vrot.slane %v1872, 1
  %v1879 = vmul.f32 %v1871, %v1875
  %v1880 = vmul.f32 %v1872, %v1876
  %v1881 = vsub.f32 2.0, %v1879
  %v1882 = vsub.f32 2.0, %v1880
  %v1885 = vrot.slane %v1881, 4
  %v1886 = vrot.slane %v1882, 4
  %v1889 = vmul.f32 %v1789, %v1885
  %v1890 = vmul.f32 %v1790, %v1886
  %v1891 = vsub.f32 %v1849, %v1808
  %v1892 = vsub.f32 %v1850, %v1810
  %v1893 = vmul.f32 %v1891, %v1891
  %v1894 = vmul.f32 %v1892, %v1892
  %v1897 = vrot.slane %v1893, 4
  %v1898 = vrot.slane %v1894, 4
  %v1901 = vsel %vm143, %v1897, 0.0
  %v1902 = vrot.slane %v1901, 4
  %v1903 = vadd.f32 %v1901, %v1902
  %v1904 = vrot.slane %v1903, 2
  %v1905 = vadd.f32 %v1903, %v1904
  %v1906 = vrot.slane %v1905, 1
  %v1907 = vadd.f32 %v1905, %v1906
  %v1908 = vsel %vm151, %v1898, 0.0
  %v1909 = vrot.slane %v1908, 4
  %v1910 = vadd.f32 %v1908, %v1909
  %v1911 = vrot.slane %v1910, 2
  %v1912 = vadd.f32 %v1910, %v1911
  %v1913 = vrot.slane %v1912, 1
  %v1914 = vadd.f32 %v1912, %v1913
  %v1915 = vmul.f32 %v1907, %v1889
  %v1916 = vmul.f32 %v1914, %v1890
  %v1917 = vmul.f32 %v1915, 5.0
  %v1918 = vmul.f32 %v1916, 5.0
  %v1919 = vsub.f32 %v1861, %v1782
  %v1920 = vsub.f32 %v1862, %v1783
  %v1921 = vmul.f32 %v1919, %v1919
  %v1922 = vmul.f32 %v1920, %v1920
  %v1925 = vrot.slane %v1921, 6
  %v1926 = vrot.slane %v1922, 6
  %v1929 = vsel %vm143, %v1925, 0.0
  %v1930 = vrot.slane %v1929, 4
  %v1931 = vadd.f32 %v1929, %v1930
  %v1932 = vrot.slane %v1931, 2
  %v1933 = vadd.f32 %v1931, %v1932
  %v1934 = vrot.slane %v1933, 1
  %v1935 = vadd.f32 %v1933, %v1934
  %v1936 = vsel %vm151, %v1926, 0.0
  %v1937 = vrot.slane %v1936, 4
  %v1938 = vadd.f32 %v1936, %v1937
  %v1939 = vrot.slane %v1938, 2
  %v1940 = vadd.f32 %v1938, %v1939
  %v1941 = vrot.slane %v1940, 1
  %v1942 = vadd.f32 %v1940, %v1941
  %v1943 = vmul.f32 %v1935, %v1889
  %v1944 = vmul.f32 %v1942, %v1890
  %v1945 = vmul.f32 %v1943, 5.0
  %v1946 = vmul.f32 %v1944, 5.0
  %v1947 = vmax.f32 %v1808, 1e-07
  %v1948 = vmax.f32 %v1810, 1e-07
  %v1949 = vmin.f32 %v1947, 0.9999999
  %v1950 = vmin.f32 %v1948, 0.9999999
  %v1951 = vlog2.pop %v1949
  %v1952 = vmul.f32 %v1951, 0.6931472
  %v1953 = vlog2.pop %v1950
  %v1954 = vmul.f32 %v1953, 0.6931472
  %v1955 = vsub.f32 0.0, %v1952
  %v1956 = vsub.f32 0.0, %v1954
  %v1957 = vsel %vm201, %v1955, 0.0
  %v1958 = vrot.slane %v1957, 4
  %v1959 = vadd.f32 %v1957, %v1958
  %v1960 = vrot.slane %v1959, 2
  %v1961 = vadd.f32 %v1959, %v1960
  %v1962 = vrot.slane %v1961, 1
  %v1963 = vadd.f32 %v1961, %v1962
  %v1964 = vsel %vm209, %v1956, 0.0
  %v1965 = vrot.slane %v1964, 4
  %v1966 = vadd.f32 %v1964, %v1965
  %v1967 = vrot.slane %v1966, 2
  %v1968 = vadd.f32 %v1966, %v1967
  %v1969 = vrot.slane %v1968, 1
  %v1970 = vadd.f32 %v1968, %v1969
  %v1971 = vmul.f32 %v1963, %v1789
  %v1972 = vmul.f32 %v1970, %v1790
  %v1973 = vmax.f32 %v1812, 1e-07
  %v1974 = vmax.f32 %v1814, 1e-07
  %v1975 = vmin.f32 %v1973, 0.9999999
  %v1976 = vmin.f32 %v1974, 0.9999999
  %v1977 = vlog2.pop %v1975
  %v1978 = vmul.f32 %v1977, 0.6931472
  %v1979 = vlog2.pop %v1976
  %v1980 = vmul.f32 %v1979, 0.6931472
  %v1981 = vsub.f32 0.0, %v1978
  %v1982 = vsub.f32 0.0, %v1980
  %v1983 = vmul.f32 %v1981, %v1789
  %v1984 = vmul.f32 %v1982, %v1790
  %v1985 = vsub.f32 1.0, %v1789
  %v1986 = vsub.f32 1.0, %v1790
  %v1987 = vmul.f32 %v1985, %v1981
  %v1988 = vmul.f32 %v1986, %v1982
  %s1989 = scalar_lea.vmem %s2, 192
  %v1990 = vld [vmem:[%s1989] sm:$0xff]
  %v1991 = vld [vmem:[%s1989 + $0x8] sm:$0xff]
  %v1992 = vlaneseq
  %v1993 = vshrl.u32 %v1992, 7
  %v1994 = vsub.s32 4, %v1993
  %v1995 = vrot.slane %v1835, %v1994
  %v1996 = vlaneseq
  %v1997 = vshrl.u32 %v1996, 7
  %v1998 = vsub.s32 4, %v1997
  %v1999 = vrot.slane %v1836, %v1998
  %2001 = vset.pattern.permute.xlu0 2
  %2002 = vperm.xlu0 %2001, %v1990
  %v2003 = vpop.permute.xlu0 %2002
  %2006 = vset.pattern.permute.xlu0 2
  %2007 = vperm.xlu0 %2006, %v1991
  %v2008 = vpop.permute.xlu0 %2007
  %v2010 = vmin.f32 %v1995, %v2003
  %v2011 = vmin.f32 %v1999, %v2003
  %v2012 = vmin.f32 %v1995, %v2008
  %v2013 = vmin.f32 %v1999, %v2008
  %v2014 = vlaneseq
  %v2015 = vshrl.u32 %v2014, 7
  %v2016 = vsub.s32 4, %v2015
  %v2017 = vrot.slane %v1833, %v2016
  %v2018 = vlaneseq
  %v2019 = vshrl.u32 %v2018, 7
  %v2020 = vsub.s32 4, %v2019
  %v2021 = vrot.slane %v1834, %v2020
  %2022 = vset.pattern.permute.xlu0 0
  %2023 = vperm.xlu0 %2022, %v1990
  %v2024 = vpop.permute.xlu0 %2023
  %2026 = vset.pattern.permute.xlu0 0
  %2027 = vperm.xlu0 %2026, %v1991
  %v2028 = vpop.permute.xlu0 %2027
  %v2030 = vmax.f32 %v2017, %v2024
  %v2031 = vmax.f32 %v2021, %v2024
  %v2032 = vmax.f32 %v2017, %v2028
  %v2033 = vmax.f32 %v2021, %v2028
  %v2034 = vsub.f32 %v2010, %v2030
  %v2035 = vsub.f32 %v2011, %v2031
  %v2036 = vsub.f32 %v2012, %v2032
  %v2037 = vsub.f32 %v2013, %v2033
  %v2038 = vmax.f32 %v2034, 0.0
  %v2039 = vmax.f32 %v2035, 0.0
  %v2040 = vmax.f32 %v2036, 0.0
  %v2041 = vmax.f32 %v2037, 0.0
  %v2042 = vlaneseq
  %v2043 = vshrl.u32 %v2042, 7
  %v2044 = vsub.s32 5, %v2043
  %v2045 = vrot.slane %v1835, %v2044
  %v2046 = vlaneseq
  %v2047 = vshrl.u32 %v2046, 7
  %v2048 = vsub.s32 5, %v2047
  %v2049 = vrot.slane %v1836, %v2048
  %2050 = vset.pattern.permute.xlu0 3
  %2051 = vperm.xlu0 %2050, %v1990
  %v2052 = vpop.permute.xlu0 %2051
  %2054 = vset.pattern.permute.xlu0 3
  %2055 = vperm.xlu0 %2054, %v1991
  %v2056 = vpop.permute.xlu0 %2055
  %v2058 = vmin.f32 %v2045, %v2052
  %v2059 = vmin.f32 %v2049, %v2052
  %v2060 = vmin.f32 %v2045, %v2056
  %v2061 = vmin.f32 %v2049, %v2056
  %v2062 = vlaneseq
  %v2063 = vshrl.u32 %v2062, 7
  %v2064 = vsub.s32 5, %v2063
  %v2065 = vrot.slane %v1833, %v2064
  %v2066 = vlaneseq
  %v2067 = vshrl.u32 %v2066, 7
  %v2068 = vsub.s32 5, %v2067
  %v2069 = vrot.slane %v1834, %v2068
  %2070 = vset.pattern.permute.xlu0 1
  %2071 = vperm.xlu0 %2070, %v1990
  %v2072 = vpop.permute.xlu0 %2071
  %2074 = vset.pattern.permute.xlu0 1
  %2075 = vperm.xlu0 %2074, %v1991
  %v2076 = vpop.permute.xlu0 %2075
  %v2078 = vmax.f32 %v2065, %v2072
  %v2079 = vmax.f32 %v2069, %v2072
  %v2080 = vmax.f32 %v2065, %v2076
  %v2081 = vmax.f32 %v2069, %v2076
  %v2082 = vsub.f32 %v2058, %v2078
  %v2083 = vsub.f32 %v2059, %v2079
  %v2084 = vsub.f32 %v2060, %v2080
  %v2085 = vsub.f32 %v2061, %v2081
  %v2086 = vmax.f32 %v2082, 0.0
  %v2087 = vmax.f32 %v2083, 0.0
  %v2088 = vmax.f32 %v2084, 0.0
  %v2089 = vmax.f32 %v2085, 0.0
  %v2090 = vmul.f32 %v2038, %v2086
  %v2091 = vmul.f32 %v2039, %v2087
  %v2092 = vmul.f32 %v2040, %v2088
  %v2093 = vmul.f32 %v2041, %v2089
  %2094 = vrot.lane.b32.xlu0 %v1990, 2
  %v2095 = vpop.permute.xlu0 %2094
  %2096 = vrot.lane.b32.xlu0 %v1991, 2
  %v2097 = vpop.permute.xlu0 %2096
  %v2100 = vsub.f32 %v1990, %v2095
  %v2101 = vsub.f32 %v1991, %v2097
  %2104 = vrot.lane.b32.xlu0 %v2100, 127
  %v2105 = vpop.permute.xlu0 %2104
  %2106 = vrot.lane.b32.xlu0 %v2101, 127
  %v2107 = vpop.permute.xlu0 %2106
  %v2110 = vmul.f32 %v2100, %v2105
  %v2111 = vmul.f32 %v2101, %v2107
  %v2112 = vlaneseq
  %v2113 = vshrl.u32 %v2112, 7
  %v2114 = vsub.s32 4, %v2113
  %v2115 = vrot.slane %v1845, %v2114
  %v2116 = vlaneseq
  %v2117 = vshrl.u32 %v2116, 7
  %v2118 = vsub.s32 4, %v2117
  %v2119 = vrot.slane %v1846, %v2118
  %2121 = vset.pattern.permute.xlu0 2
  %2122 = vperm.xlu0 %2121, %v2110
  %v2123 = vpop.permute.xlu0 %2122
  %2126 = vset.pattern.permute.xlu0 2
  %2127 = vperm.xlu0 %2126, %v2111
  %v2128 = vpop.permute.xlu0 %2127
  %v2130 = vadd.f32 %v2115, %v2123
  %v2131 = vadd.f32 %v2119, %v2123
  %v2132 = vadd.f32 %v2115, %v2128
  %v2133 = vadd.f32 %v2119, %v2128
  %v2134 = vsub.f32 %v2130, %v2090
  %v2135 = vsub.f32 %v2131, %v2091
  %v2136 = vsub.f32 %v2132, %v2092
  %v2137 = vsub.f32 %v2133, %v2093
  %v2138 = vrcp.pop %v2134
  %v2139 = vrcp.pop %v2135
  %v2140 = vrcp.pop %v2136
  %v2141 = vrcp.pop %v2137
  %v2142 = vmul.f32 %v2090, %v2138
  %v2143 = vmul.f32 %v2091, %v2139
  %v2144 = vmul.f32 %v2092, %v2140
  %v2145 = vmul.f32 %v2093, %v2141
  %v2146 = vld [vmem:[%s1989 + $0x10] sm:$0xff]
  %v2147 = vld [vmem:[%s1989 + $0x18] sm:$0xff]
  %2149 = vset.pattern.permute.xlu0 2
  %2150 = vperm.xlu0 %2149, %v2146
  %v2151 = vpop.permute.xlu0 %2150
  %2154 = vset.pattern.permute.xlu0 2
  %2155 = vperm.xlu0 %2154, %v2147
  %v2156 = vpop.permute.xlu0 %2155
  %v2158 = vmin.f32 %v1995, %v2151
  %v2159 = vmin.f32 %v1999, %v2151
  %v2160 = vmin.f32 %v1995, %v2156
  %v2161 = vmin.f32 %v1999, %v2156
  %2162 = vset.pattern.permute.xlu0 0
  %2163 = vperm.xlu0 %2162, %v2146
  %v2164 = vpop.permute.xlu0 %2163
  %2166 = vset.pattern.permute.xlu0 0
  %2167 = vperm.xlu0 %2166, %v2147
  %v2168 = vpop.permute.xlu0 %2167
  %v2170 = vmax.f32 %v2017, %v2164
  %v2171 = vmax.f32 %v2021, %v2164
  %v2172 = vmax.f32 %v2017, %v2168
  %v2173 = vmax.f32 %v2021, %v2168
  %v2174 = vsub.f32 %v2158, %v2170
  %v2175 = vsub.f32 %v2159, %v2171
  %v2176 = vsub.f32 %v2160, %v2172
  %v2177 = vsub.f32 %v2161, %v2173
  %v2178 = vmax.f32 %v2174, 0.0
  %v2179 = vmax.f32 %v2175, 0.0
  %v2180 = vmax.f32 %v2176, 0.0
  %v2181 = vmax.f32 %v2177, 0.0
  %2182 = vset.pattern.permute.xlu0 3
  %2183 = vperm.xlu0 %2182, %v2146
  %v2184 = vpop.permute.xlu0 %2183
  %2186 = vset.pattern.permute.xlu0 3
  %2187 = vperm.xlu0 %2186, %v2147
  %v2188 = vpop.permute.xlu0 %2187
  %v2190 = vmin.f32 %v2045, %v2184
  %v2191 = vmin.f32 %v2049, %v2184
  %v2192 = vmin.f32 %v2045, %v2188
  %v2193 = vmin.f32 %v2049, %v2188
  %2194 = vset.pattern.permute.xlu0 1
  %2195 = vperm.xlu0 %2194, %v2146
  %v2196 = vpop.permute.xlu0 %2195
  %2198 = vset.pattern.permute.xlu0 1
  %2199 = vperm.xlu0 %2198, %v2147
  %v2200 = vpop.permute.xlu0 %2199
  %v2202 = vmax.f32 %v2065, %v2196
  %v2203 = vmax.f32 %v2069, %v2196
  %v2204 = vmax.f32 %v2065, %v2200
  %v2205 = vmax.f32 %v2069, %v2200
  %v2206 = vsub.f32 %v2190, %v2202
  %v2207 = vsub.f32 %v2191, %v2203
  %v2208 = vsub.f32 %v2192, %v2204
  %v2209 = vsub.f32 %v2193, %v2205
  %v2210 = vmax.f32 %v2206, 0.0
  %v2211 = vmax.f32 %v2207, 0.0
  %v2212 = vmax.f32 %v2208, 0.0
  %v2213 = vmax.f32 %v2209, 0.0
  %v2214 = vmul.f32 %v2178, %v2210
  %v2215 = vmul.f32 %v2179, %v2211
  %v2216 = vmul.f32 %v2180, %v2212
  %v2217 = vmul.f32 %v2181, %v2213
  %2218 = vrot.lane.b32.xlu0 %v2146, 2
  %v2219 = vpop.permute.xlu0 %2218
  %2220 = vrot.lane.b32.xlu0 %v2147, 2
  %v2221 = vpop.permute.xlu0 %2220
  %v2224 = vsub.f32 %v2146, %v2219
  %v2225 = vsub.f32 %v2147, %v2221
  %2228 = vrot.lane.b32.xlu0 %v2224, 127
  %v2229 = vpop.permute.xlu0 %2228
  %2230 = vrot.lane.b32.xlu0 %v2225, 127
  %v2231 = vpop.permute.xlu0 %2230
  %v2234 = vmul.f32 %v2224, %v2229
  %v2235 = vmul.f32 %v2225, %v2231
  %2237 = vset.pattern.permute.xlu0 2
  %2238 = vperm.xlu0 %2237, %v2234
  %v2239 = vpop.permute.xlu0 %2238
  %2242 = vset.pattern.permute.xlu0 2
  %2243 = vperm.xlu0 %2242, %v2235
  %v2244 = vpop.permute.xlu0 %2243
  %v2246 = vadd.f32 %v2115, %v2239
  %v2247 = vadd.f32 %v2119, %v2239
  %v2248 = vadd.f32 %v2115, %v2244
  %v2249 = vadd.f32 %v2119, %v2244
  %v2250 = vsub.f32 %v2246, %v2214
  %v2251 = vsub.f32 %v2247, %v2215
  %v2252 = vsub.f32 %v2248, %v2216
  %v2253 = vsub.f32 %v2249, %v2217
  %v2254 = vrcp.pop %v2250
  %v2255 = vrcp.pop %v2251
  %v2256 = vrcp.pop %v2252
  %v2257 = vrcp.pop %v2253
  %v2258 = vmul.f32 %v2214, %v2254
  %v2259 = vmul.f32 %v2215, %v2255
  %v2260 = vmul.f32 %v2216, %v2256
  %v2261 = vmul.f32 %v2217, %v2257
  %v2262 = vmax.f32 %v2142, %v2258
  %v2263 = vmax.f32 %v2143, %v2259
  %v2264 = vmax.f32 %v2144, %v2260
  %v2265 = vmax.f32 %v2145, %v2261
  %v2266 = vld [vmem:[%s1989 + $0x20] sm:$0xff]
  %v2267 = vld [vmem:[%s1989 + $0x28] sm:$0xff]
  %2269 = vset.pattern.permute.xlu0 2
  %2270 = vperm.xlu0 %2269, %v2266
  %v2271 = vpop.permute.xlu0 %2270
  %2274 = vset.pattern.permute.xlu0 2
  %2275 = vperm.xlu0 %2274, %v2267
  %v2276 = vpop.permute.xlu0 %2275
  %v2278 = vmin.f32 %v1995, %v2271
  %v2279 = vmin.f32 %v1999, %v2271
  %v2280 = vmin.f32 %v1995, %v2276
  %v2281 = vmin.f32 %v1999, %v2276
  %2282 = vset.pattern.permute.xlu0 0
  %2283 = vperm.xlu0 %2282, %v2266
  %v2284 = vpop.permute.xlu0 %2283
  %2286 = vset.pattern.permute.xlu0 0
  %2287 = vperm.xlu0 %2286, %v2267
  %v2288 = vpop.permute.xlu0 %2287
  %v2290 = vmax.f32 %v2017, %v2284
  %v2291 = vmax.f32 %v2021, %v2284
  %v2292 = vmax.f32 %v2017, %v2288
  %v2293 = vmax.f32 %v2021, %v2288
  %v2294 = vsub.f32 %v2278, %v2290
  %v2295 = vsub.f32 %v2279, %v2291
  %v2296 = vsub.f32 %v2280, %v2292
  %v2297 = vsub.f32 %v2281, %v2293
  %v2298 = vmax.f32 %v2294, 0.0
  %v2299 = vmax.f32 %v2295, 0.0
  %v2300 = vmax.f32 %v2296, 0.0
  %v2301 = vmax.f32 %v2297, 0.0
  %2302 = vset.pattern.permute.xlu0 3
  %2303 = vperm.xlu0 %2302, %v2266
  %v2304 = vpop.permute.xlu0 %2303
  %2306 = vset.pattern.permute.xlu0 3
  %2307 = vperm.xlu0 %2306, %v2267
  %v2308 = vpop.permute.xlu0 %2307
  %v2310 = vmin.f32 %v2045, %v2304
  %v2311 = vmin.f32 %v2049, %v2304
  %v2312 = vmin.f32 %v2045, %v2308
  %v2313 = vmin.f32 %v2049, %v2308
  %2314 = vset.pattern.permute.xlu0 1
  %2315 = vperm.xlu0 %2314, %v2266
  %v2316 = vpop.permute.xlu0 %2315
  %2318 = vset.pattern.permute.xlu0 1
  %2319 = vperm.xlu0 %2318, %v2267
  %v2320 = vpop.permute.xlu0 %2319
  %v2322 = vmax.f32 %v2065, %v2316
  %v2323 = vmax.f32 %v2069, %v2316
  %v2324 = vmax.f32 %v2065, %v2320
  %v2325 = vmax.f32 %v2069, %v2320
  %v2326 = vsub.f32 %v2310, %v2322
  %v2327 = vsub.f32 %v2311, %v2323
  %v2328 = vsub.f32 %v2312, %v2324
  %v2329 = vsub.f32 %v2313, %v2325
  %v2330 = vmax.f32 %v2326, 0.0
  %v2331 = vmax.f32 %v2327, 0.0
  %v2332 = vmax.f32 %v2328, 0.0
  %v2333 = vmax.f32 %v2329, 0.0
  %v2334 = vmul.f32 %v2298, %v2330
  %v2335 = vmul.f32 %v2299, %v2331
  %v2336 = vmul.f32 %v2300, %v2332
  %v2337 = vmul.f32 %v2301, %v2333
  %2338 = vrot.lane.b32.xlu0 %v2266, 2
  %v2339 = vpop.permute.xlu0 %2338
  %2340 = vrot.lane.b32.xlu0 %v2267, 2
  %v2341 = vpop.permute.xlu0 %2340
  %v2344 = vsub.f32 %v2266, %v2339
  %v2345 = vsub.f32 %v2267, %v2341
  %2348 = vrot.lane.b32.xlu0 %v2344, 127
  %v2349 = vpop.permute.xlu0 %2348
  %2350 = vrot.lane.b32.xlu0 %v2345, 127
  %v2351 = vpop.permute.xlu0 %2350
  %v2354 = vmul.f32 %v2344, %v2349
  %v2355 = vmul.f32 %v2345, %v2351
  %2357 = vset.pattern.permute.xlu0 2
  %2358 = vperm.xlu0 %2357, %v2354
  %v2359 = vpop.permute.xlu0 %2358
  %2362 = vset.pattern.permute.xlu0 2
  %2363 = vperm.xlu0 %2362, %v2355
  %v2364 = vpop.permute.xlu0 %2363
  %v2366 = vadd.f32 %v2115, %v2359
  %v2367 = vadd.f32 %v2119, %v2359
  %v2368 = vadd.f32 %v2115, %v2364
  %v2369 = vadd.f32 %v2119, %v2364
  %v2370 = vsub.f32 %v2366, %v2334
  %v2371 = vsub.f32 %v2367, %v2335
  %v2372 = vsub.f32 %v2368, %v2336
  %v2373 = vsub.f32 %v2369, %v2337
  %v2374 = vrcp.pop %v2370
  %v2375 = vrcp.pop %v2371
  %v2376 = vrcp.pop %v2372
  %v2377 = vrcp.pop %v2373
  %v2378 = vmul.f32 %v2334, %v2374
  %v2379 = vmul.f32 %v2335, %v2375
  %v2380 = vmul.f32 %v2336, %v2376
  %v2381 = vmul.f32 %v2337, %v2377
  %v2382 = vmax.f32 %v2262, %v2378
  %v2383 = vmax.f32 %v2263, %v2379
  %v2384 = vmax.f32 %v2264, %v2380
  %v2385 = vmax.f32 %v2265, %v2381
  %v2386 = vld [vmem:[%s1989 + $0x30] sm:$0xff]
  %v2387 = vld [vmem:[%s1989 + $0x38] sm:$0xff]
  %2389 = vset.pattern.permute.xlu0 2
  %2390 = vperm.xlu0 %2389, %v2386
  %v2391 = vpop.permute.xlu0 %2390
  %2394 = vset.pattern.permute.xlu0 2
  %2395 = vperm.xlu0 %2394, %v2387
  %v2396 = vpop.permute.xlu0 %2395
  %v2398 = vmin.f32 %v1995, %v2391
  %v2399 = vmin.f32 %v1999, %v2391
  %v2400 = vmin.f32 %v1995, %v2396
  %v2401 = vmin.f32 %v1999, %v2396
  %2402 = vset.pattern.permute.xlu0 0
  %2403 = vperm.xlu0 %2402, %v2386
  %v2404 = vpop.permute.xlu0 %2403
  %2406 = vset.pattern.permute.xlu0 0
  %2407 = vperm.xlu0 %2406, %v2387
  %v2408 = vpop.permute.xlu0 %2407
  %v2410 = vmax.f32 %v2017, %v2404
  %v2411 = vmax.f32 %v2021, %v2404
  %v2412 = vmax.f32 %v2017, %v2408
  %v2413 = vmax.f32 %v2021, %v2408
  %v2414 = vsub.f32 %v2398, %v2410
  %v2415 = vsub.f32 %v2399, %v2411
  %v2416 = vsub.f32 %v2400, %v2412
  %v2417 = vsub.f32 %v2401, %v2413
  %v2418 = vmax.f32 %v2414, 0.0
  %v2419 = vmax.f32 %v2415, 0.0
  %v2420 = vmax.f32 %v2416, 0.0
  %v2421 = vmax.f32 %v2417, 0.0
  %2422 = vset.pattern.permute.xlu0 3
  %2423 = vperm.xlu0 %2422, %v2386
  %v2424 = vpop.permute.xlu0 %2423
  %2426 = vset.pattern.permute.xlu0 3
  %2427 = vperm.xlu0 %2426, %v2387
  %v2428 = vpop.permute.xlu0 %2427
  %v2430 = vmin.f32 %v2045, %v2424
  %v2431 = vmin.f32 %v2049, %v2424
  %v2432 = vmin.f32 %v2045, %v2428
  %v2433 = vmin.f32 %v2049, %v2428
  %2434 = vset.pattern.permute.xlu0 1
  %2435 = vperm.xlu0 %2434, %v2386
  %v2436 = vpop.permute.xlu0 %2435
  %2438 = vset.pattern.permute.xlu0 1
  %2439 = vperm.xlu0 %2438, %v2387
  %v2440 = vpop.permute.xlu0 %2439
  %v2442 = vmax.f32 %v2065, %v2436
  %v2443 = vmax.f32 %v2069, %v2436
  %v2444 = vmax.f32 %v2065, %v2440
  %v2445 = vmax.f32 %v2069, %v2440
  %v2446 = vsub.f32 %v2430, %v2442
  %v2447 = vsub.f32 %v2431, %v2443
  %v2448 = vsub.f32 %v2432, %v2444
  %v2449 = vsub.f32 %v2433, %v2445
  %v2450 = vmax.f32 %v2446, 0.0
  %v2451 = vmax.f32 %v2447, 0.0
  %v2452 = vmax.f32 %v2448, 0.0
  %v2453 = vmax.f32 %v2449, 0.0
  %v2454 = vmul.f32 %v2418, %v2450
  %v2455 = vmul.f32 %v2419, %v2451
  %v2456 = vmul.f32 %v2420, %v2452
  %v2457 = vmul.f32 %v2421, %v2453
  %2458 = vrot.lane.b32.xlu0 %v2386, 2
  %v2459 = vpop.permute.xlu0 %2458
  %2460 = vrot.lane.b32.xlu0 %v2387, 2
  %v2461 = vpop.permute.xlu0 %2460
  %v2464 = vsub.f32 %v2386, %v2459
  %v2465 = vsub.f32 %v2387, %v2461
  %2468 = vrot.lane.b32.xlu0 %v2464, 127
  %v2469 = vpop.permute.xlu0 %2468
  %2470 = vrot.lane.b32.xlu0 %v2465, 127
  %v2471 = vpop.permute.xlu0 %2470
  %v2474 = vmul.f32 %v2464, %v2469
  %v2475 = vmul.f32 %v2465, %v2471
  %2477 = vset.pattern.permute.xlu0 2
  %2478 = vperm.xlu0 %2477, %v2474
  %v2479 = vpop.permute.xlu0 %2478
  %2482 = vset.pattern.permute.xlu0 2
  %2483 = vperm.xlu0 %2482, %v2475
  %v2484 = vpop.permute.xlu0 %2483
  %v2486 = vadd.f32 %v2115, %v2479
  %v2487 = vadd.f32 %v2119, %v2479
  %v2488 = vadd.f32 %v2115, %v2484
  %v2489 = vadd.f32 %v2119, %v2484
  %v2490 = vsub.f32 %v2486, %v2454
  %v2491 = vsub.f32 %v2487, %v2455
  %v2492 = vsub.f32 %v2488, %v2456
  %v2493 = vsub.f32 %v2489, %v2457
  %v2494 = vrcp.pop %v2490
  %v2495 = vrcp.pop %v2491
  %v2496 = vrcp.pop %v2492
  %v2497 = vrcp.pop %v2493
  %v2498 = vmul.f32 %v2454, %v2494
  %v2499 = vmul.f32 %v2455, %v2495
  %v2500 = vmul.f32 %v2456, %v2496
  %v2501 = vmul.f32 %v2457, %v2497
  %v2502 = vmax.f32 %v2382, %v2498
  %v2503 = vmax.f32 %v2383, %v2499
  %v2504 = vmax.f32 %v2384, %v2500
  %v2505 = vmax.f32 %v2385, %v2501
  %v2506 = vld [vmem:[%s1989 + $0x40] sm:$0xff]
  %v2507 = vld [vmem:[%s1989 + $0x48] sm:$0xff]
  %2509 = vset.pattern.permute.xlu0 2
  %2510 = vperm.xlu0 %2509, %v2506
  %v2511 = vpop.permute.xlu0 %2510
  %2514 = vset.pattern.permute.xlu0 2
  %2515 = vperm.xlu0 %2514, %v2507
  %v2516 = vpop.permute.xlu0 %2515
  %v2518 = vmin.f32 %v1995, %v2511
  %v2519 = vmin.f32 %v1999, %v2511
  %v2520 = vmin.f32 %v1995, %v2516
  %v2521 = vmin.f32 %v1999, %v2516
  %2522 = vset.pattern.permute.xlu0 0
  %2523 = vperm.xlu0 %2522, %v2506
  %v2524 = vpop.permute.xlu0 %2523
  %2526 = vset.pattern.permute.xlu0 0
  %2527 = vperm.xlu0 %2526, %v2507
  %v2528 = vpop.permute.xlu0 %2527
  %v2530 = vmax.f32 %v2017, %v2524
  %v2531 = vmax.f32 %v2021, %v2524
  %v2532 = vmax.f32 %v2017, %v2528
  %v2533 = vmax.f32 %v2021, %v2528
  %v2534 = vsub.f32 %v2518, %v2530
  %v2535 = vsub.f32 %v2519, %v2531
  %v2536 = vsub.f32 %v2520, %v2532
  %v2537 = vsub.f32 %v2521, %v2533
  %v2538 = vmax.f32 %v2534, 0.0
  %v2539 = vmax.f32 %v2535, 0.0
  %v2540 = vmax.f32 %v2536, 0.0
  %v2541 = vmax.f32 %v2537, 0.0
  %2542 = vset.pattern.permute.xlu0 3
  %2543 = vperm.xlu0 %2542, %v2506
  %v2544 = vpop.permute.xlu0 %2543
  %2546 = vset.pattern.permute.xlu0 3
  %2547 = vperm.xlu0 %2546, %v2507
  %v2548 = vpop.permute.xlu0 %2547
  %v2550 = vmin.f32 %v2045, %v2544
  %v2551 = vmin.f32 %v2049, %v2544
  %v2552 = vmin.f32 %v2045, %v2548
  %v2553 = vmin.f32 %v2049, %v2548
  %2554 = vset.pattern.permute.xlu0 1
  %2555 = vperm.xlu0 %2554, %v2506
  %v2556 = vpop.permute.xlu0 %2555
  %2558 = vset.pattern.permute.xlu0 1
  %2559 = vperm.xlu0 %2558, %v2507
  %v2560 = vpop.permute.xlu0 %2559
  %v2562 = vmax.f32 %v2065, %v2556
  %v2563 = vmax.f32 %v2069, %v2556
  %v2564 = vmax.f32 %v2065, %v2560
  %v2565 = vmax.f32 %v2069, %v2560
  %v2566 = vsub.f32 %v2550, %v2562
  %v2567 = vsub.f32 %v2551, %v2563
  %v2568 = vsub.f32 %v2552, %v2564
  %v2569 = vsub.f32 %v2553, %v2565
  %v2570 = vmax.f32 %v2566, 0.0
  %v2571 = vmax.f32 %v2567, 0.0
  %v2572 = vmax.f32 %v2568, 0.0
  %v2573 = vmax.f32 %v2569, 0.0
  %v2574 = vmul.f32 %v2538, %v2570
  %v2575 = vmul.f32 %v2539, %v2571
  %v2576 = vmul.f32 %v2540, %v2572
  %v2577 = vmul.f32 %v2541, %v2573
  %2578 = vrot.lane.b32.xlu0 %v2506, 2
  %v2579 = vpop.permute.xlu0 %2578
  %2580 = vrot.lane.b32.xlu0 %v2507, 2
  %v2581 = vpop.permute.xlu0 %2580
  %v2584 = vsub.f32 %v2506, %v2579
  %v2585 = vsub.f32 %v2507, %v2581
  %2588 = vrot.lane.b32.xlu0 %v2584, 127
  %v2589 = vpop.permute.xlu0 %2588
  %2590 = vrot.lane.b32.xlu0 %v2585, 127
  %v2591 = vpop.permute.xlu0 %2590
  %v2594 = vmul.f32 %v2584, %v2589
  %v2595 = vmul.f32 %v2585, %v2591
  %2597 = vset.pattern.permute.xlu0 2
  %2598 = vperm.xlu0 %2597, %v2594
  %v2599 = vpop.permute.xlu0 %2598
  %2602 = vset.pattern.permute.xlu0 2
  %2603 = vperm.xlu0 %2602, %v2595
  %v2604 = vpop.permute.xlu0 %2603
  %v2606 = vadd.f32 %v2115, %v2599
  %v2607 = vadd.f32 %v2119, %v2599
  %v2608 = vadd.f32 %v2115, %v2604
  %v2609 = vadd.f32 %v2119, %v2604
  %v2610 = vsub.f32 %v2606, %v2574
  %v2611 = vsub.f32 %v2607, %v2575
  %v2612 = vsub.f32 %v2608, %v2576
  %v2613 = vsub.f32 %v2609, %v2577
  %v2614 = vrcp.pop %v2610
  %v2615 = vrcp.pop %v2611
  %v2616 = vrcp.pop %v2612
  %v2617 = vrcp.pop %v2613
  %v2618 = vmul.f32 %v2574, %v2614
  %v2619 = vmul.f32 %v2575, %v2615
  %v2620 = vmul.f32 %v2576, %v2616
  %v2621 = vmul.f32 %v2577, %v2617
  %v2622 = vmax.f32 %v2502, %v2618
  %v2623 = vmax.f32 %v2503, %v2619
  %v2624 = vmax.f32 %v2504, %v2620
  %v2625 = vmax.f32 %v2505, %v2621
  %v2626 = vld [vmem:[%s1989 + $0x50] sm:$0xff]
  %v2627 = vld [vmem:[%s1989 + $0x58] sm:$0xff]
  %2629 = vset.pattern.permute.xlu0 2
  %2630 = vperm.xlu0 %2629, %v2626
  %v2631 = vpop.permute.xlu0 %2630
  %2634 = vset.pattern.permute.xlu0 2
  %2635 = vperm.xlu0 %2634, %v2627
  %v2636 = vpop.permute.xlu0 %2635
  %v2638 = vmin.f32 %v1995, %v2631
  %v2639 = vmin.f32 %v1999, %v2631
  %v2640 = vmin.f32 %v1995, %v2636
  %v2641 = vmin.f32 %v1999, %v2636
  %2642 = vset.pattern.permute.xlu0 0
  %2643 = vperm.xlu0 %2642, %v2626
  %v2644 = vpop.permute.xlu0 %2643
  %2646 = vset.pattern.permute.xlu0 0
  %2647 = vperm.xlu0 %2646, %v2627
  %v2648 = vpop.permute.xlu0 %2647
  %v2650 = vmax.f32 %v2017, %v2644
  %v2651 = vmax.f32 %v2021, %v2644
  %v2652 = vmax.f32 %v2017, %v2648
  %v2653 = vmax.f32 %v2021, %v2648
  %v2654 = vsub.f32 %v2638, %v2650
  %v2655 = vsub.f32 %v2639, %v2651
  %v2656 = vsub.f32 %v2640, %v2652
  %v2657 = vsub.f32 %v2641, %v2653
  %v2658 = vmax.f32 %v2654, 0.0
  %v2659 = vmax.f32 %v2655, 0.0
  %v2660 = vmax.f32 %v2656, 0.0
  %v2661 = vmax.f32 %v2657, 0.0
  %2662 = vset.pattern.permute.xlu0 3
  %2663 = vperm.xlu0 %2662, %v2626
  %v2664 = vpop.permute.xlu0 %2663
  %2666 = vset.pattern.permute.xlu0 3
  %2667 = vperm.xlu0 %2666, %v2627
  %v2668 = vpop.permute.xlu0 %2667
  %v2670 = vmin.f32 %v2045, %v2664
  %v2671 = vmin.f32 %v2049, %v2664
  %v2672 = vmin.f32 %v2045, %v2668
  %v2673 = vmin.f32 %v2049, %v2668
  %2674 = vset.pattern.permute.xlu0 1
  %2675 = vperm.xlu0 %2674, %v2626
  %v2676 = vpop.permute.xlu0 %2675
  %2678 = vset.pattern.permute.xlu0 1
  %2679 = vperm.xlu0 %2678, %v2627
  %v2680 = vpop.permute.xlu0 %2679
  %v2682 = vmax.f32 %v2065, %v2676
  %v2683 = vmax.f32 %v2069, %v2676
  %v2684 = vmax.f32 %v2065, %v2680
  %v2685 = vmax.f32 %v2069, %v2680
  %v2686 = vsub.f32 %v2670, %v2682
  %v2687 = vsub.f32 %v2671, %v2683
  %v2688 = vsub.f32 %v2672, %v2684
  %v2689 = vsub.f32 %v2673, %v2685
  %v2690 = vmax.f32 %v2686, 0.0
  %v2691 = vmax.f32 %v2687, 0.0
  %v2692 = vmax.f32 %v2688, 0.0
  %v2693 = vmax.f32 %v2689, 0.0
  %v2694 = vmul.f32 %v2658, %v2690
  %v2695 = vmul.f32 %v2659, %v2691
  %v2696 = vmul.f32 %v2660, %v2692
  %v2697 = vmul.f32 %v2661, %v2693
  %2698 = vrot.lane.b32.xlu0 %v2626, 2
  %v2699 = vpop.permute.xlu0 %2698
  %2700 = vrot.lane.b32.xlu0 %v2627, 2
  %v2701 = vpop.permute.xlu0 %2700
  %v2704 = vsub.f32 %v2626, %v2699
  %v2705 = vsub.f32 %v2627, %v2701
  %2708 = vrot.lane.b32.xlu0 %v2704, 127
  %v2709 = vpop.permute.xlu0 %2708
  %2710 = vrot.lane.b32.xlu0 %v2705, 127
  %v2711 = vpop.permute.xlu0 %2710
  %v2714 = vmul.f32 %v2704, %v2709
  %v2715 = vmul.f32 %v2705, %v2711
  %2717 = vset.pattern.permute.xlu0 2
  %2718 = vperm.xlu0 %2717, %v2714
  %v2719 = vpop.permute.xlu0 %2718
  %2722 = vset.pattern.permute.xlu0 2
  %2723 = vperm.xlu0 %2722, %v2715
  %v2724 = vpop.permute.xlu0 %2723
  %v2726 = vadd.f32 %v2115, %v2719
  %v2727 = vadd.f32 %v2119, %v2719
  %v2728 = vadd.f32 %v2115, %v2724
  %v2729 = vadd.f32 %v2119, %v2724
  %v2730 = vsub.f32 %v2726, %v2694
  %v2731 = vsub.f32 %v2727, %v2695
  %v2732 = vsub.f32 %v2728, %v2696
  %v2733 = vsub.f32 %v2729, %v2697
  %v2734 = vrcp.pop %v2730
  %v2735 = vrcp.pop %v2731
  %v2736 = vrcp.pop %v2732
  %v2737 = vrcp.pop %v2733
  %v2738 = vmul.f32 %v2694, %v2734
  %v2739 = vmul.f32 %v2695, %v2735
  %v2740 = vmul.f32 %v2696, %v2736
  %v2741 = vmul.f32 %v2697, %v2737
  %v2742 = vmax.f32 %v2622, %v2738
  %v2743 = vmax.f32 %v2623, %v2739
  %v2744 = vmax.f32 %v2624, %v2740
  %v2745 = vmax.f32 %v2625, %v2741
  %v2746 = vld [vmem:[%s1989 + $0x60] sm:$0xff]
  %v2747 = vld [vmem:[%s1989 + $0x68] sm:$0xff]
  %2749 = vset.pattern.permute.xlu0 2
  %2750 = vperm.xlu0 %2749, %v2746
  %v2751 = vpop.permute.xlu0 %2750
  %2754 = vset.pattern.permute.xlu0 2
  %2755 = vperm.xlu0 %2754, %v2747
  %v2756 = vpop.permute.xlu0 %2755
  %v2758 = vmin.f32 %v1995, %v2751
  %v2759 = vmin.f32 %v1999, %v2751
  %v2760 = vmin.f32 %v1995, %v2756
  %v2761 = vmin.f32 %v1999, %v2756
  %2762 = vset.pattern.permute.xlu0 0
  %2763 = vperm.xlu0 %2762, %v2746
  %v2764 = vpop.permute.xlu0 %2763
  %2766 = vset.pattern.permute.xlu0 0
  %2767 = vperm.xlu0 %2766, %v2747
  %v2768 = vpop.permute.xlu0 %2767
  %v2770 = vmax.f32 %v2017, %v2764
  %v2771 = vmax.f32 %v2021, %v2764
  %v2772 = vmax.f32 %v2017, %v2768
  %v2773 = vmax.f32 %v2021, %v2768
  %v2774 = vsub.f32 %v2758, %v2770
  %v2775 = vsub.f32 %v2759, %v2771
  %v2776 = vsub.f32 %v2760, %v2772
  %v2777 = vsub.f32 %v2761, %v2773
  %v2778 = vmax.f32 %v2774, 0.0
  %v2779 = vmax.f32 %v2775, 0.0
  %v2780 = vmax.f32 %v2776, 0.0
  %v2781 = vmax.f32 %v2777, 0.0
  %2782 = vset.pattern.permute.xlu0 3
  %2783 = vperm.xlu0 %2782, %v2746
  %v2784 = vpop.permute.xlu0 %2783
  %2786 = vset.pattern.permute.xlu0 3
  %2787 = vperm.xlu0 %2786, %v2747
  %v2788 = vpop.permute.xlu0 %2787
  %v2790 = vmin.f32 %v2045, %v2784
  %v2791 = vmin.f32 %v2049, %v2784
  %v2792 = vmin.f32 %v2045, %v2788
  %v2793 = vmin.f32 %v2049, %v2788
  %2794 = vset.pattern.permute.xlu0 1
  %2795 = vperm.xlu0 %2794, %v2746
  %v2796 = vpop.permute.xlu0 %2795
  %2798 = vset.pattern.permute.xlu0 1
  %2799 = vperm.xlu0 %2798, %v2747
  %v2800 = vpop.permute.xlu0 %2799
  %v2802 = vmax.f32 %v2065, %v2796
  %v2803 = vmax.f32 %v2069, %v2796
  %v2804 = vmax.f32 %v2065, %v2800
  %v2805 = vmax.f32 %v2069, %v2800
  %v2806 = vsub.f32 %v2790, %v2802
  %v2807 = vsub.f32 %v2791, %v2803
  %v2808 = vsub.f32 %v2792, %v2804
  %v2809 = vsub.f32 %v2793, %v2805
  %v2810 = vmax.f32 %v2806, 0.0
  %v2811 = vmax.f32 %v2807, 0.0
  %v2812 = vmax.f32 %v2808, 0.0
  %v2813 = vmax.f32 %v2809, 0.0
  %v2814 = vmul.f32 %v2778, %v2810
  %v2815 = vmul.f32 %v2779, %v2811
  %v2816 = vmul.f32 %v2780, %v2812
  %v2817 = vmul.f32 %v2781, %v2813
  %2818 = vrot.lane.b32.xlu0 %v2746, 2
  %v2819 = vpop.permute.xlu0 %2818
  %2820 = vrot.lane.b32.xlu0 %v2747, 2
  %v2821 = vpop.permute.xlu0 %2820
  %v2824 = vsub.f32 %v2746, %v2819
  %v2825 = vsub.f32 %v2747, %v2821
  %2828 = vrot.lane.b32.xlu0 %v2824, 127
  %v2829 = vpop.permute.xlu0 %2828
  %2830 = vrot.lane.b32.xlu0 %v2825, 127
  %v2831 = vpop.permute.xlu0 %2830
  %v2834 = vmul.f32 %v2824, %v2829
  %v2835 = vmul.f32 %v2825, %v2831
  %2837 = vset.pattern.permute.xlu0 2
  %2838 = vperm.xlu0 %2837, %v2834
  %v2839 = vpop.permute.xlu0 %2838
  %2842 = vset.pattern.permute.xlu0 2
  %2843 = vperm.xlu0 %2842, %v2835
  %v2844 = vpop.permute.xlu0 %2843
  %v2846 = vadd.f32 %v2115, %v2839
  %v2847 = vadd.f32 %v2119, %v2839
  %v2848 = vadd.f32 %v2115, %v2844
  %v2849 = vadd.f32 %v2119, %v2844
  %v2850 = vsub.f32 %v2846, %v2814
  %v2851 = vsub.f32 %v2847, %v2815
  %v2852 = vsub.f32 %v2848, %v2816
  %v2853 = vsub.f32 %v2849, %v2817
  %v2854 = vrcp.pop %v2850
  %v2855 = vrcp.pop %v2851
  %v2856 = vrcp.pop %v2852
  %v2857 = vrcp.pop %v2853
  %v2858 = vmul.f32 %v2814, %v2854
  %v2859 = vmul.f32 %v2815, %v2855
  %v2860 = vmul.f32 %v2816, %v2856
  %v2861 = vmul.f32 %v2817, %v2857
  %v2862 = vmax.f32 %v2742, %v2858
  %v2863 = vmax.f32 %v2743, %v2859
  %v2864 = vmax.f32 %v2744, %v2860
  %v2865 = vmax.f32 %v2745, %v2861
  %v2866 = vld [vmem:[%s1989 + $0x70] sm:$0xff]
  %v2867 = vld [vmem:[%s1989 + $0x78] sm:$0xff]
  %2869 = vset.pattern.permute.xlu0 2
  %2870 = vperm.xlu0 %2869, %v2866
  %v2871 = vpop.permute.xlu0 %2870
  %2874 = vset.pattern.permute.xlu0 2
  %2875 = vperm.xlu0 %2874, %v2867
  %v2876 = vpop.permute.xlu0 %2875
  %v2878 = vmin.f32 %v1995, %v2871
  %v2879 = vmin.f32 %v1999, %v2871
  %v2880 = vmin.f32 %v1995, %v2876
  %v2881 = vmin.f32 %v1999, %v2876
  %2882 = vset.pattern.permute.xlu0 0
  %2883 = vperm.xlu0 %2882, %v2866
  %v2884 = vpop.permute.xlu0 %2883
  %2886 = vset.pattern.permute.xlu0 0
  %2887 = vperm.xlu0 %2886, %v2867
  %v2888 = vpop.permute.xlu0 %2887
  %v2890 = vmax.f32 %v2017, %v2884
  %v2891 = vmax.f32 %v2021, %v2884
  %v2892 = vmax.f32 %v2017, %v2888
  %v2893 = vmax.f32 %v2021, %v2888
  %v2894 = vsub.f32 %v2878, %v2890
  %v2895 = vsub.f32 %v2879, %v2891
  %v2896 = vsub.f32 %v2880, %v2892
  %v2897 = vsub.f32 %v2881, %v2893
  %v2898 = vmax.f32 %v2894, 0.0
  %v2899 = vmax.f32 %v2895, 0.0
  %v2900 = vmax.f32 %v2896, 0.0
  %v2901 = vmax.f32 %v2897, 0.0
  %2902 = vset.pattern.permute.xlu0 3
  %2903 = vperm.xlu0 %2902, %v2866
  %v2904 = vpop.permute.xlu0 %2903
  %2906 = vset.pattern.permute.xlu0 3
  %2907 = vperm.xlu0 %2906, %v2867
  %v2908 = vpop.permute.xlu0 %2907
  %v2910 = vmin.f32 %v2045, %v2904
  %v2911 = vmin.f32 %v2049, %v2904
  %v2912 = vmin.f32 %v2045, %v2908
  %v2913 = vmin.f32 %v2049, %v2908
  %2914 = vset.pattern.permute.xlu0 1
  %2915 = vperm.xlu0 %2914, %v2866
  %v2916 = vpop.permute.xlu0 %2915
  %2918 = vset.pattern.permute.xlu0 1
  %2919 = vperm.xlu0 %2918, %v2867
  %v2920 = vpop.permute.xlu0 %2919
  %v2922 = vmax.f32 %v2065, %v2916
  %v2923 = vmax.f32 %v2069, %v2916
  %v2924 = vmax.f32 %v2065, %v2920
  %v2925 = vmax.f32 %v2069, %v2920
  %v2926 = vsub.f32 %v2910, %v2922
  %v2927 = vsub.f32 %v2911, %v2923
  %v2928 = vsub.f32 %v2912, %v2924
  %v2929 = vsub.f32 %v2913, %v2925
  %v2930 = vmax.f32 %v2926, 0.0
  %v2931 = vmax.f32 %v2927, 0.0
  %v2932 = vmax.f32 %v2928, 0.0
  %v2933 = vmax.f32 %v2929, 0.0
  %v2934 = vmul.f32 %v2898, %v2930
  %v2935 = vmul.f32 %v2899, %v2931
  %v2936 = vmul.f32 %v2900, %v2932
  %v2937 = vmul.f32 %v2901, %v2933
  %2938 = vrot.lane.b32.xlu0 %v2866, 2
  %v2939 = vpop.permute.xlu0 %2938
  %2940 = vrot.lane.b32.xlu0 %v2867, 2
  %v2941 = vpop.permute.xlu0 %2940
  %v2944 = vsub.f32 %v2866, %v2939
  %v2945 = vsub.f32 %v2867, %v2941
  %2948 = vrot.lane.b32.xlu0 %v2944, 127
  %v2949 = vpop.permute.xlu0 %2948
  %2950 = vrot.lane.b32.xlu0 %v2945, 127
  %v2951 = vpop.permute.xlu0 %2950
  %v2954 = vmul.f32 %v2944, %v2949
  %v2955 = vmul.f32 %v2945, %v2951
  %2957 = vset.pattern.permute.xlu0 2
  %2958 = vperm.xlu0 %2957, %v2954
  %v2959 = vpop.permute.xlu0 %2958
  %2962 = vset.pattern.permute.xlu0 2
  %2963 = vperm.xlu0 %2962, %v2955
  %v2964 = vpop.permute.xlu0 %2963
  %v2966 = vadd.f32 %v2115, %v2959
  %v2967 = vadd.f32 %v2119, %v2959
  %v2968 = vadd.f32 %v2115, %v2964
  %v2969 = vadd.f32 %v2119, %v2964
  %v2970 = vsub.f32 %v2966, %v2934
  %v2971 = vsub.f32 %v2967, %v2935
  %v2972 = vsub.f32 %v2968, %v2936
  %v2973 = vsub.f32 %v2969, %v2937
  %v2974 = vrcp.pop %v2970
  %v2975 = vrcp.pop %v2971
  %v2976 = vrcp.pop %v2972
  %v2977 = vrcp.pop %v2973
  %v2978 = vmul.f32 %v2934, %v2974
  %v2979 = vmul.f32 %v2935, %v2975
  %v2980 = vmul.f32 %v2936, %v2976
  %v2981 = vmul.f32 %v2937, %v2977
  %v2982 = vmax.f32 %v2862, %v2978
  %v2983 = vmax.f32 %v2863, %v2979
  %v2984 = vmax.f32 %v2864, %v2980
  %v2985 = vmax.f32 %v2865, %v2981
  %v2986 = vld [vmem:[%s1989 + $0x80] sm:$0xff]
  %v2987 = vld [vmem:[%s1989 + $0x88] sm:$0xff]
  %2989 = vset.pattern.permute.xlu0 2
  %2990 = vperm.xlu0 %2989, %v2986
  %v2991 = vpop.permute.xlu0 %2990
  %2994 = vset.pattern.permute.xlu0 2
  %2995 = vperm.xlu0 %2994, %v2987
  %v2996 = vpop.permute.xlu0 %2995
  %v2998 = vmin.f32 %v1995, %v2991
  %v2999 = vmin.f32 %v1999, %v2991
  %v3000 = vmin.f32 %v1995, %v2996
  %v3001 = vmin.f32 %v1999, %v2996
  %3002 = vset.pattern.permute.xlu0 0
  %3003 = vperm.xlu0 %3002, %v2986
  %v3004 = vpop.permute.xlu0 %3003
  %3006 = vset.pattern.permute.xlu0 0
  %3007 = vperm.xlu0 %3006, %v2987
  %v3008 = vpop.permute.xlu0 %3007
  %v3010 = vmax.f32 %v2017, %v3004
  %v3011 = vmax.f32 %v2021, %v3004
  %v3012 = vmax.f32 %v2017, %v3008
  %v3013 = vmax.f32 %v2021, %v3008
  %v3014 = vsub.f32 %v2998, %v3010
  %v3015 = vsub.f32 %v2999, %v3011
  %v3016 = vsub.f32 %v3000, %v3012
  %v3017 = vsub.f32 %v3001, %v3013
  %v3018 = vmax.f32 %v3014, 0.0
  %v3019 = vmax.f32 %v3015, 0.0
  %v3020 = vmax.f32 %v3016, 0.0
  %v3021 = vmax.f32 %v3017, 0.0
  %3022 = vset.pattern.permute.xlu0 3
  %3023 = vperm.xlu0 %3022, %v2986
  %v3024 = vpop.permute.xlu0 %3023
  %3026 = vset.pattern.permute.xlu0 3
  %3027 = vperm.xlu0 %3026, %v2987
  %v3028 = vpop.permute.xlu0 %3027
  %v3030 = vmin.f32 %v2045, %v3024
  %v3031 = vmin.f32 %v2049, %v3024
  %v3032 = vmin.f32 %v2045, %v3028
  %v3033 = vmin.f32 %v2049, %v3028
  %3034 = vset.pattern.permute.xlu0 1
  %3035 = vperm.xlu0 %3034, %v2986
  %v3036 = vpop.permute.xlu0 %3035
  %3038 = vset.pattern.permute.xlu0 1
  %3039 = vperm.xlu0 %3038, %v2987
  %v3040 = vpop.permute.xlu0 %3039
  %v3042 = vmax.f32 %v2065, %v3036
  %v3043 = vmax.f32 %v2069, %v3036
  %v3044 = vmax.f32 %v2065, %v3040
  %v3045 = vmax.f32 %v2069, %v3040
  %v3046 = vsub.f32 %v3030, %v3042
  %v3047 = vsub.f32 %v3031, %v3043
  %v3048 = vsub.f32 %v3032, %v3044
  %v3049 = vsub.f32 %v3033, %v3045
  %v3050 = vmax.f32 %v3046, 0.0
  %v3051 = vmax.f32 %v3047, 0.0
  %v3052 = vmax.f32 %v3048, 0.0
  %v3053 = vmax.f32 %v3049, 0.0
  %v3054 = vmul.f32 %v3018, %v3050
  %v3055 = vmul.f32 %v3019, %v3051
  %v3056 = vmul.f32 %v3020, %v3052
  %v3057 = vmul.f32 %v3021, %v3053
  %3058 = vrot.lane.b32.xlu0 %v2986, 2
  %v3059 = vpop.permute.xlu0 %3058
  %3060 = vrot.lane.b32.xlu0 %v2987, 2
  %v3061 = vpop.permute.xlu0 %3060
  %v3064 = vsub.f32 %v2986, %v3059
  %v3065 = vsub.f32 %v2987, %v3061
  %3068 = vrot.lane.b32.xlu0 %v3064, 127
  %v3069 = vpop.permute.xlu0 %3068
  %3070 = vrot.lane.b32.xlu0 %v3065, 127
  %v3071 = vpop.permute.xlu0 %3070
  %v3074 = vmul.f32 %v3064, %v3069
  %v3075 = vmul.f32 %v3065, %v3071
  %3077 = vset.pattern.permute.xlu0 2
  %3078 = vperm.xlu0 %3077, %v3074
  %v3079 = vpop.permute.xlu0 %3078
  %3082 = vset.pattern.permute.xlu0 2
  %3083 = vperm.xlu0 %3082, %v3075
  %v3084 = vpop.permute.xlu0 %3083
  %v3086 = vadd.f32 %v2115, %v3079
  %v3087 = vadd.f32 %v2119, %v3079
  %v3088 = vadd.f32 %v2115, %v3084
  %v3089 = vadd.f32 %v2119, %v3084
  %v3090 = vsub.f32 %v3086, %v3054
  %v3091 = vsub.f32 %v3087, %v3055
  %v3092 = vsub.f32 %v3088, %v3056
  %v3093 = vsub.f32 %v3089, %v3057
  %v3094 = vrcp.pop %v3090
  %v3095 = vrcp.pop %v3091
  %v3096 = vrcp.pop %v3092
  %v3097 = vrcp.pop %v3093
  %v3098 = vmul.f32 %v3054, %v3094
  %v3099 = vmul.f32 %v3055, %v3095
  %v3100 = vmul.f32 %v3056, %v3096
  %v3101 = vmul.f32 %v3057, %v3097
  %v3102 = vmax.f32 %v2982, %v3098
  %v3103 = vmax.f32 %v2983, %v3099
  %v3104 = vmax.f32 %v2984, %v3100
  %v3105 = vmax.f32 %v2985, %v3101
  %v3106 = vld [vmem:[%s1989 + $0x90] sm:$0xff]
  %v3107 = vld [vmem:[%s1989 + $0x98] sm:$0xff]
  %3109 = vset.pattern.permute.xlu0 2
  %3110 = vperm.xlu0 %3109, %v3106
  %v3111 = vpop.permute.xlu0 %3110
  %3114 = vset.pattern.permute.xlu0 2
  %3115 = vperm.xlu0 %3114, %v3107
  %v3116 = vpop.permute.xlu0 %3115
  %v3118 = vmin.f32 %v1995, %v3111
  %v3119 = vmin.f32 %v1999, %v3111
  %v3120 = vmin.f32 %v1995, %v3116
  %v3121 = vmin.f32 %v1999, %v3116
  %3122 = vset.pattern.permute.xlu0 0
  %3123 = vperm.xlu0 %3122, %v3106
  %v3124 = vpop.permute.xlu0 %3123
  %3126 = vset.pattern.permute.xlu0 0
  %3127 = vperm.xlu0 %3126, %v3107
  %v3128 = vpop.permute.xlu0 %3127
  %v3130 = vmax.f32 %v2017, %v3124
  %v3131 = vmax.f32 %v2021, %v3124
  %v3132 = vmax.f32 %v2017, %v3128
  %v3133 = vmax.f32 %v2021, %v3128
  %v3134 = vsub.f32 %v3118, %v3130
  %v3135 = vsub.f32 %v3119, %v3131
  %v3136 = vsub.f32 %v3120, %v3132
  %v3137 = vsub.f32 %v3121, %v3133
  %v3138 = vmax.f32 %v3134, 0.0
  %v3139 = vmax.f32 %v3135, 0.0
  %v3140 = vmax.f32 %v3136, 0.0
  %v3141 = vmax.f32 %v3137, 0.0
  %3142 = vset.pattern.permute.xlu0 3
  %3143 = vperm.xlu0 %3142, %v3106
  %v3144 = vpop.permute.xlu0 %3143
  %3146 = vset.pattern.permute.xlu0 3
  %3147 = vperm.xlu0 %3146, %v3107
  %v3148 = vpop.permute.xlu0 %3147
  %v3150 = vmin.f32 %v2045, %v3144
  %v3151 = vmin.f32 %v2049, %v3144
  %v3152 = vmin.f32 %v2045, %v3148
  %v3153 = vmin.f32 %v2049, %v3148
  %3154 = vset.pattern.permute.xlu0 1
  %3155 = vperm.xlu0 %3154, %v3106
  %v3156 = vpop.permute.xlu0 %3155
  %3158 = vset.pattern.permute.xlu0 1
  %3159 = vperm.xlu0 %3158, %v3107
  %v3160 = vpop.permute.xlu0 %3159
  %v3162 = vmax.f32 %v2065, %v3156
  %v3163 = vmax.f32 %v2069, %v3156
  %v3164 = vmax.f32 %v2065, %v3160
  %v3165 = vmax.f32 %v2069, %v3160
  %v3166 = vsub.f32 %v3150, %v3162
  %v3167 = vsub.f32 %v3151, %v3163
  %v3168 = vsub.f32 %v3152, %v3164
  %v3169 = vsub.f32 %v3153, %v3165
  %v3170 = vmax.f32 %v3166, 0.0
  %v3171 = vmax.f32 %v3167, 0.0
  %v3172 = vmax.f32 %v3168, 0.0
  %v3173 = vmax.f32 %v3169, 0.0
  %v3174 = vmul.f32 %v3138, %v3170
  %v3175 = vmul.f32 %v3139, %v3171
  %v3176 = vmul.f32 %v3140, %v3172
  %v3177 = vmul.f32 %v3141, %v3173
  %3178 = vrot.lane.b32.xlu0 %v3106, 2
  %v3179 = vpop.permute.xlu0 %3178
  %3180 = vrot.lane.b32.xlu0 %v3107, 2
  %v3181 = vpop.permute.xlu0 %3180
  %v3184 = vsub.f32 %v3106, %v3179
  %v3185 = vsub.f32 %v3107, %v3181
  %3188 = vrot.lane.b32.xlu0 %v3184, 127
  %v3189 = vpop.permute.xlu0 %3188
  %3190 = vrot.lane.b32.xlu0 %v3185, 127
  %v3191 = vpop.permute.xlu0 %3190
  %v3194 = vmul.f32 %v3184, %v3189
  %v3195 = vmul.f32 %v3185, %v3191
  %3197 = vset.pattern.permute.xlu0 2
  %3198 = vperm.xlu0 %3197, %v3194
  %v3199 = vpop.permute.xlu0 %3198
  %3202 = vset.pattern.permute.xlu0 2
  %3203 = vperm.xlu0 %3202, %v3195
  %v3204 = vpop.permute.xlu0 %3203
  %v3206 = vadd.f32 %v2115, %v3199
  %v3207 = vadd.f32 %v2119, %v3199
  %v3208 = vadd.f32 %v2115, %v3204
  %v3209 = vadd.f32 %v2119, %v3204
  %v3210 = vsub.f32 %v3206, %v3174
  %v3211 = vsub.f32 %v3207, %v3175
  %v3212 = vsub.f32 %v3208, %v3176
  %v3213 = vsub.f32 %v3209, %v3177
  %v3214 = vrcp.pop %v3210
  %v3215 = vrcp.pop %v3211
  %v3216 = vrcp.pop %v3212
  %v3217 = vrcp.pop %v3213
  %v3218 = vmul.f32 %v3174, %v3214
  %v3219 = vmul.f32 %v3175, %v3215
  %v3220 = vmul.f32 %v3176, %v3216
  %v3221 = vmul.f32 %v3177, %v3217
  %v3222 = vmax.f32 %v3102, %v3218
  %v3223 = vmax.f32 %v3103, %v3219
  %v3224 = vmax.f32 %v3104, %v3220
  %v3225 = vmax.f32 %v3105, %v3221
  %v3226 = vld [vmem:[%s1989 + $0xa0] sm:$0xff]
  %v3227 = vld [vmem:[%s1989 + $0xa8] sm:$0xff]
  %3229 = vset.pattern.permute.xlu0 2
  %3230 = vperm.xlu0 %3229, %v3226
  %v3231 = vpop.permute.xlu0 %3230
  %3234 = vset.pattern.permute.xlu0 2
  %3235 = vperm.xlu0 %3234, %v3227
  %v3236 = vpop.permute.xlu0 %3235
  %v3238 = vmin.f32 %v1995, %v3231
  %v3239 = vmin.f32 %v1999, %v3231
  %v3240 = vmin.f32 %v1995, %v3236
  %v3241 = vmin.f32 %v1999, %v3236
  %3242 = vset.pattern.permute.xlu0 0
  %3243 = vperm.xlu0 %3242, %v3226
  %v3244 = vpop.permute.xlu0 %3243
  %3246 = vset.pattern.permute.xlu0 0
  %3247 = vperm.xlu0 %3246, %v3227
  %v3248 = vpop.permute.xlu0 %3247
  %v3250 = vmax.f32 %v2017, %v3244
  %v3251 = vmax.f32 %v2021, %v3244
  %v3252 = vmax.f32 %v2017, %v3248
  %v3253 = vmax.f32 %v2021, %v3248
  %v3254 = vsub.f32 %v3238, %v3250
  %v3255 = vsub.f32 %v3239, %v3251
  %v3256 = vsub.f32 %v3240, %v3252
  %v3257 = vsub.f32 %v3241, %v3253
  %v3258 = vmax.f32 %v3254, 0.0
  %v3259 = vmax.f32 %v3255, 0.0
  %v3260 = vmax.f32 %v3256, 0.0
  %v3261 = vmax.f32 %v3257, 0.0
  %3262 = vset.pattern.permute.xlu0 3
  %3263 = vperm.xlu0 %3262, %v3226
  %v3264 = vpop.permute.xlu0 %3263
  %3266 = vset.pattern.permute.xlu0 3
  %3267 = vperm.xlu0 %3266, %v3227
  %v3268 = vpop.permute.xlu0 %3267
  %v3270 = vmin.f32 %v2045, %v3264
  %v3271 = vmin.f32 %v2049, %v3264
  %v3272 = vmin.f32 %v2045, %v3268
  %v3273 = vmin.f32 %v2049, %v3268
  %3274 = vset.pattern.permute.xlu0 1
  %3275 = vperm.xlu0 %3274, %v3226
  %v3276 = vpop.permute.xlu0 %3275
  %3278 = vset.pattern.permute.xlu0 1
  %3279 = vperm.xlu0 %3278, %v3227
  %v3280 = vpop.permute.xlu0 %3279
  %v3282 = vmax.f32 %v2065, %v3276
  %v3283 = vmax.f32 %v2069, %v3276
  %v3284 = vmax.f32 %v2065, %v3280
  %v3285 = vmax.f32 %v2069, %v3280
  %v3286 = vsub.f32 %v3270, %v3282
  %v3287 = vsub.f32 %v3271, %v3283
  %v3288 = vsub.f32 %v3272, %v3284
  %v3289 = vsub.f32 %v3273, %v3285
  %v3290 = vmax.f32 %v3286, 0.0
  %v3291 = vmax.f32 %v3287, 0.0
  %v3292 = vmax.f32 %v3288, 0.0
  %v3293 = vmax.f32 %v3289, 0.0
  %v3294 = vmul.f32 %v3258, %v3290
  %v3295 = vmul.f32 %v3259, %v3291
  %v3296 = vmul.f32 %v3260, %v3292
  %v3297 = vmul.f32 %v3261, %v3293
  %3298 = vrot.lane.b32.xlu0 %v3226, 2
  %v3299 = vpop.permute.xlu0 %3298
  %3300 = vrot.lane.b32.xlu0 %v3227, 2
  %v3301 = vpop.permute.xlu0 %3300
  %v3304 = vsub.f32 %v3226, %v3299
  %v3305 = vsub.f32 %v3227, %v3301
  %3308 = vrot.lane.b32.xlu0 %v3304, 127
  %v3309 = vpop.permute.xlu0 %3308
  %3310 = vrot.lane.b32.xlu0 %v3305, 127
  %v3311 = vpop.permute.xlu0 %3310
  %v3314 = vmul.f32 %v3304, %v3309
  %v3315 = vmul.f32 %v3305, %v3311
  %3317 = vset.pattern.permute.xlu0 2
  %3318 = vperm.xlu0 %3317, %v3314
  %v3319 = vpop.permute.xlu0 %3318
  %3322 = vset.pattern.permute.xlu0 2
  %3323 = vperm.xlu0 %3322, %v3315
  %v3324 = vpop.permute.xlu0 %3323
  %v3326 = vadd.f32 %v2115, %v3319
  %v3327 = vadd.f32 %v2119, %v3319
  %v3328 = vadd.f32 %v2115, %v3324
  %v3329 = vadd.f32 %v2119, %v3324
  %v3330 = vsub.f32 %v3326, %v3294
  %v3331 = vsub.f32 %v3327, %v3295
  %v3332 = vsub.f32 %v3328, %v3296
  %v3333 = vsub.f32 %v3329, %v3297
  %v3334 = vrcp.pop %v3330
  %v3335 = vrcp.pop %v3331
  %v3336 = vrcp.pop %v3332
  %v3337 = vrcp.pop %v3333
  %v3338 = vmul.f32 %v3294, %v3334
  %v3339 = vmul.f32 %v3295, %v3335
  %v3340 = vmul.f32 %v3296, %v3336
  %v3341 = vmul.f32 %v3297, %v3337
  %v3342 = vmax.f32 %v3222, %v3338
  %v3343 = vmax.f32 %v3223, %v3339
  %v3344 = vmax.f32 %v3224, %v3340
  %v3345 = vmax.f32 %v3225, %v3341
  %v3346 = vld [vmem:[%s1989 + $0xb0] sm:$0xff]
  %v3347 = vld [vmem:[%s1989 + $0xb8] sm:$0xff]
  %3349 = vset.pattern.permute.xlu0 2
  %3350 = vperm.xlu0 %3349, %v3346
  %v3351 = vpop.permute.xlu0 %3350
  %3354 = vset.pattern.permute.xlu0 2
  %3355 = vperm.xlu0 %3354, %v3347
  %v3356 = vpop.permute.xlu0 %3355
  %v3358 = vmin.f32 %v1995, %v3351
  %v3359 = vmin.f32 %v1999, %v3351
  %v3360 = vmin.f32 %v1995, %v3356
  %v3361 = vmin.f32 %v1999, %v3356
  %3362 = vset.pattern.permute.xlu0 0
  %3363 = vperm.xlu0 %3362, %v3346
  %v3364 = vpop.permute.xlu0 %3363
  %3366 = vset.pattern.permute.xlu0 0
  %3367 = vperm.xlu0 %3366, %v3347
  %v3368 = vpop.permute.xlu0 %3367
  %v3370 = vmax.f32 %v2017, %v3364
  %v3371 = vmax.f32 %v2021, %v3364
  %v3372 = vmax.f32 %v2017, %v3368
  %v3373 = vmax.f32 %v2021, %v3368
  %v3374 = vsub.f32 %v3358, %v3370
  %v3375 = vsub.f32 %v3359, %v3371
  %v3376 = vsub.f32 %v3360, %v3372
  %v3377 = vsub.f32 %v3361, %v3373
  %v3378 = vmax.f32 %v3374, 0.0
  %v3379 = vmax.f32 %v3375, 0.0
  %v3380 = vmax.f32 %v3376, 0.0
  %v3381 = vmax.f32 %v3377, 0.0
  %3382 = vset.pattern.permute.xlu0 3
  %3383 = vperm.xlu0 %3382, %v3346
  %v3384 = vpop.permute.xlu0 %3383
  %3386 = vset.pattern.permute.xlu0 3
  %3387 = vperm.xlu0 %3386, %v3347
  %v3388 = vpop.permute.xlu0 %3387
  %v3390 = vmin.f32 %v2045, %v3384
  %v3391 = vmin.f32 %v2049, %v3384
  %v3392 = vmin.f32 %v2045, %v3388
  %v3393 = vmin.f32 %v2049, %v3388
  %3394 = vset.pattern.permute.xlu0 1
  %3395 = vperm.xlu0 %3394, %v3346
  %v3396 = vpop.permute.xlu0 %3395
  %3398 = vset.pattern.permute.xlu0 1
  %3399 = vperm.xlu0 %3398, %v3347
  %v3400 = vpop.permute.xlu0 %3399
  %v3402 = vmax.f32 %v2065, %v3396
  %v3403 = vmax.f32 %v2069, %v3396
  %v3404 = vmax.f32 %v2065, %v3400
  %v3405 = vmax.f32 %v2069, %v3400
  %v3406 = vsub.f32 %v3390, %v3402
  %v3407 = vsub.f32 %v3391, %v3403
  %v3408 = vsub.f32 %v3392, %v3404
  %v3409 = vsub.f32 %v3393, %v3405
  %v3410 = vmax.f32 %v3406, 0.0
  %v3411 = vmax.f32 %v3407, 0.0
  %v3412 = vmax.f32 %v3408, 0.0
  %v3413 = vmax.f32 %v3409, 0.0
  %v3414 = vmul.f32 %v3378, %v3410
  %v3415 = vmul.f32 %v3379, %v3411
  %v3416 = vmul.f32 %v3380, %v3412
  %v3417 = vmul.f32 %v3381, %v3413
  %3418 = vrot.lane.b32.xlu0 %v3346, 2
  %v3419 = vpop.permute.xlu0 %3418
  %3420 = vrot.lane.b32.xlu0 %v3347, 2
  %v3421 = vpop.permute.xlu0 %3420
  %v3424 = vsub.f32 %v3346, %v3419
  %v3425 = vsub.f32 %v3347, %v3421
  %3428 = vrot.lane.b32.xlu0 %v3424, 127
  %v3429 = vpop.permute.xlu0 %3428
  %3430 = vrot.lane.b32.xlu0 %v3425, 127
  %v3431 = vpop.permute.xlu0 %3430
  %v3434 = vmul.f32 %v3424, %v3429
  %v3435 = vmul.f32 %v3425, %v3431
  %3437 = vset.pattern.permute.xlu0 2
  %3438 = vperm.xlu0 %3437, %v3434
  %v3439 = vpop.permute.xlu0 %3438
  %3442 = vset.pattern.permute.xlu0 2
  %3443 = vperm.xlu0 %3442, %v3435
  %v3444 = vpop.permute.xlu0 %3443
  %v3446 = vadd.f32 %v2115, %v3439
  %v3447 = vadd.f32 %v2119, %v3439
  %v3448 = vadd.f32 %v2115, %v3444
  %v3449 = vadd.f32 %v2119, %v3444
  %v3450 = vsub.f32 %v3446, %v3414
  %v3451 = vsub.f32 %v3447, %v3415
  %v3452 = vsub.f32 %v3448, %v3416
  %v3453 = vsub.f32 %v3449, %v3417
  %v3454 = vrcp.pop %v3450
  %v3455 = vrcp.pop %v3451
  %v3456 = vrcp.pop %v3452
  %v3457 = vrcp.pop %v3453
  %v3458 = vmul.f32 %v3414, %v3454
  %v3459 = vmul.f32 %v3415, %v3455
  %v3460 = vmul.f32 %v3416, %v3456
  %v3461 = vmul.f32 %v3417, %v3457
  %v3462 = vmax.f32 %v3342, %v3458
  %v3463 = vmax.f32 %v3343, %v3459
  %v3464 = vmax.f32 %v3344, %v3460
  %v3465 = vmax.f32 %v3345, %v3461
  %v3466 = vmax.f32 %v3462, %v3464
  %v3467 = vrot.slane %v3466, 4
  %v3468 = vmax.f32 %v3466, %v3467
  %v3469 = vrot.slane %v3468, 2
  %v3470 = vmax.f32 %v3468, %v3469
  %v3471 = vrot.slane %v3470, 1
  %v3472 = vmax.f32 %v3470, %v3471
  %v3473 = vsel %vm1718, %v3463, -inf
  %v3474 = vsel %vm1718, %v3465, -inf
  %v3475 = vmax.f32 %v3473, %v3474
  %v3476 = vrot.slane %v3475, 4
  %v3477 = vmax.f32 %v3475, %v3476
  %v3478 = vrot.slane %v3477, 2
  %v3479 = vmax.f32 %v3477, %v3478
  %v3480 = vrot.slane %v3479, 1
  %v3481 = vmax.f32 %v3479, %v3480
  %vm3482 = vcmp.lt.f32.partialorder %v3472, 0.5
  %vm3483 = vcmp.lt.f32.partialorder %v3481, 0.5
  %v3484 = vsel %vm3482, 1, 0
  %v3485 = vsel %vm3483, 1, 0
  %v3486 = vcvt.s32.f32 %v3484
  %v3487 = vcvt.s32.f32 %v3485
  %v3488 = vmul.f32 %v1987, %v3486
  %v3489 = vmul.f32 %v1988, %v3487
  %v3490 = vmul.f32 %v3488, 0.5
  %v3491 = vmul.f32 %v3489, 0.5
  %v3494 = vrot.slane %v1945, 7
  %v3495 = vrot.slane %v1946, 7
  %v3500 = vrot.slane %v1971, 6
  %v3501 = vrot.slane %v1972, 6
  %v3506 = vrot.slane %v1983, 5
  %v3507 = vrot.slane %v1984, 5
  %v3512 = vrot.slane %v3490, 4
  %v3513 = vrot.slane %v3491, 4
  %v3516 = vsel %vm1762, %v1917, %v3494
  %v3517 = vsel %vm1762, %v1918, %v3495
  %v3518 = vsel %vm143, %v3516, %v3500
  %v3519 = vsel %vm143, %v3517, %v3501
  %v3520 = vsel %vm1767, %v3518, %v3506
  %v3521 = vsel %vm1767, %v3519, %v3507
  %v3522 = vsel %vm201, %v3520, %v3512
  %v3523 = vsel %vm201, %v3521, %v3513
  %v3524 = vsel %vm1772, %v3522, 0.0
  %v3525 = vsel %vm1772, %v3523, 0.0
  %v3526 = vsel %vm1718, %v3525, 0.0
  %v3527 = vadd.f32 %v3524, %v3526
  %3528 = vadd.xlane.f32.xlu0 %v3527
  %v3529 = vpop.xlane.xlu0 %3528
  %s3530 = scalar_lea.vmem %s3, 8
  %3531 = vst.msk [vmem:[%s3530] sm:$0xff] %vm1779, %v3529
  // Predicated region
  $region14: #{_yolo_loss_impl.1} parent=0 // pred_check
    _
  $region15: #{_yolo_loss_impl.1} parent=0 // pred_check_branch
    %3533 = sbr.rel (0) target = $region17
  $region16: #{_yolo_loss_impl.1} parent=0 // pred_region
    _
  $region17: #{_yolo_loss_impl.1} parent=0 // pred_fallthru
    _
  // Predicated region
  $region18: #{_yolo_loss_impl.1} parent=0 // pred_check
    _
  $region19: #{_yolo_loss_impl.1} parent=0 // pred_check_branch
    %3535 = sbr.rel (0) target = $region21
  $region20: #{_yolo_loss_impl.1} parent=0 // pred_region
    _
  $region21: #{_yolo_loss_impl.1} parent=0 // pred_fallthru
    _

</llo_original>
